<compile_context>
chip_gen: v6e
topology: v6e:2x2x1
jax: 0.10.0
libtpu: 0.0.40
codegen_flags: <defaults>
</compile_context>

<pallas_src>
import functools

import jax
import jax.numpy as jnp
from jax.experimental import pallas as pl
from jax.experimental.pallas import tpu as pltpu


def _gelu(x):
    # exact (erf) GELU == PyTorch nn.GELU() default
    return 0.5 * x * (1.0 + jax.lax.erf(x * 0.7071067811865476))


# ----------------------------- fused kernel -------------------------------- #

def _down_kernel(x_ref,
                 w1_ref, g1_ref, b1_ref,
                 w2_ref, g2_ref, b2_ref,
                 w3_ref, g3_ref, b3_ref,
                 w4_ref, g4_ref, b4_ref,
                 out_ref, pad_ref, col_ref, *, H, W, C, Cout):
    Hp, Wp = H // 2, W // 2

    # Zero the halo scratch: borders stay zero for every conv; interiors are
    # overwritten before each conv (in-kernel padding, no jnp.pad in wrapper).
    pad_ref[...] = jnp.zeros_like(pad_ref)

    # ---------------- MaxPool2d(kernel=2, stride=2), channels-last --------- #
    x = x_ref[0]                                        # (H, W, C)
    xr = x.reshape(Hp, 2, W, C)
    xh = jnp.maximum(xr[:, 0], xr[:, 1])                # (Hp, W, C)
    xr2 = xh.reshape(Hp, Wp, 2, C)
    pooled = jnp.maximum(xr2[:, :, 0], xr2[:, :, 1])    # (Hp, Wp, C)
    pooled2d = pooled.reshape(Hp * Wp, C)

    # -------- conv3x3(pad=1, no bias) + GroupNorm(1 group), im2col -------- #
    def conv_gn(act2d, w_ref, g_ref, b_ref, cin, cout):
        # write interior of halo scratch (border already zero)
        pad_ref[1:Hp + 1, 1:Wp + 1, 0:cin] = act2d.reshape(Hp, Wp, cin)
        # im2col: 9 taps packed along lanes -> a single K = 9*cin MXU dot
        for k in range(9):
            dy, dx = k // 3, k % 3
            col_ref[:, k * cin:(k + 1) * cin] = (
                pad_ref[dy:dy + Hp, dx:dx + Wp, 0:cin].reshape(Hp * Wp, cin))
        y = jnp.dot(col_ref[:, 0:9 * cin], w_ref[...],
                    preferred_element_type=jnp.float32)        # (Hp*Wp, cout)
        # GroupNorm(1 group) == LayerNorm over (C,H,W) per sample, biased var
        mean = jnp.mean(y)
        var = jnp.mean(jnp.square(y - mean))
        y = (y - mean) * jax.lax.rsqrt(var + 1e-5)
        return y * g_ref[...] + b_ref[...]

    # DoubleConv(C, C, residual=True):  gelu(x + GN(conv(gelu(GN(conv(x))))))
    t = _gelu(conv_gn(pooled2d, w1_ref, g1_ref, b1_ref, C, C))
    t = conv_gn(t, w2_ref, g2_ref, b2_ref, C, C)
    h = _gelu(pooled2d + t)

    # DoubleConv(C, Cout)  (mid_channels defaults to Cout):  GN(conv(gelu(GN(conv(h)))))
    t = _gelu(conv_gn(h, w3_ref, g3_ref, b3_ref, C, Cout))
    y = conv_gn(t, w4_ref, g4_ref, b4_ref, Cout, Cout)          # (Hp*Wp, Cout)

    # lane-contiguous output slab (Hp, Wp*Cout); wrapper restores NCHW
    y3 = y.reshape(Hp, Wp, Cout)
    for j in range(Wp):
        out_ref[0, :, j * Cout:(j + 1) * Cout] = y3[:, j, :].astype(out_ref.dtype)


# ----------------------------- wrapper -------------------------------------- #

def down_forward(x_nchw, p):
    """Down.forward: MaxPool2d(2) -> DoubleConv(C,C,residual=True) -> DoubleConv(C,Cout)."""
    N, C, H, W = x_nchw.shape
    assert H % 2 == 0 and W % 2 == 0
    Hp, Wp = H // 2, W // 2
    Cout = p["w4"].shape[-1]
    assert p["w1"].shape == (3, 3, C, C) and p["w2"].shape == (3, 3, C, C)
    assert p["w3"].shape == (3, 3, C, Cout) and p["w4"].shape == (3, 3, Cout, Cout)
    Cmax = max(C, Cout)

    # one-time layout plumbing in the wrapper (tiny tensors):
    x_nhwc = jnp.transpose(x_nchw, (0, 2, 3, 1)).astype(jnp.float32)
    w1 = p["w1"].reshape(9 * C, C).astype(jnp.float32)
    w2 = p["w2"].reshape(9 * C, C).astype(jnp.float32)
    w3 = p["w3"].reshape(9 * C, Cout).astype(jnp.float32)
    w4 = p["w4"].reshape(9 * Cout, Cout).astype(jnp.float32)
    g1 = p["g1"].reshape(1, C).astype(jnp.float32)
    b1 = p["b1"].reshape(1, C).astype(jnp.float32)
    g2 = p["g2"].reshape(1, C).astype(jnp.float32)
    b2 = p["b2"].reshape(1, C).astype(jnp.float32)
    g3 = p["g3"].reshape(1, Cout).astype(jnp.float32)
    b3 = p["b3"].reshape(1, Cout).astype(jnp.float32)
    g4 = p["g4"].reshape(1, Cout).astype(jnp.float32)
    b4 = p["b4"].reshape(1, Cout).astype(jnp.float32)

    def full(shape):
        return pl.BlockSpec(shape, lambda b: (0,) * len(shape))

    kernel = functools.partial(_down_kernel, H=H, W=W, C=C, Cout=Cout)

    out_flat = pl.pallas_call(
        kernel,
        out_shape=jax.ShapeDtypeStruct((N, Hp, Wp * Cout), jnp.float32),
        grid=(N,),
        in_specs=[
            pl.BlockSpec((1, H, W, C), lambda b: (b, 0, 0, 0)),
            full((9 * C, C)), full((1, C)), full((1, C)),
            full((9 * C, C)), full((1, C)), full((1, C)),
            full((9 * C, Cout)), full((1, Cout)), full((1, Cout)),
            full((9 * Cout, Cout)), full((1, Cout)), full((1, Cout)),
        ],
        out_specs=pl.BlockSpec((1, Hp, Wp * Cout), lambda b: (b, 0, 0)),
        scratch_shapes=[
            pltpu.VMEM((Hp + 2, Wp + 2, Cmax), jnp.float32),   # zero-padded halo
            pltpu.VMEM((Hp * Wp, 9 * Cmax), jnp.float32),      # im2col slab
        ],
        compiler_params=pltpu.CompilerParams(
            dimension_semantics=("parallel",)),
    )(x_nhwc, w1, g1, b1, w2, g2, b2, w3, g3, b3, w4, g4, b4)

    return jnp.transpose(out_flat.reshape(N, Hp, Wp, Cout), (0, 3, 1, 2))


# ----------------------------- pure-JAX reference --------------------------- #

def _ref_down(x, p):
    N, C, H, W = x.shape
    xp = x.reshape(N, C, H // 2, 2, W // 2, 2).max(axis=(3, 5))

    def conv(h, w):
        return jax.lax.conv_general_dilated(
            h, w, window_strides=(1, 1), padding=((1, 1), (1, 1)),
            dimension_numbers=("NCHW", "HWIO", "NCHW"),
            precision=jax.lax.Precision.HIGHEST)

    def gn(h, g, b):
        mean = h.mean(axis=(1, 2, 3), keepdims=True)
        var = jnp.square(h - mean).mean(axis=(1, 2, 3), keepdims=True)
        hn = (h - mean) * jax.lax.rsqrt(var + 1e-5)
        return hn * g.reshape(1, -1, 1, 1) + b.reshape(1, -1, 1, 1)

    t = _gelu(gn(conv(xp, p["w1"]), p["g1"], p["b1"]))
    t = gn(conv(t, p["w2"]), p["g2"], p["b2"])
    h1 = _gelu(xp + t)
    t = _gelu(gn(conv(h1, p["w3"]), p["g3"], p["b3"]))
    return gn(conv(t, p["w4"]), p["g4"], p["b4"])


# ----------------------------- main ------------------------------------------ #

if __name__ == "__main__":
    N, C, H, W = 2, 4, 16, 16          # in_channels = 4
    Cout = 8                           # out_channels = 8

    key = jax.random.PRNGKey(0)
    ks = jax.random.split(key, 13)

    def nrm(k, shape, scale=1.0):
        return scale * jax.random.normal(k, shape, jnp.float32)

    x = nrm(ks[0], (N, C, H, W))
    params = {
        # DoubleConv 1 (residual): C -> C -> C
        "w1": nrm(ks[1], (3, 3, C, C), 0.1),
        "g1": 1.0 + nrm(ks[2], (C,), 0.05),
        "b1": nrm(ks[3], (C,), 0.05),
        "w2": nrm(ks[4], (3, 3, C, C), 0.1),
        "g2": 1.0 + nrm(ks[5], (C,), 0.05),
        "b2": nrm(ks[6], (C,), 0.05),
        # DoubleConv 2: C -> Cout -> Cout (mid_channels defaults to out_channels)
        "w3": nrm(ks[7], (3, 3, C, Cout), 0.1),
        "g3": 1.0 + nrm(ks[8], (Cout,), 0.05),
        "b3": nrm(ks[9], (Cout,), 0.05),
        "w4": nrm(ks[10], (3, 3, Cout, Cout), 0.1),
        "g4": 1.0 + nrm(ks[11], (Cout,), 0.05),
        "b4": nrm(ks[12], (Cout,), 0.05),
    }

    out = down_forward(x, params)
    out = jax.block_until_ready(out)

    assert out.shape == (N, Cout, H // 2, W // 2), out.shape
    assert bool(jnp.all(jnp.isfinite(out)))

    ref = _ref_down(x, params)
    err = float(jnp.max(jnp.abs(out - ref)))
    assert err < 2e-2, f"max abs error vs reference: {err}"

    print("KERNEL_OK")
</pallas_src>

<mosaic_0001>
module attributes {stable_mosaic.version = 11 : i64} {
  func.func @_down_kernel(%arg0: i32, %arg1: memref<1x16x16x4xf32, #tpu.memory_space<vmem>>, %arg2: memref<36x4xf32, #tpu.memory_space<vmem>>, %arg3: memref<1x4xf32, #tpu.memory_space<vmem>>, %arg4: memref<1x4xf32, #tpu.memory_space<vmem>>, %arg5: memref<36x4xf32, #tpu.memory_space<vmem>>, %arg6: memref<1x4xf32, #tpu.memory_space<vmem>>, %arg7: memref<1x4xf32, #tpu.memory_space<vmem>>, %arg8: memref<36x8xf32, #tpu.memory_space<vmem>>, %arg9: memref<1x8xf32, #tpu.memory_space<vmem>>, %arg10: memref<1x8xf32, #tpu.memory_space<vmem>>, %arg11: memref<72x8xf32, #tpu.memory_space<vmem>>, %arg12: memref<1x8xf32, #tpu.memory_space<vmem>>, %arg13: memref<1x8xf32, #tpu.memory_space<vmem>>, %arg14: memref<1x8x64xf32, #tpu.memory_space<vmem>>, %arg15: memref<10x10x8xf32, #tpu.memory_space<vmem>>, %arg16: memref<64x72xf32, #tpu.memory_space<vmem>>) attributes {dimension_semantics = [#tpu.dimension_semantics<parallel>], iteration_bounds = array<i64: 2>, scalar_prefetch = 0 : i64, scratch_operands = 2 : i64, tpu.core_type = #tpu.core_type<tc>, window_params = [{transform_indices = @transform_0, window_bounds = array<i64: 1, 16, 16, 4>}, {pipeline_mode = #tpu.pipeline_mode<synchronous>, transform_indices = @transform_1, window_bounds = array<i64: 36, 4>}, {pipeline_mode = #tpu.pipeline_mode<synchronous>, transform_indices = @transform_2, window_bounds = array<i64: 1, 4>}, {pipeline_mode = #tpu.pipeline_mode<synchronous>, transform_indices = @transform_3, window_bounds = array<i64: 1, 4>}, {pipeline_mode = #tpu.pipeline_mode<synchronous>, transform_indices = @transform_4, window_bounds = array<i64: 36, 4>}, {pipeline_mode = #tpu.pipeline_mode<synchronous>, transform_indices = @transform_5, window_bounds = array<i64: 1, 4>}, {pipeline_mode = #tpu.pipeline_mode<synchronous>, transform_indices = @transform_6, window_bounds = array<i64: 1, 4>}, {pipeline_mode = #tpu.pipeline_mode<synchronous>, transform_indices = @transform_7, window_bounds = array<i64: 36, 8>}, {pipeline_mode = #tpu.pipeline_mode<synchronous>, transform_indices = @transform_8, window_bounds = array<i64: 1, 8>}, {pipeline_mode = #tpu.pipeline_mode<synchronous>, transform_indices = @transform_9, window_bounds = array<i64: 1, 8>}, {pipeline_mode = #tpu.pipeline_mode<synchronous>, transform_indices = @transform_10, window_bounds = array<i64: 72, 8>}, {pipeline_mode = #tpu.pipeline_mode<synchronous>, transform_indices = @transform_11, window_bounds = array<i64: 1, 8>}, {pipeline_mode = #tpu.pipeline_mode<synchronous>, transform_indices = @transform_12, window_bounds = array<i64: 1, 8>}, {transform_indices = @transform_13, window_bounds = array<i64: 1, 8, 64>}]} {
    %cst = arith.constant 0.000000e+00 : f32
    %0 = vector.broadcast %cst : f32 to vector<10x10x8xf32>
    %c0 = arith.constant 0 : index
    %c0_0 = arith.constant 0 : index
    %c0_1 = arith.constant 0 : index
    %1 = vector.load %arg15[%c0, %c0_0, %c0_1] : memref<10x10x8xf32, #tpu.memory_space<vmem>>, vector<10x10x8xf32>
    tpu.vector_store %arg15[%c0, %c0_0, %c0_1], %0 {strides = array<i32>} : memref<10x10x8xf32, #tpu.memory_space<vmem>>, vector<10x10x8xf32>,
    %c0_2 = arith.constant 0 : index
    %c0_3 = arith.constant 0 : index
    %c0_4 = arith.constant 0 : index
    %c0_5 = arith.constant 0 : index
    %2 = vector.load %arg1[%c0_2, %c0_3, %c0_4, %c0_5] : memref<1x16x16x4xf32, #tpu.memory_space<vmem>>, vector<1x16x16x4xf32>
    %3 = vector.shape_cast %2 : vector<1x16x16x4xf32> to vector<16x16x4xf32>
    %4 = vector.shape_cast %3 : vector<16x16x4xf32> to vector<8x2x16x4xf32>
    %5 = vector.extract_strided_slice %4 {offsets = [0, 0, 0, 0], sizes = [8, 1, 16, 4], strides = [1, 1, 1, 1]} : vector<8x2x16x4xf32> to vector<8x1x16x4xf32>
    %6 = vector.shape_cast %5 : vector<8x1x16x4xf32> to vector<8x16x4xf32>
    %7 = vector.extract_strided_slice %4 {offsets = [0, 1, 0, 0], sizes = [8, 1, 16, 4], strides = [1, 1, 1, 1]} : vector<8x2x16x4xf32> to vector<8x1x16x4xf32>
    %8 = vector.shape_cast %7 : vector<8x1x16x4xf32> to vector<8x16x4xf32>
    %9 = arith.maximumf %6, %8 : vector<8x16x4xf32>
    %10 = vector.shape_cast %9 : vector<8x16x4xf32> to vector<8x8x2x4xf32>
    %11 = vector.extract_strided_slice %10 {offsets = [0, 0, 0, 0], sizes = [8, 8, 1, 4], strides = [1, 1, 1, 1]} : vector<8x8x2x4xf32> to vector<8x8x1x4xf32>
    %12 = vector.shape_cast %11 : vector<8x8x1x4xf32> to vector<8x8x4xf32>
    %13 = vector.extract_strided_slice %10 {offsets = [0, 0, 1, 0], sizes = [8, 8, 1, 4], strides = [1, 1, 1, 1]} : vector<8x8x2x4xf32> to vector<8x8x1x4xf32>
    %14 = vector.shape_cast %13 : vector<8x8x1x4xf32> to vector<8x8x4xf32>
    %15 = arith.maximumf %12, %14 : vector<8x8x4xf32>
    %16 = vector.shape_cast %15 : vector<8x8x4xf32> to vector<64x4xf32>
    %17 = vector.shape_cast %16 : vector<64x4xf32> to vector<8x8x4xf32>
    %c1 = arith.constant 1 : index
    %c1_6 = arith.constant 1 : index
    %c0_7 = arith.constant 0 : index
    %18 = vector.load %arg15[%c1, %c1_6, %c0_7] : memref<10x10x8xf32, #tpu.memory_space<vmem>>, vector<8x8x4xf32>
    tpu.vector_store %arg15[%c1, %c1_6, %c0_7], %17 {strides = array<i32>} : memref<10x10x8xf32, #tpu.memory_space<vmem>>, vector<8x8x4xf32>,
    %c0_8 = arith.constant 0 : index
    %c0_9 = arith.constant 0 : index
    %c0_10 = arith.constant 0 : index
    %19 = vector.load %arg15[%c0_8, %c0_9, %c0_10] : memref<10x10x8xf32, #tpu.memory_space<vmem>>, vector<8x8x4xf32>
    %20 = vector.shape_cast %19 : vector<8x8x4xf32> to vector<64x4xf32>
    %c0_11 = arith.constant 0 : index
    %c0_12 = arith.constant 0 : index
    %21 = vector.load %arg16[%c0_11, %c0_12] : memref<64x72xf32, #tpu.memory_space<vmem>>, vector<64x4xf32>
    tpu.vector_store %arg16[%c0_11, %c0_12], %20 {strides = array<i32>} : memref<64x72xf32, #tpu.memory_space<vmem>>, vector<64x4xf32>,
    %c0_13 = arith.constant 0 : index
    %c1_14 = arith.constant 1 : index
    %c0_15 = arith.constant 0 : index
    %22 = vector.load %arg15[%c0_13, %c1_14, %c0_15] : memref<10x10x8xf32, #tpu.memory_space<vmem>>, vector<8x8x4xf32>
    %23 = vector.shape_cast %22 : vector<8x8x4xf32> to vector<64x4xf32>
    %c0_16 = arith.constant 0 : index
    %c4 = arith.constant 4 : index
    %24 = vector.load %arg16[%c0_16, %c4] : memref<64x72xf32, #tpu.memory_space<vmem>>, vector<64x4xf32>
    tpu.vector_store %arg16[%c0_16, %c4], %23 {strides = array<i32>} : memref<64x72xf32, #tpu.memory_space<vmem>>, vector<64x4xf32>,
    %c0_17 = arith.constant 0 : index
    %c2 = arith.constant 2 : index
    %c0_18 = arith.constant 0 : index
    %25 = vector.load %arg15[%c0_17, %c2, %c0_18] : memref<10x10x8xf32, #tpu.memory_space<vmem>>, vector<8x8x4xf32>
    %26 = vector.shape_cast %25 : vector<8x8x4xf32> to vector<64x4xf32>
    %c0_19 = arith.constant 0 : index
    %c8 = arith.constant 8 : index
    %27 = vector.load %arg16[%c0_19, %c8] : memref<64x72xf32, #tpu.memory_space<vmem>>, vector<64x4xf32>
    tpu.vector_store %arg16[%c0_19, %c8], %26 {strides = array<i32>} : memref<64x72xf32, #tpu.memory_space<vmem>>, vector<64x4xf32>,
    %c1_20 = arith.constant 1 : index
    %c0_21 = arith.constant 0 : index
    %c0_22 = arith.constant 0 : index
    %28 = vector.load %arg15[%c1_20, %c0_21, %c0_22] : memref<10x10x8xf32, #tpu.memory_space<vmem>>, vector<8x8x4xf32>
    %29 = vector.shape_cast %28 : vector<8x8x4xf32> to vector<64x4xf32>
    %c0_23 = arith.constant 0 : index
    %c12 = arith.constant 12 : index
    %30 = vector.load %arg16[%c0_23, %c12] : memref<64x72xf32, #tpu.memory_space<vmem>>, vector<64x4xf32>
    tpu.vector_store %arg16[%c0_23, %c12], %29 {strides = array<i32>} : memref<64x72xf32, #tpu.memory_space<vmem>>, vector<64x4xf32>,
    %c1_24 = arith.constant 1 : index
    %c1_25 = arith.constant 1 : index
    %c0_26 = arith.constant 0 : index
    %31 = vector.load %arg15[%c1_24, %c1_25, %c0_26] : memref<10x10x8xf32, #tpu.memory_space<vmem>>, vector<8x8x4xf32>
    %32 = vector.shape_cast %31 : vector<8x8x4xf32> to vector<64x4xf32>
    %c0_27 = arith.constant 0 : index
    %c16 = arith.constant 16 : index
    %33 = vector.load %arg16[%c0_27, %c16] : memref<64x72xf32, #tpu.memory_space<vmem>>, vector<64x4xf32>
    tpu.vector_store %arg16[%c0_27, %c16], %32 {strides = array<i32>} : memref<64x72xf32, #tpu.memory_space<vmem>>, vector<64x4xf32>,
    %c1_28 = arith.constant 1 : index
    %c2_29 = arith.constant 2 : index
    %c0_30 = arith.constant 0 : index
    %34 = vector.load %arg15[%c1_28, %c2_29, %c0_30] : memref<10x10x8xf32, #tpu.memory_space<vmem>>, vector<8x8x4xf32>
    %35 = vector.shape_cast %34 : vector<8x8x4xf32> to vector<64x4xf32>
    %c0_31 = arith.constant 0 : index
    %c20 = arith.constant 20 : index
    %36 = vector.load %arg16[%c0_31, %c20] : memref<64x72xf32, #tpu.memory_space<vmem>>, vector<64x4xf32>
    tpu.vector_store %arg16[%c0_31, %c20], %35 {strides = array<i32>} : memref<64x72xf32, #tpu.memory_space<vmem>>, vector<64x4xf32>,
    %c2_32 = arith.constant 2 : index
    %c0_33 = arith.constant 0 : index
    %c0_34 = arith.constant 0 : index
    %37 = vector.load %arg15[%c2_32, %c0_33, %c0_34] : memref<10x10x8xf32, #tpu.memory_space<vmem>>, vector<8x8x4xf32>
    %38 = vector.shape_cast %37 : vector<8x8x4xf32> to vector<64x4xf32>
    %c0_35 = arith.constant 0 : index
    %c24 = arith.constant 24 : index
    %39 = vector.load %arg16[%c0_35, %c24] : memref<64x72xf32, #tpu.memory_space<vmem>>, vector<64x4xf32>
    tpu.vector_store %arg16[%c0_35, %c24], %38 {strides = array<i32>} : memref<64x72xf32, #tpu.memory_space<vmem>>, vector<64x4xf32>,
    %c2_36 = arith.constant 2 : index
    %c1_37 = arith.constant 1 : index
    %c0_38 = arith.constant 0 : index
    %40 = vector.load %arg15[%c2_36, %c1_37, %c0_38] : memref<10x10x8xf32, #tpu.memory_space<vmem>>, vector<8x8x4xf32>
    %41 = vector.shape_cast %40 : vector<8x8x4xf32> to vector<64x4xf32>
    %c0_39 = arith.constant 0 : index
    %c28 = arith.constant 28 : index
    %42 = vector.load %arg16[%c0_39, %c28] : memref<64x72xf32, #tpu.memory_space<vmem>>, vector<64x4xf32>
    tpu.vector_store %arg16[%c0_39, %c28], %41 {strides = array<i32>} : memref<64x72xf32, #tpu.memory_space<vmem>>, vector<64x4xf32>,
    %c2_40 = arith.constant 2 : index
    %c2_41 = arith.constant 2 : index
    %c0_42 = arith.constant 0 : index
    %43 = vector.load %arg15[%c2_40, %c2_41, %c0_42] : memref<10x10x8xf32, #tpu.memory_space<vmem>>, vector<8x8x4xf32>
    %44 = vector.shape_cast %43 : vector<8x8x4xf32> to vector<64x4xf32>
    %c0_43 = arith.constant 0 : index
    %c32 = arith.constant 32 : index
    %45 = vector.load %arg16[%c0_43, %c32] : memref<64x72xf32, #tpu.memory_space<vmem>>, vector<64x4xf32>
    tpu.vector_store %arg16[%c0_43, %c32], %44 {strides = array<i32>} : memref<64x72xf32, #tpu.memory_space<vmem>>, vector<64x4xf32>,
    %c0_44 = arith.constant 0 : index
    %c0_45 = arith.constant 0 : index
    %46 = vector.load %arg16[%c0_44, %c0_45] : memref<64x72xf32, #tpu.memory_space<vmem>>, vector<64x36xf32>
    %c0_46 = arith.constant 0 : index
    %c0_47 = arith.constant 0 : index
    %47 = vector.load %arg2[%c0_46, %c0_47] : memref<36x4xf32, #tpu.memory_space<vmem>>, vector<36x4xf32>
    %cst_48 = arith.constant dense<0.000000e+00> : vector<64x4xf32>
    %48 = tpu.matmul %46, %47, %cst_48 {dimension_numbers = #tpu.dot_dimension_numbers<[1], [0], [0], [1], [0, 0, 1, 1], [], []>} : vector<64x36xf32>, vector<36x4xf32>, vector<64x4xf32> -> vector<64x4xf32>
    %49 = vector.shape_cast %48 : vector<64x4xf32> to vector<1x64x4xf32>
    %cst_49 = arith.constant dense<0.000000e+00> : vector<1xf32>
    %50 = vector.multi_reduction <add>, %49, %cst_49 [1, 2] : vector<1x64x4xf32> to vector<1xf32>
    %51 = vector.shape_cast %50 : vector<1xf32> to vector<1x1x1xf32>
    %52 = vector.extract %51[0, 0, 0] : f32 from vector<1x1x1xf32>
    %cst_50 = arith.constant 2.560000e+02 : f32
    %53 = arith.divf %52, %cst_50 : f32
    %54 = vector.broadcast %53 : f32 to vector<64x4xf32>
    %55 = arith.subf %48, %54 : vector<64x4xf32>
    %56 = arith.mulf %55, %55 : vector<64x4xf32>
    %57 = vector.shape_cast %56 : vector<64x4xf32> to vector<1x64x4xf32>
    %cst_51 = arith.constant dense<0.000000e+00> : vector<1xf32>
    %58 = vector.multi_reduction <add>, %57, %cst_51 [1, 2] : vector<1x64x4xf32> to vector<1xf32>
    %59 = vector.shape_cast %58 : vector<1xf32> to vector<1x1x1xf32>
    %60 = vector.extract %59[0, 0, 0] : f32 from vector<1x1x1xf32>
    %cst_52 = arith.constant 2.560000e+02 : f32
    %61 = arith.divf %60, %cst_52 : f32
    %62 = vector.broadcast %53 : f32 to vector<64x4xf32>
    %63 = arith.subf %48, %62 : vector<64x4xf32>
    %cst_53 = arith.constant 9.99999974E-6 : f32
    %64 = arith.addf %61, %cst_53 : f32
    %65 = math.rsqrt %64 : f32
    %66 = vector.broadcast %65 : f32 to vector<64x4xf32>
    %67 = arith.mulf %63, %66 : vector<64x4xf32>
    %c0_54 = arith.constant 0 : index
    %c0_55 = arith.constant 0 : index
    %68 = vector.load %arg3[%c0_54, %c0_55] : memref<1x4xf32, #tpu.memory_space<vmem>>, vector<1x4xf32>
    %69 = vector.broadcast %68 : vector<1x4xf32> to vector<64x4xf32>
    %70 = arith.mulf %67, %69 : vector<64x4xf32>
    %c0_56 = arith.constant 0 : index
    %c0_57 = arith.constant 0 : index
    %71 = vector.load %arg4[%c0_56, %c0_57] : memref<1x4xf32, #tpu.memory_space<vmem>>, vector<1x4xf32>
    %72 = vector.broadcast %71 : vector<1x4xf32> to vector<64x4xf32>
    %73 = arith.addf %70, %72 : vector<64x4xf32>
    %cst_58 = arith.constant 5.000000e-01 : f32
    %74 = vector.broadcast %cst_58 : f32 to vector<64x4xf32>
    %75 = arith.mulf %74, %73 : vector<64x4xf32>
    %cst_59 = arith.constant 0.707106769 : f32
    %76 = vector.broadcast %cst_59 : f32 to vector<64x4xf32>
    %77 = arith.mulf %73, %76 : vector<64x4xf32>
    %78 = math.erf %77 : vector<64x4xf32>
    %cst_60 = arith.constant 1.000000e+00 : f32
    %79 = vector.broadcast %cst_60 : f32 to vector<64x4xf32>
    %80 = arith.addf %79, %78 : vector<64x4xf32>
    %81 = arith.mulf %75, %80 : vector<64x4xf32>
    %82 = vector.shape_cast %81 : vector<64x4xf32> to vector<8x8x4xf32>
    %c1_61 = arith.constant 1 : index
    %c1_62 = arith.constant 1 : index
    %c0_63 = arith.constant 0 : index
    %83 = vector.load %arg15[%c1_61, %c1_62, %c0_63] : memref<10x10x8xf32, #tpu.memory_space<vmem>>, vector<8x8x4xf32>
    tpu.vector_store %arg15[%c1_61, %c1_62, %c0_63], %82 {strides = array<i32>} : memref<10x10x8xf32, #tpu.memory_space<vmem>>, vector<8x8x4xf32>,
    %c0_64 = arith.constant 0 : index
    %c0_65 = arith.constant 0 : index
    %c0_66 = arith.constant 0 : index
    %84 = vector.load %arg15[%c0_64, %c0_65, %c0_66] : memref<10x10x8xf32, #tpu.memory_space<vmem>>, vector<8x8x4xf32>
    %85 = vector.shape_cast %84 : vector<8x8x4xf32> to vector<64x4xf32>
    %c0_67 = arith.constant 0 : index
    %c0_68 = arith.constant 0 : index
    %86 = vector.load %arg16[%c0_67, %c0_68] : memref<64x72xf32, #tpu.memory_space<vmem>>, vector<64x4xf32>
    tpu.vector_store %arg16[%c0_67, %c0_68], %85 {strides = array<i32>} : memref<64x72xf32, #tpu.memory_space<vmem>>, vector<64x4xf32>,
    %c0_69 = arith.constant 0 : index
    %c1_70 = arith.constant 1 : index
    %c0_71 = arith.constant 0 : index
    %87 = vector.load %arg15[%c0_69, %c1_70, %c0_71] : memref<10x10x8xf32, #tpu.memory_space<vmem>>, vector<8x8x4xf32>
    %88 = vector.shape_cast %87 : vector<8x8x4xf32> to vector<64x4xf32>
    %c0_72 = arith.constant 0 : index
    %c4_73 = arith.constant 4 : index
    %89 = vector.load %arg16[%c0_72, %c4_73] : memref<64x72xf32, #tpu.memory_space<vmem>>, vector<64x4xf32>
    tpu.vector_store %arg16[%c0_72, %c4_73], %88 {strides = array<i32>} : memref<64x72xf32, #tpu.memory_space<vmem>>, vector<64x4xf32>,
    %c0_74 = arith.constant 0 : index
    %c2_75 = arith.constant 2 : index
    %c0_76 = arith.constant 0 : index
    %90 = vector.load %arg15[%c0_74, %c2_75, %c0_76] : memref<10x10x8xf32, #tpu.memory_space<vmem>>, vector<8x8x4xf32>
    %91 = vector.shape_cast %90 : vector<8x8x4xf32> to vector<64x4xf32>
    %c0_77 = arith.constant 0 : index
    %c8_78 = arith.constant 8 : index
    %92 = vector.load %arg16[%c0_77, %c8_78] : memref<64x72xf32, #tpu.memory_space<vmem>>, vector<64x4xf32>
    tpu.vector_store %arg16[%c0_77, %c8_78], %91 {strides = array<i32>} : memref<64x72xf32, #tpu.memory_space<vmem>>, vector<64x4xf32>,
    %c1_79 = arith.constant 1 : index
    %c0_80 = arith.constant 0 : index
    %c0_81 = arith.constant 0 : index
    %93 = vector.load %arg15[%c1_79, %c0_80, %c0_81] : memref<10x10x8xf32, #tpu.memory_space<vmem>>, vector<8x8x4xf32>
    %94 = vector.shape_cast %93 : vector<8x8x4xf32> to vector<64x4xf32>
    %c0_82 = arith.constant 0 : index
    %c12_83 = arith.constant 12 : index
    %95 = vector.load %arg16[%c0_82, %c12_83] : memref<64x72xf32, #tpu.memory_space<vmem>>, vector<64x4xf32>
    tpu.vector_store %arg16[%c0_82, %c12_83], %94 {strides = array<i32>} : memref<64x72xf32, #tpu.memory_space<vmem>>, vector<64x4xf32>,
    %c1_84 = arith.constant 1 : index
    %c1_85 = arith.constant 1 : index
    %c0_86 = arith.constant 0 : index
    %96 = vector.load %arg15[%c1_84, %c1_85, %c0_86] : memref<10x10x8xf32, #tpu.memory_space<vmem>>, vector<8x8x4xf32>
    %97 = vector.shape_cast %96 : vector<8x8x4xf32> to vector<64x4xf32>
    %c0_87 = arith.constant 0 : index
    %c16_88 = arith.constant 16 : index
    %98 = vector.load %arg16[%c0_87, %c16_88] : memref<64x72xf32, #tpu.memory_space<vmem>>, vector<64x4xf32>
    tpu.vector_store %arg16[%c0_87, %c16_88], %97 {strides = array<i32>} : memref<64x72xf32, #tpu.memory_space<vmem>>, vector<64x4xf32>,
    %c1_89 = arith.constant 1 : index
    %c2_90 = arith.constant 2 : index
    %c0_91 = arith.constant 0 : index
    %99 = vector.load %arg15[%c1_89, %c2_90, %c0_91] : memref<10x10x8xf32, #tpu.memory_space<vmem>>, vector<8x8x4xf32>
    %100 = vector.shape_cast %99 : vector<8x8x4xf32> to vector<64x4xf32>
    %c0_92 = arith.constant 0 : index
    %c20_93 = arith.constant 20 : index
    %101 = vector.load %arg16[%c0_92, %c20_93] : memref<64x72xf32, #tpu.memory_space<vmem>>, vector<64x4xf32>
    tpu.vector_store %arg16[%c0_92, %c20_93], %100 {strides = array<i32>} : memref<64x72xf32, #tpu.memory_space<vmem>>, vector<64x4xf32>,
    %c2_94 = arith.constant 2 : index
    %c0_95 = arith.constant 0 : index
    %c0_96 = arith.constant 0 : index
    %102 = vector.load %arg15[%c2_94, %c0_95, %c0_96] : memref<10x10x8xf32, #tpu.memory_space<vmem>>, vector<8x8x4xf32>
    %103 = vector.shape_cast %102 : vector<8x8x4xf32> to vector<64x4xf32>
    %c0_97 = arith.constant 0 : index
    %c24_98 = arith.constant 24 : index
    %104 = vector.load %arg16[%c0_97, %c24_98] : memref<64x72xf32, #tpu.memory_space<vmem>>, vector<64x4xf32>
    tpu.vector_store %arg16[%c0_97, %c24_98], %103 {strides = array<i32>} : memref<64x72xf32, #tpu.memory_space<vmem>>, vector<64x4xf32>,
    %c2_99 = arith.constant 2 : index
    %c1_100 = arith.constant 1 : index
    %c0_101 = arith.constant 0 : index
    %105 = vector.load %arg15[%c2_99, %c1_100, %c0_101] : memref<10x10x8xf32, #tpu.memory_space<vmem>>, vector<8x8x4xf32>
    %106 = vector.shape_cast %105 : vector<8x8x4xf32> to vector<64x4xf32>
    %c0_102 = arith.constant 0 : index
    %c28_103 = arith.constant 28 : index
    %107 = vector.load %arg16[%c0_102, %c28_103] : memref<64x72xf32, #tpu.memory_space<vmem>>, vector<64x4xf32>
    tpu.vector_store %arg16[%c0_102, %c28_103], %106 {strides = array<i32>} : memref<64x72xf32, #tpu.memory_space<vmem>>, vector<64x4xf32>,
    %c2_104 = arith.constant 2 : index
    %c2_105 = arith.constant 2 : index
    %c0_106 = arith.constant 0 : index
    %108 = vector.load %arg15[%c2_104, %c2_105, %c0_106] : memref<10x10x8xf32, #tpu.memory_space<vmem>>, vector<8x8x4xf32>
    %109 = vector.shape_cast %108 : vector<8x8x4xf32> to vector<64x4xf32>
    %c0_107 = arith.constant 0 : index
    %c32_108 = arith.constant 32 : index
    %110 = vector.load %arg16[%c0_107, %c32_108] : memref<64x72xf32, #tpu.memory_space<vmem>>, vector<64x4xf32>
    tpu.vector_store %arg16[%c0_107, %c32_108], %109 {strides = array<i32>} : memref<64x72xf32, #tpu.memory_space<vmem>>, vector<64x4xf32>,
    %c0_109 = arith.constant 0 : index
    %c0_110 = arith.constant 0 : index
    %111 = vector.load %arg16[%c0_109, %c0_110] : memref<64x72xf32, #tpu.memory_space<vmem>>, vector<64x36xf32>
    %c0_111 = arith.constant 0 : index
    %c0_112 = arith.constant 0 : index
    %112 = vector.load %arg5[%c0_111, %c0_112] : memref<36x4xf32, #tpu.memory_space<vmem>>, vector<36x4xf32>
    %cst_113 = arith.constant dense<0.000000e+00> : vector<64x4xf32>
    %113 = tpu.matmul %111, %112, %cst_113 {dimension_numbers = #tpu.dot_dimension_numbers<[1], [0], [0], [1], [0, 0, 1, 1], [], []>} : vector<64x36xf32>, vector<36x4xf32>, vector<64x4xf32> -> vector<64x4xf32>
    %114 = vector.shape_cast %113 : vector<64x4xf32> to vector<1x64x4xf32>
    %cst_114 = arith.constant dense<0.000000e+00> : vector<1xf32>
    %115 = vector.multi_reduction <add>, %114, %cst_114 [1, 2] : vector<1x64x4xf32> to vector<1xf32>
    %116 = vector.shape_cast %115 : vector<1xf32> to vector<1x1x1xf32>
    %117 = vector.extract %116[0, 0, 0] : f32 from vector<1x1x1xf32>
    %cst_115 = arith.constant 2.560000e+02 : f32
    %118 = arith.divf %117, %cst_115 : f32
    %119 = vector.broadcast %118 : f32 to vector<64x4xf32>
    %120 = arith.subf %113, %119 : vector<64x4xf32>
    %121 = arith.mulf %120, %120 : vector<64x4xf32>
    %122 = vector.shape_cast %121 : vector<64x4xf32> to vector<1x64x4xf32>
    %cst_116 = arith.constant dense<0.000000e+00> : vector<1xf32>
    %123 = vector.multi_reduction <add>, %122, %cst_116 [1, 2] : vector<1x64x4xf32> to vector<1xf32>
    %124 = vector.shape_cast %123 : vector<1xf32> to vector<1x1x1xf32>
    %125 = vector.extract %124[0, 0, 0] : f32 from vector<1x1x1xf32>
    %cst_117 = arith.constant 2.560000e+02 : f32
    %126 = arith.divf %125, %cst_117 : f32
    %127 = vector.broadcast %118 : f32 to vector<64x4xf32>
    %128 = arith.subf %113, %127 : vector<64x4xf32>
    %cst_118 = arith.constant 9.99999974E-6 : f32
    %129 = arith.addf %126, %cst_118 : f32
    %130 = math.rsqrt %129 : f32
    %131 = vector.broadcast %130 : f32 to vector<64x4xf32>
    %132 = arith.mulf %128, %131 : vector<64x4xf32>
    %c0_119 = arith.constant 0 : index
    %c0_120 = arith.constant 0 : index
    %133 = vector.load %arg6[%c0_119, %c0_120] : memref<1x4xf32, #tpu.memory_space<vmem>>, vector<1x4xf32>
    %134 = vector.broadcast %133 : vector<1x4xf32> to vector<64x4xf32>
    %135 = arith.mulf %132, %134 : vector<64x4xf32>
    %c0_121 = arith.constant 0 : index
    %c0_122 = arith.constant 0 : index
    %136 = vector.load %arg7[%c0_121, %c0_122] : memref<1x4xf32, #tpu.memory_space<vmem>>, vector<1x4xf32>
    %137 = vector.broadcast %136 : vector<1x4xf32> to vector<64x4xf32>
    %138 = arith.addf %135, %137 : vector<64x4xf32>
    %139 = arith.addf %16, %138 : vector<64x4xf32>
    %cst_123 = arith.constant 5.000000e-01 : f32
    %140 = vector.broadcast %cst_123 : f32 to vector<64x4xf32>
    %141 = arith.mulf %140, %139 : vector<64x4xf32>
    %cst_124 = arith.constant 0.707106769 : f32
    %142 = vector.broadcast %cst_124 : f32 to vector<64x4xf32>
    %143 = arith.mulf %139, %142 : vector<64x4xf32>
    %144 = math.erf %143 : vector<64x4xf32>
    %cst_125 = arith.constant 1.000000e+00 : f32
    %145 = vector.broadcast %cst_125 : f32 to vector<64x4xf32>
    %146 = arith.addf %145, %144 : vector<64x4xf32>
    %147 = arith.mulf %141, %146 : vector<64x4xf32>
    %148 = vector.shape_cast %147 : vector<64x4xf32> to vector<8x8x4xf32>
    %c1_126 = arith.constant 1 : index
    %c1_127 = arith.constant 1 : index
    %c0_128 = arith.constant 0 : index
    %149 = vector.load %arg15[%c1_126, %c1_127, %c0_128] : memref<10x10x8xf32, #tpu.memory_space<vmem>>, vector<8x8x4xf32>
    tpu.vector_store %arg15[%c1_126, %c1_127, %c0_128], %148 {strides = array<i32>} : memref<10x10x8xf32, #tpu.memory_space<vmem>>, vector<8x8x4xf32>,
    %c0_129 = arith.constant 0 : index
    %c0_130 = arith.constant 0 : index
    %c0_131 = arith.constant 0 : index
    %150 = vector.load %arg15[%c0_129, %c0_130, %c0_131] : memref<10x10x8xf32, #tpu.memory_space<vmem>>, vector<8x8x4xf32>
    %151 = vector.shape_cast %150 : vector<8x8x4xf32> to vector<64x4xf32>
    %c0_132 = arith.constant 0 : index
    %c0_133 = arith.constant 0 : index
    %152 = vector.load %arg16[%c0_132, %c0_133] : memref<64x72xf32, #tpu.memory_space<vmem>>, vector<64x4xf32>
    tpu.vector_store %arg16[%c0_132, %c0_133], %151 {strides = array<i32>} : memref<64x72xf32, #tpu.memory_space<vmem>>, vector<64x4xf32>,
    %c0_134 = arith.constant 0 : index
    %c1_135 = arith.constant 1 : index
    %c0_136 = arith.constant 0 : index
    %153 = vector.load %arg15[%c0_134, %c1_135, %c0_136] : memref<10x10x8xf32, #tpu.memory_space<vmem>>, vector<8x8x4xf32>
    %154 = vector.shape_cast %153 : vector<8x8x4xf32> to vector<64x4xf32>
    %c0_137 = arith.constant 0 : index
    %c4_138 = arith.constant 4 : index
    %155 = vector.load %arg16[%c0_137, %c4_138] : memref<64x72xf32, #tpu.memory_space<vmem>>, vector<64x4xf32>
    tpu.vector_store %arg16[%c0_137, %c4_138], %154 {strides = array<i32>} : memref<64x72xf32, #tpu.memory_space<vmem>>, vector<64x4xf32>,
    %c0_139 = arith.constant 0 : index
    %c2_140 = arith.constant 2 : index
    %c0_141 = arith.constant 0 : index
    %156 = vector.load %arg15[%c0_139, %c2_140, %c0_141] : memref<10x10x8xf32, #tpu.memory_space<vmem>>, vector<8x8x4xf32>
    %157 = vector.shape_cast %156 : vector<8x8x4xf32> to vector<64x4xf32>
    %c0_142 = arith.constant 0 : index
    %c8_143 = arith.constant 8 : index
    %158 = vector.load %arg16[%c0_142, %c8_143] : memref<64x72xf32, #tpu.memory_space<vmem>>, vector<64x4xf32>
    tpu.vector_store %arg16[%c0_142, %c8_143], %157 {strides = array<i32>} : memref<64x72xf32, #tpu.memory_space<vmem>>, vector<64x4xf32>,
    %c1_144 = arith.constant 1 : index
    %c0_145 = arith.constant 0 : index
    %c0_146 = arith.constant 0 : index
    %159 = vector.load %arg15[%c1_144, %c0_145, %c0_146] : memref<10x10x8xf32, #tpu.memory_space<vmem>>, vector<8x8x4xf32>
    %160 = vector.shape_cast %159 : vector<8x8x4xf32> to vector<64x4xf32>
    %c0_147 = arith.constant 0 : index
    %c12_148 = arith.constant 12 : index
    %161 = vector.load %arg16[%c0_147, %c12_148] : memref<64x72xf32, #tpu.memory_space<vmem>>, vector<64x4xf32>
    tpu.vector_store %arg16[%c0_147, %c12_148], %160 {strides = array<i32>} : memref<64x72xf32, #tpu.memory_space<vmem>>, vector<64x4xf32>,
    %c1_149 = arith.constant 1 : index
    %c1_150 = arith.constant 1 : index
    %c0_151 = arith.constant 0 : index
    %162 = vector.load %arg15[%c1_149, %c1_150, %c0_151] : memref<10x10x8xf32, #tpu.memory_space<vmem>>, vector<8x8x4xf32>
    %163 = vector.shape_cast %162 : vector<8x8x4xf32> to vector<64x4xf32>
    %c0_152 = arith.constant 0 : index
    %c16_153 = arith.constant 16 : index
    %164 = vector.load %arg16[%c0_152, %c16_153] : memref<64x72xf32, #tpu.memory_space<vmem>>, vector<64x4xf32>
    tpu.vector_store %arg16[%c0_152, %c16_153], %163 {strides = array<i32>} : memref<64x72xf32, #tpu.memory_space<vmem>>, vector<64x4xf32>,
    %c1_154 = arith.constant 1 : index
    %c2_155 = arith.constant 2 : index
    %c0_156 = arith.constant 0 : index
    %165 = vector.load %arg15[%c1_154, %c2_155, %c0_156] : memref<10x10x8xf32, #tpu.memory_space<vmem>>, vector<8x8x4xf32>
    %166 = vector.shape_cast %165 : vector<8x8x4xf32> to vector<64x4xf32>
    %c0_157 = arith.constant 0 : index
    %c20_158 = arith.constant 20 : index
    %167 = vector.load %arg16[%c0_157, %c20_158] : memref<64x72xf32, #tpu.memory_space<vmem>>, vector<64x4xf32>
    tpu.vector_store %arg16[%c0_157, %c20_158], %166 {strides = array<i32>} : memref<64x72xf32, #tpu.memory_space<vmem>>, vector<64x4xf32>,
    %c2_159 = arith.constant 2 : index
    %c0_160 = arith.constant 0 : index
    %c0_161 = arith.constant 0 : index
    %168 = vector.load %arg15[%c2_159, %c0_160, %c0_161] : memref<10x10x8xf32, #tpu.memory_space<vmem>>, vector<8x8x4xf32>
    %169 = vector.shape_cast %168 : vector<8x8x4xf32> to vector<64x4xf32>
    %c0_162 = arith.constant 0 : index
    %c24_163 = arith.constant 24 : index
    %170 = vector.load %arg16[%c0_162, %c24_163] : memref<64x72xf32, #tpu.memory_space<vmem>>, vector<64x4xf32>
    tpu.vector_store %arg16[%c0_162, %c24_163], %169 {strides = array<i32>} : memref<64x72xf32, #tpu.memory_space<vmem>>, vector<64x4xf32>,
    %c2_164 = arith.constant 2 : index
    %c1_165 = arith.constant 1 : index
    %c0_166 = arith.constant 0 : index
    %171 = vector.load %arg15[%c2_164, %c1_165, %c0_166] : memref<10x10x8xf32, #tpu.memory_space<vmem>>, vector<8x8x4xf32>
    %172 = vector.shape_cast %171 : vector<8x8x4xf32> to vector<64x4xf32>
    %c0_167 = arith.constant 0 : index
    %c28_168 = arith.constant 28 : index
    %173 = vector.load %arg16[%c0_167, %c28_168] : memref<64x72xf32, #tpu.memory_space<vmem>>, vector<64x4xf32>
    tpu.vector_store %arg16[%c0_167, %c28_168], %172 {strides = array<i32>} : memref<64x72xf32, #tpu.memory_space<vmem>>, vector<64x4xf32>,
    %c2_169 = arith.constant 2 : index
    %c2_170 = arith.constant 2 : index
    %c0_171 = arith.constant 0 : index
    %174 = vector.load %arg15[%c2_169, %c2_170, %c0_171] : memref<10x10x8xf32, #tpu.memory_space<vmem>>, vector<8x8x4xf32>
    %175 = vector.shape_cast %174 : vector<8x8x4xf32> to vector<64x4xf32>
    %c0_172 = arith.constant 0 : index
    %c32_173 = arith.constant 32 : index
    %176 = vector.load %arg16[%c0_172, %c32_173] : memref<64x72xf32, #tpu.memory_space<vmem>>, vector<64x4xf32>
    tpu.vector_store %arg16[%c0_172, %c32_173], %175 {strides = array<i32>} : memref<64x72xf32, #tpu.memory_space<vmem>>, vector<64x4xf32>,
    %c0_174 = arith.constant 0 : index
    %c0_175 = arith.constant 0 : index
    %177 = vector.load %arg16[%c0_174, %c0_175] : memref<64x72xf32, #tpu.memory_space<vmem>>, vector<64x36xf32>
    %c0_176 = arith.constant 0 : index
    %c0_177 = arith.constant 0 : index
    %178 = vector.load %arg8[%c0_176, %c0_177] : memref<36x8xf32, #tpu.memory_space<vmem>>, vector<36x8xf32>
    %cst_178 = arith.constant dense<0.000000e+00> : vector<64x8xf32>
    %179 = tpu.matmul %177, %178, %cst_178 {dimension_numbers = #tpu.dot_dimension_numbers<[1], [0], [0], [1], [0, 0, 1, 1], [], []>} : vector<64x36xf32>, vector<36x8xf32>, vector<64x8xf32> -> vector<64x8xf32>
    %180 = vector.shape_cast %179 : vector<64x8xf32> to vector<1x64x8xf32>
    %cst_179 = arith.constant dense<0.000000e+00> : vector<1xf32>
    %181 = vector.multi_reduction <add>, %180, %cst_179 [1, 2] : vector<1x64x8xf32> to vector<1xf32>
    %182 = vector.shape_cast %181 : vector<1xf32> to vector<1x1x1xf32>
    %183 = vector.extract %182[0, 0, 0] : f32 from vector<1x1x1xf32>
    %cst_180 = arith.constant 5.120000e+02 : f32
    %184 = arith.divf %183, %cst_180 : f32
    %185 = vector.broadcast %184 : f32 to vector<64x8xf32>
    %186 = arith.subf %179, %185 : vector<64x8xf32>
    %187 = arith.mulf %186, %186 : vector<64x8xf32>
    %188 = vector.shape_cast %187 : vector<64x8xf32> to vector<1x64x8xf32>
    %cst_181 = arith.constant dense<0.000000e+00> : vector<1xf32>
    %189 = vector.multi_reduction <add>, %188, %cst_181 [1, 2] : vector<1x64x8xf32> to vector<1xf32>
    %190 = vector.shape_cast %189 : vector<1xf32> to vector<1x1x1xf32>
    %191 = vector.extract %190[0, 0, 0] : f32 from vector<1x1x1xf32>
    %cst_182 = arith.constant 5.120000e+02 : f32
    %192 = arith.divf %191, %cst_182 : f32
    %193 = vector.broadcast %184 : f32 to vector<64x8xf32>
    %194 = arith.subf %179, %193 : vector<64x8xf32>
    %cst_183 = arith.constant 9.99999974E-6 : f32
    %195 = arith.addf %192, %cst_183 : f32
    %196 = math.rsqrt %195 : f32
    %197 = vector.broadcast %196 : f32 to vector<64x8xf32>
    %198 = arith.mulf %194, %197 : vector<64x8xf32>
    %c0_184 = arith.constant 0 : index
    %c0_185 = arith.constant 0 : index
    %199 = vector.load %arg9[%c0_184, %c0_185] : memref<1x8xf32, #tpu.memory_space<vmem>>, vector<1x8xf32>
    %200 = vector.broadcast %199 : vector<1x8xf32> to vector<64x8xf32>
    %201 = arith.mulf %198, %200 : vector<64x8xf32>
    %c0_186 = arith.constant 0 : index
    %c0_187 = arith.constant 0 : index
    %202 = vector.load %arg10[%c0_186, %c0_187] : memref<1x8xf32, #tpu.memory_space<vmem>>, vector<1x8xf32>
    %203 = vector.broadcast %202 : vector<1x8xf32> to vector<64x8xf32>
    %204 = arith.addf %201, %203 : vector<64x8xf32>
    %cst_188 = arith.constant 5.000000e-01 : f32
    %205 = vector.broadcast %cst_188 : f32 to vector<64x8xf32>
    %206 = arith.mulf %205, %204 : vector<64x8xf32>
    %cst_189 = arith.constant 0.707106769 : f32
    %207 = vector.broadcast %cst_189 : f32 to vector<64x8xf32>
    %208 = arith.mulf %204, %207 : vector<64x8xf32>
    %209 = math.erf %208 : vector<64x8xf32>
    %cst_190 = arith.constant 1.000000e+00 : f32
    %210 = vector.broadcast %cst_190 : f32 to vector<64x8xf32>
    %211 = arith.addf %210, %209 : vector<64x8xf32>
    %212 = arith.mulf %206, %211 : vector<64x8xf32>
    %213 = vector.shape_cast %212 : vector<64x8xf32> to vector<8x8x8xf32>
    %c1_191 = arith.constant 1 : index
    %c1_192 = arith.constant 1 : index
    %c0_193 = arith.constant 0 : index
    %214 = vector.load %arg15[%c1_191, %c1_192, %c0_193] : memref<10x10x8xf32, #tpu.memory_space<vmem>>, vector<8x8x8xf32>
    tpu.vector_store %arg15[%c1_191, %c1_192, %c0_193], %213 {strides = array<i32>} : memref<10x10x8xf32, #tpu.memory_space<vmem>>, vector<8x8x8xf32>,
    %c0_194 = arith.constant 0 : index
    %c0_195 = arith.constant 0 : index
    %c0_196 = arith.constant 0 : index
    %215 = vector.load %arg15[%c0_194, %c0_195, %c0_196] : memref<10x10x8xf32, #tpu.memory_space<vmem>>, vector<8x8x8xf32>
    %216 = vector.shape_cast %215 : vector<8x8x8xf32> to vector<64x8xf32>
    %c0_197 = arith.constant 0 : index
    %c0_198 = arith.constant 0 : index
    %217 = vector.load %arg16[%c0_197, %c0_198] : memref<64x72xf32, #tpu.memory_space<vmem>>, vector<64x8xf32>
    tpu.vector_store %arg16[%c0_197, %c0_198], %216 {strides = array<i32>} : memref<64x72xf32, #tpu.memory_space<vmem>>, vector<64x8xf32>,
    %c0_199 = arith.constant 0 : index
    %c1_200 = arith.constant 1 : index
    %c0_201 = arith.constant 0 : index
    %218 = vector.load %arg15[%c0_199, %c1_200, %c0_201] : memref<10x10x8xf32, #tpu.memory_space<vmem>>, vector<8x8x8xf32>
    %219 = vector.shape_cast %218 : vector<8x8x8xf32> to vector<64x8xf32>
    %c0_202 = arith.constant 0 : index
    %c8_203 = arith.constant 8 : index
    %220 = vector.load %arg16[%c0_202, %c8_203] : memref<64x72xf32, #tpu.memory_space<vmem>>, vector<64x8xf32>
    tpu.vector_store %arg16[%c0_202, %c8_203], %219 {strides = array<i32>} : memref<64x72xf32, #tpu.memory_space<vmem>>, vector<64x8xf32>,
    %c0_204 = arith.constant 0 : index
    %c2_205 = arith.constant 2 : index
    %c0_206 = arith.constant 0 : index
    %221 = vector.load %arg15[%c0_204, %c2_205, %c0_206] : memref<10x10x8xf32, #tpu.memory_space<vmem>>, vector<8x8x8xf32>
    %222 = vector.shape_cast %221 : vector<8x8x8xf32> to vector<64x8xf32>
    %c0_207 = arith.constant 0 : index
    %c16_208 = arith.constant 16 : index
    %223 = vector.load %arg16[%c0_207, %c16_208] : memref<64x72xf32, #tpu.memory_space<vmem>>, vector<64x8xf32>
    tpu.vector_store %arg16[%c0_207, %c16_208], %222 {strides = array<i32>} : memref<64x72xf32, #tpu.memory_space<vmem>>, vector<64x8xf32>,
    %c1_209 = arith.constant 1 : index
    %c0_210 = arith.constant 0 : index
    %c0_211 = arith.constant 0 : index
    %224 = vector.load %arg15[%c1_209, %c0_210, %c0_211] : memref<10x10x8xf32, #tpu.memory_space<vmem>>, vector<8x8x8xf32>
    %225 = vector.shape_cast %224 : vector<8x8x8xf32> to vector<64x8xf32>
    %c0_212 = arith.constant 0 : index
    %c24_213 = arith.constant 24 : index
    %226 = vector.load %arg16[%c0_212, %c24_213] : memref<64x72xf32, #tpu.memory_space<vmem>>, vector<64x8xf32>
    tpu.vector_store %arg16[%c0_212, %c24_213], %225 {strides = array<i32>} : memref<64x72xf32, #tpu.memory_space<vmem>>, vector<64x8xf32>,
    %c1_214 = arith.constant 1 : index
    %c1_215 = arith.constant 1 : index
    %c0_216 = arith.constant 0 : index
    %227 = vector.load %arg15[%c1_214, %c1_215, %c0_216] : memref<10x10x8xf32, #tpu.memory_space<vmem>>, vector<8x8x8xf32>
    %228 = vector.shape_cast %227 : vector<8x8x8xf32> to vector<64x8xf32>
    %c0_217 = arith.constant 0 : index
    %c32_218 = arith.constant 32 : index
    %229 = vector.load %arg16[%c0_217, %c32_218] : memref<64x72xf32, #tpu.memory_space<vmem>>, vector<64x8xf32>
    tpu.vector_store %arg16[%c0_217, %c32_218], %228 {strides = array<i32>} : memref<64x72xf32, #tpu.memory_space<vmem>>, vector<64x8xf32>,
    %c1_219 = arith.constant 1 : index
    %c2_220 = arith.constant 2 : index
    %c0_221 = arith.constant 0 : index
    %230 = vector.load %arg15[%c1_219, %c2_220, %c0_221] : memref<10x10x8xf32, #tpu.memory_space<vmem>>, vector<8x8x8xf32>
    %231 = vector.shape_cast %230 : vector<8x8x8xf32> to vector<64x8xf32>
    %c0_222 = arith.constant 0 : index
    %c40 = arith.constant 40 : index
    %232 = vector.load %arg16[%c0_222, %c40] : memref<64x72xf32, #tpu.memory_space<vmem>>, vector<64x8xf32>
    tpu.vector_store %arg16[%c0_222, %c40], %231 {strides = array<i32>} : memref<64x72xf32, #tpu.memory_space<vmem>>, vector<64x8xf32>,
    %c2_223 = arith.constant 2 : index
    %c0_224 = arith.constant 0 : index
    %c0_225 = arith.constant 0 : index
    %233 = vector.load %arg15[%c2_223, %c0_224, %c0_225] : memref<10x10x8xf32, #tpu.memory_space<vmem>>, vector<8x8x8xf32>
    %234 = vector.shape_cast %233 : vector<8x8x8xf32> to vector<64x8xf32>
    %c0_226 = arith.constant 0 : index
    %c48 = arith.constant 48 : index
    %235 = vector.load %arg16[%c0_226, %c48] : memref<64x72xf32, #tpu.memory_space<vmem>>, vector<64x8xf32>
    tpu.vector_store %arg16[%c0_226, %c48], %234 {strides = array<i32>} : memref<64x72xf32, #tpu.memory_space<vmem>>, vector<64x8xf32>,
    %c2_227 = arith.constant 2 : index
    %c1_228 = arith.constant 1 : index
    %c0_229 = arith.constant 0 : index
    %236 = vector.load %arg15[%c2_227, %c1_228, %c0_229] : memref<10x10x8xf32, #tpu.memory_space<vmem>>, vector<8x8x8xf32>
    %237 = vector.shape_cast %236 : vector<8x8x8xf32> to vector<64x8xf32>
    %c0_230 = arith.constant 0 : index
    %c56 = arith.constant 56 : index
    %238 = vector.load %arg16[%c0_230, %c56] : memref<64x72xf32, #tpu.memory_space<vmem>>, vector<64x8xf32>
    tpu.vector_store %arg16[%c0_230, %c56], %237 {strides = array<i32>} : memref<64x72xf32, #tpu.memory_space<vmem>>, vector<64x8xf32>,
    %c2_231 = arith.constant 2 : index
    %c2_232 = arith.constant 2 : index
    %c0_233 = arith.constant 0 : index
    %239 = vector.load %arg15[%c2_231, %c2_232, %c0_233] : memref<10x10x8xf32, #tpu.memory_space<vmem>>, vector<8x8x8xf32>
    %240 = vector.shape_cast %239 : vector<8x8x8xf32> to vector<64x8xf32>
    %c0_234 = arith.constant 0 : index
    %c64 = arith.constant 64 : index
    %241 = vector.load %arg16[%c0_234, %c64] : memref<64x72xf32, #tpu.memory_space<vmem>>, vector<64x8xf32>
    tpu.vector_store %arg16[%c0_234, %c64], %240 {strides = array<i32>} : memref<64x72xf32, #tpu.memory_space<vmem>>, vector<64x8xf32>,
    %c0_235 = arith.constant 0 : index
    %c0_236 = arith.constant 0 : index
    %242 = vector.load %arg16[%c0_235, %c0_236] : memref<64x72xf32, #tpu.memory_space<vmem>>, vector<64x72xf32>
    %c0_237 = arith.constant 0 : index
    %c0_238 = arith.constant 0 : index
    %243 = vector.load %arg11[%c0_237, %c0_238] : memref<72x8xf32, #tpu.memory_space<vmem>>, vector<72x8xf32>
    %cst_239 = arith.constant dense<0.000000e+00> : vector<64x8xf32>
    %244 = tpu.matmul %242, %243, %cst_239 {dimension_numbers = #tpu.dot_dimension_numbers<[1], [0], [0], [1], [0, 0, 1, 1], [], []>} : vector<64x72xf32>, vector<72x8xf32>, vector<64x8xf32> -> vector<64x8xf32>
    %245 = vector.shape_cast %244 : vector<64x8xf32> to vector<1x64x8xf32>
    %cst_240 = arith.constant dense<0.000000e+00> : vector<1xf32>
    %246 = vector.multi_reduction <add>, %245, %cst_240 [1, 2] : vector<1x64x8xf32> to vector<1xf32>
    %247 = vector.shape_cast %246 : vector<1xf32> to vector<1x1x1xf32>
    %248 = vector.extract %247[0, 0, 0] : f32 from vector<1x1x1xf32>
    %cst_241 = arith.constant 5.120000e+02 : f32
    %249 = arith.divf %248, %cst_241 : f32
    %250 = vector.broadcast %249 : f32 to vector<64x8xf32>
    %251 = arith.subf %244, %250 : vector<64x8xf32>
    %252 = arith.mulf %251, %251 : vector<64x8xf32>
    %253 = vector.shape_cast %252 : vector<64x8xf32> to vector<1x64x8xf32>
    %cst_242 = arith.constant dense<0.000000e+00> : vector<1xf32>
    %254 = vector.multi_reduction <add>, %253, %cst_242 [1, 2] : vector<1x64x8xf32> to vector<1xf32>
    %255 = vector.shape_cast %254 : vector<1xf32> to vector<1x1x1xf32>
    %256 = vector.extract %255[0, 0, 0] : f32 from vector<1x1x1xf32>
    %cst_243 = arith.constant 5.120000e+02 : f32
    %257 = arith.divf %256, %cst_243 : f32
    %258 = vector.broadcast %249 : f32 to vector<64x8xf32>
    %259 = arith.subf %244, %258 : vector<64x8xf32>
    %cst_244 = arith.constant 9.99999974E-6 : f32
    %260 = arith.addf %257, %cst_244 : f32
    %261 = math.rsqrt %260 : f32
    %262 = vector.broadcast %261 : f32 to vector<64x8xf32>
    %263 = arith.mulf %259, %262 : vector<64x8xf32>
    %c0_245 = arith.constant 0 : index
    %c0_246 = arith.constant 0 : index
    %264 = vector.load %arg12[%c0_245, %c0_246] : memref<1x8xf32, #tpu.memory_space<vmem>>, vector<1x8xf32>
    %265 = vector.broadcast %264 : vector<1x8xf32> to vector<64x8xf32>
    %266 = arith.mulf %263, %265 : vector<64x8xf32>
    %c0_247 = arith.constant 0 : index
    %c0_248 = arith.constant 0 : index
    %267 = vector.load %arg13[%c0_247, %c0_248] : memref<1x8xf32, #tpu.memory_space<vmem>>, vector<1x8xf32>
    %268 = vector.broadcast %267 : vector<1x8xf32> to vector<64x8xf32>
    %269 = arith.addf %266, %268 : vector<64x8xf32>
    %270 = vector.shape_cast %269 : vector<64x8xf32> to vector<8x8x8xf32>
    %271 = vector.extract_strided_slice %270 {offsets = [0, 0, 0], sizes = [8, 1, 8], strides = [1, 1, 1]} : vector<8x8x8xf32> to vector<8x1x8xf32>
    %272 = vector.shape_cast %271 : vector<8x1x8xf32> to vector<8x8xf32>
    %c0_249 = arith.constant 0 : index
    %c0_250 = arith.constant 0 : index
    %c0_251 = arith.constant 0 : index
    %273 = vector.load %arg14[%c0_249, %c0_250, %c0_251] : memref<1x8x64xf32, #tpu.memory_space<vmem>>, vector<1x8x8xf32>
    %274 = vector.shape_cast %273 : vector<1x8x8xf32> to vector<8x8xf32>
    %275 = vector.shape_cast %272 : vector<8x8xf32> to vector<1x8x8xf32>
    tpu.vector_store %arg14[%c0_249, %c0_250, %c0_251], %275 {strides = array<i32>} : memref<1x8x64xf32, #tpu.memory_space<vmem>>, vector<1x8x8xf32>,
    %276 = vector.extract_strided_slice %270 {offsets = [0, 1, 0], sizes = [8, 1, 8], strides = [1, 1, 1]} : vector<8x8x8xf32> to vector<8x1x8xf32>
    %277 = vector.shape_cast %276 : vector<8x1x8xf32> to vector<8x8xf32>
    %c0_252 = arith.constant 0 : index
    %c0_253 = arith.constant 0 : index
    %c8_254 = arith.constant 8 : index
    %278 = vector.load %arg14[%c0_252, %c0_253, %c8_254] : memref<1x8x64xf32, #tpu.memory_space<vmem>>, vector<1x8x8xf32>
    %279 = vector.shape_cast %278 : vector<1x8x8xf32> to vector<8x8xf32>
    %280 = vector.shape_cast %277 : vector<8x8xf32> to vector<1x8x8xf32>
    tpu.vector_store %arg14[%c0_252, %c0_253, %c8_254], %280 {strides = array<i32>} : memref<1x8x64xf32, #tpu.memory_space<vmem>>, vector<1x8x8xf32>,
    %281 = vector.extract_strided_slice %270 {offsets = [0, 2, 0], sizes = [8, 1, 8], strides = [1, 1, 1]} : vector<8x8x8xf32> to vector<8x1x8xf32>
    %282 = vector.shape_cast %281 : vector<8x1x8xf32> to vector<8x8xf32>
    %c0_255 = arith.constant 0 : index
    %c0_256 = arith.constant 0 : index
    %c16_257 = arith.constant 16 : index
    %283 = vector.load %arg14[%c0_255, %c0_256, %c16_257] : memref<1x8x64xf32, #tpu.memory_space<vmem>>, vector<1x8x8xf32>
    %284 = vector.shape_cast %283 : vector<1x8x8xf32> to vector<8x8xf32>
    %285 = vector.shape_cast %282 : vector<8x8xf32> to vector<1x8x8xf32>
    tpu.vector_store %arg14[%c0_255, %c0_256, %c16_257], %285 {strides = array<i32>} : memref<1x8x64xf32, #tpu.memory_space<vmem>>, vector<1x8x8xf32>,
    %286 = vector.extract_strided_slice %270 {offsets = [0, 3, 0], sizes = [8, 1, 8], strides = [1, 1, 1]} : vector<8x8x8xf32> to vector<8x1x8xf32>
    %287 = vector.shape_cast %286 : vector<8x1x8xf32> to vector<8x8xf32>
    %c0_258 = arith.constant 0 : index
    %c0_259 = arith.constant 0 : index
    %c24_260 = arith.constant 24 : index
    %288 = vector.load %arg14[%c0_258, %c0_259, %c24_260] : memref<1x8x64xf32, #tpu.memory_space<vmem>>, vector<1x8x8xf32>
    %289 = vector.shape_cast %288 : vector<1x8x8xf32> to vector<8x8xf32>
    %290 = vector.shape_cast %287 : vector<8x8xf32> to vector<1x8x8xf32>
    tpu.vector_store %arg14[%c0_258, %c0_259, %c24_260], %290 {strides = array<i32>} : memref<1x8x64xf32, #tpu.memory_space<vmem>>, vector<1x8x8xf32>,
    %291 = vector.extract_strided_slice %270 {offsets = [0, 4, 0], sizes = [8, 1, 8], strides = [1, 1, 1]} : vector<8x8x8xf32> to vector<8x1x8xf32>
    %292 = vector.shape_cast %291 : vector<8x1x8xf32> to vector<8x8xf32>
    %c0_261 = arith.constant 0 : index
    %c0_262 = arith.constant 0 : index
    %c32_263 = arith.constant 32 : index
    %293 = vector.load %arg14[%c0_261, %c0_262, %c32_263] : memref<1x8x64xf32, #tpu.memory_space<vmem>>, vector<1x8x8xf32>
    %294 = vector.shape_cast %293 : vector<1x8x8xf32> to vector<8x8xf32>
    %295 = vector.shape_cast %292 : vector<8x8xf32> to vector<1x8x8xf32>
    tpu.vector_store %arg14[%c0_261, %c0_262, %c32_263], %295 {strides = array<i32>} : memref<1x8x64xf32, #tpu.memory_space<vmem>>, vector<1x8x8xf32>,
    %296 = vector.extract_strided_slice %270 {offsets = [0, 5, 0], sizes = [8, 1, 8], strides = [1, 1, 1]} : vector<8x8x8xf32> to vector<8x1x8xf32>
    %297 = vector.shape_cast %296 : vector<8x1x8xf32> to vector<8x8xf32>
    %c0_264 = arith.constant 0 : index
    %c0_265 = arith.constant 0 : index
    %c40_266 = arith.constant 40 : index
    %298 = vector.load %arg14[%c0_264, %c0_265, %c40_266] : memref<1x8x64xf32, #tpu.memory_space<vmem>>, vector<1x8x8xf32>
    %299 = vector.shape_cast %298 : vector<1x8x8xf32> to vector<8x8xf32>
    %300 = vector.shape_cast %297 : vector<8x8xf32> to vector<1x8x8xf32>
    tpu.vector_store %arg14[%c0_264, %c0_265, %c40_266], %300 {strides = array<i32>} : memref<1x8x64xf32, #tpu.memory_space<vmem>>, vector<1x8x8xf32>,
    %301 = vector.extract_strided_slice %270 {offsets = [0, 6, 0], sizes = [8, 1, 8], strides = [1, 1, 1]} : vector<8x8x8xf32> to vector<8x1x8xf32>
    %302 = vector.shape_cast %301 : vector<8x1x8xf32> to vector<8x8xf32>
    %c0_267 = arith.constant 0 : index
    %c0_268 = arith.constant 0 : index
    %c48_269 = arith.constant 48 : index
    %303 = vector.load %arg14[%c0_267, %c0_268, %c48_269] : memref<1x8x64xf32, #tpu.memory_space<vmem>>, vector<1x8x8xf32>
    %304 = vector.shape_cast %303 : vector<1x8x8xf32> to vector<8x8xf32>
    %305 = vector.shape_cast %302 : vector<8x8xf32> to vector<1x8x8xf32>
    tpu.vector_store %arg14[%c0_267, %c0_268, %c48_269], %305 {strides = array<i32>} : memref<1x8x64xf32, #tpu.memory_space<vmem>>, vector<1x8x8xf32>,
    %306 = vector.extract_strided_slice %270 {offsets = [0, 7, 0], sizes = [8, 1, 8], strides = [1, 1, 1]} : vector<8x8x8xf32> to vector<8x1x8xf32>
    %307 = vector.shape_cast %306 : vector<8x1x8xf32> to vector<8x8xf32>
    %c0_270 = arith.constant 0 : index
    %c0_271 = arith.constant 0 : index
    %c56_272 = arith.constant 56 : index
    %308 = vector.load %arg14[%c0_270, %c0_271, %c56_272] : memref<1x8x64xf32, #tpu.memory_space<vmem>>, vector<1x8x8xf32>
    %309 = vector.shape_cast %308 : vector<1x8x8xf32> to vector<8x8xf32>
    %310 = vector.shape_cast %307 : vector<8x8xf32> to vector<1x8x8xf32>
    tpu.vector_store %arg14[%c0_270, %c0_271, %c56_272], %310 {strides = array<i32>} : memref<1x8x64xf32, #tpu.memory_space<vmem>>, vector<1x8x8xf32>,
    return
  }
  func.func @transform_0(%arg0: i32) -> (i32, i32, i32, i32) {
    %c0_i32 = arith.constant 0 : i32
    %c0_i32_0 = arith.constant 0 : i32
    %c0_i32_1 = arith.constant 0 : i32
    %c0_i32_2 = arith.constant 0 : i32
    return %arg0, %c0_i32, %c0_i32_0, %c0_i32_1 : i32, i32, i32, i32
  }
  func.func @transform_1(%arg0: i32) -> (i32, i32) {
    %c0_i32 = arith.constant 0 : i32
    %c0_i32_0 = arith.constant 0 : i32
    %c0_i32_1 = arith.constant 0 : i32
    return %c0_i32, %c0_i32_0 : i32, i32
  }
  func.func @transform_2(%arg0: i32) -> (i32, i32) {
    %c0_i32 = arith.constant 0 : i32
    %c0_i32_0 = arith.constant 0 : i32
    %c0_i32_1 = arith.constant 0 : i32
    return %c0_i32, %c0_i32_0 : i32, i32
  }
  func.func @transform_3(%arg0: i32) -> (i32, i32) {
    %c0_i32 = arith.constant 0 : i32
    %c0_i32_0 = arith.constant 0 : i32
    %c0_i32_1 = arith.constant 0 : i32
    return %c0_i32, %c0_i32_0 : i32, i32
  }
  func.func @transform_4(%arg0: i32) -> (i32, i32) {
    %c0_i32 = arith.constant 0 : i32
    %c0_i32_0 = arith.constant 0 : i32
    %c0_i32_1 = arith.constant 0 : i32
    return %c0_i32, %c0_i32_0 : i32, i32
  }
  func.func @transform_5(%arg0: i32) -> (i32, i32) {
    %c0_i32 = arith.constant 0 : i32
    %c0_i32_0 = arith.constant 0 : i32
    %c0_i32_1 = arith.constant 0 : i32
    return %c0_i32, %c0_i32_0 : i32, i32
  }
  func.func @transform_6(%arg0: i32) -> (i32, i32) {
    %c0_i32 = arith.constant 0 : i32
    %c0_i32_0 = arith.constant 0 : i32
    %c0_i32_1 = arith.constant 0 : i32
    return %c0_i32, %c0_i32_0 : i32, i32
  }
  func.func @transform_7(%arg0: i32) -> (i32, i32) {
    %c0_i32 = arith.constant 0 : i32
    %c0_i32_0 = arith.constant 0 : i32
    %c0_i32_1 = arith.constant 0 : i32
    return %c0_i32, %c0_i32_0 : i32, i32
  }
  func.func @transform_8(%arg0: i32) -> (i32, i32) {
    %c0_i32 = arith.constant 0 : i32
    %c0_i32_0 = arith.constant 0 : i32
    %c0_i32_1 = arith.constant 0 : i32
    return %c0_i32, %c0_i32_0 : i32, i32
  }
  func.func @transform_9(%arg0: i32) -> (i32, i32) {
    %c0_i32 = arith.constant 0 : i32
    %c0_i32_0 = arith.constant 0 : i32
    %c0_i32_1 = arith.constant 0 : i32
    return %c0_i32, %c0_i32_0 : i32, i32
  }
  func.func @transform_10(%arg0: i32) -> (i32, i32) {
    %c0_i32 = arith.constant 0 : i32
    %c0_i32_0 = arith.constant 0 : i32
    %c0_i32_1 = arith.constant 0 : i32
    return %c0_i32, %c0_i32_0 : i32, i32
  }
  func.func @transform_11(%arg0: i32) -> (i32, i32) {
    %c0_i32 = arith.constant 0 : i32
    %c0_i32_0 = arith.constant 0 : i32
    %c0_i32_1 = arith.constant 0 : i32
    return %c0_i32, %c0_i32_0 : i32, i32
  }
  func.func @transform_12(%arg0: i32) -> (i32, i32) {
    %c0_i32 = arith.constant 0 : i32
    %c0_i32_0 = arith.constant 0 : i32
    %c0_i32_1 = arith.constant 0 : i32
    return %c0_i32, %c0_i32_0 : i32, i32
  }
  func.func @transform_13(%arg0: i32) -> (i32, i32, i32) {
    %c0_i32 = arith.constant 0 : i32
    %c0_i32_0 = arith.constant 0 : i32
    %c0_i32_1 = arith.constant 0 : i32
    return %arg0, %c0_i32, %c0_i32_0 : i32, i32, i32
  }
}

</mosaic_0001>

<llo_original>
// kernel: tpu_custom_call.1
$region0: #{tpu_custom_call.1}
  #allocation0 [shape = 'u32[]', space=smem, size = 0x4, offset = 0x4, fixed_abs, tag = 'smem constant byte address 0x4 - core index']
  #allocation1 [shape = 'u32[144,128]{1,0:T(1,128)}', space=vmem, size = 0x12000, scoped, tag = 'internal scratch']
  #allocation2 [shape = 'f32[10,10,8]{2,1,0:T(8,128)}', space=vmem, size = 0x14000, scoped, tag = 'scratch operand']
  #allocation3 [shape = 'f32[64,72]{1,0:T(8,128)}', space=vmem, size = 0x8000, scoped, tag = 'scratch operand']
  %s0 = inlined_call_operand.vmem [shape: f32[2,16,16,4], index: 0, kind: input, shape index: {}]
  %s1 = inlined_call_operand.vmem [shape: f32[36,4], index: 1, kind: input, shape index: {}]
  %s2 = inlined_call_operand.vmem [shape: f32[1,4], index: 2, kind: input, shape index: {}]
  %s3 = inlined_call_operand.vmem [shape: f32[1,4], index: 3, kind: input, shape index: {}]
  %s4 = inlined_call_operand.vmem [shape: f32[36,4], index: 4, kind: input, shape index: {}]
  %s5 = inlined_call_operand.vmem [shape: f32[1,4], index: 5, kind: input, shape index: {}]
  %s6 = inlined_call_operand.vmem [shape: f32[1,4], index: 6, kind: input, shape index: {}]
  %s7 = inlined_call_operand.vmem [shape: f32[36,8], index: 7, kind: input, shape index: {}]
  %s8 = inlined_call_operand.vmem [shape: f32[1,8], index: 8, kind: input, shape index: {}]
  %s9 = inlined_call_operand.vmem [shape: f32[1,8], index: 9, kind: input, shape index: {}]
  %s10 = inlined_call_operand.vmem [shape: f32[72,8], index: 10, kind: input, shape index: {}]
  %s11 = inlined_call_operand.vmem [shape: f32[1,8], index: 11, kind: input, shape index: {}]
  %s12 = inlined_call_operand.vmem [shape: f32[1,8], index: 12, kind: input, shape index: {}]
  %s13 = inlined_call_operand.hbm [shape: f32[2,8,64], index: 13, kind: output, shape index: {}]
  %s14 = sld [smem:[#allocation0]]
  $region85: #{tpu_custom_call.1} parent=0
    _
  %s16 = ssub.s32 1, %s14
  %s17 = scalar_select 0, %s16, %s14
  $region1: #{tpu_custom_call.1} parent=0
    #allocation4 [shape = 'u8[8192]{0}', space=vmem, size = 0x2000, scoped, tag = 'output window, operand 0']
    #allocation5 [shape = 's32[2]{0}', space=sflag, size = 0x8, scoped, tag = 'scoped memory for tpu_custom_call.1']
    %18 = vsyncpa [#allocation5], 0
    %s19 = scalar_lea.sflag [#allocation5], 1
    %20 = vsyncpa %s19, 0
    loop: start=0, step=1, limit=4
    $region2: #{tpu_custom_call.1} parent=1 // loop_pre_header
      _
    $region3: #{tpu_custom_call.1} parent=1 // loop_header
      %s22 = sphi 0, %s26
      %p23 = scmp.ge.s32.totalorder %s22, 4
      %s32 = sphi 0, %s34
      %s35 = sphi 0, %s32
      %s36 = sphi 0, %s35
      %s52 = sphi 0, %s36
      %s56 = sphi 0, %s56
      %s58 = sphi 0, %s56
      %s59 = sphi 0, %s58
      %s73 = sphi 0, %s59
      %s77 = sphi 0, %s77
      %s79 = sphi 0, %s77
      %s80 = sphi 0, %s79
      %s94 = sphi 0, %s80
      %s98 = sphi 0, %s98
      %s100 = sphi 0, %s98
      %s101 = sphi 0, %s100
      %s115 = sphi 0, %s101
      %s119 = sphi 0, %s119
      %s121 = sphi 0, %s119
      %s122 = sphi 0, %s121
      %s136 = sphi 0, %s122
      %s140 = sphi 0, %s140
      %s142 = sphi 0, %s140
      %s143 = sphi 0, %s142
      %s157 = sphi 0, %s143
      %s161 = sphi 0, %s161
      %s163 = sphi 0, %s161
      %s164 = sphi 0, %s163
      %s178 = sphi 0, %s164
      %s182 = sphi 0, %s182
      %s184 = sphi 0, %s182
      %s185 = sphi 0, %s184
      %s199 = sphi 0, %s185
      %s203 = sphi 0, %s203
      %s205 = sphi 0, %s203
      %s206 = sphi 0, %s205
      %s220 = sphi 0, %s206
      %s224 = sphi 0, %s224
      %s226 = sphi 0, %s224
      %s227 = sphi 0, %s226
      %s241 = sphi 0, %s227
      %s245 = sphi 0, %s245
      %s247 = sphi 0, %s245
      %s248 = sphi 0, %s247
      %s262 = sphi 0, %s248
      %s266 = sphi 0, %s266
      %s268 = sphi 0, %s266
      %s269 = sphi 0, %s268
      %s283 = sphi 0, %s269
      %s287 = sphi 0, %s287
      %s289 = sphi 0, %s287
      %s290 = sphi 0, %s289
      %s304 = sphi 0, %s290
      %s310 = sphi 0, %s312
      %s313 = sphi 0, %s310
      %s314 = sphi 0, %s313
      %s330 = sphi 0, %s314
    $region4: #{tpu_custom_call.1} parent=1 // loop_header_branch
      %25 = sbr.rel (%p23) target = $region8
    $region5: #{tpu_custom_call.1} parent=1 // loop_body
      %s27 = ssub.s32 %s22, 1
      %s28 = ssub.s32 %s22, 2
      %s29 = sadd.s32 %s22, 1
      %s30 = ssub.s32 %s22, %s29
      %p31 = scmp.eq.s32.totalorder %s30, 0
      %s33 = sadd.s32 %s32, 1
      %s34 = scalar_select %p31, %s32, %s33
      %p37 = pneg %p31
      %p38 = scmp.eq.s32.totalorder %s22, 1
      %p39 = por %p37, %p38
      %p40 = scmp.ne.s32.totalorder %s32, %s35
      %p41 = scmp.eq.s32.totalorder %s22, 0
      %p42 = por %p40, %p41
      %p43 = scmp.ne.s32.totalorder %s32, %s35
      %p44 = scmp.eq.s32.totalorder %s27, 1
      %p45 = por %p43, %p44
      %p46 = scmp.ne.s32.totalorder %s35, %s36
      %p47 = scmp.eq.s32.totalorder %s27, 0
      %p48 = por %p46, %p47
      %p49 = scmp.ne.s32.totalorder %s35, %s36
      %p50 = scmp.eq.s32.totalorder %s28, 1
      %p51 = por %p49, %p50
      %p53 = scmp.ne.s32.totalorder %s36, %s52
      %p54 = scmp.eq.s32.totalorder %s28, 0
      %p55 = por %p53, %p54
      %s57 = sadd.s32 %s56, 1
      %p60 = scmp.eq.s32.totalorder %s22, 1
      %p61 = scmp.ne.s32.totalorder %s56, %s58
      %p62 = scmp.eq.s32.totalorder %s22, 0
      %p63 = por %p61, %p62
      %p64 = scmp.ne.s32.totalorder %s56, %s58
      %p65 = scmp.eq.s32.totalorder %s27, 1
      %p66 = por %p64, %p65
      %p67 = scmp.ne.s32.totalorder %s58, %s59
      %p68 = scmp.eq.s32.totalorder %s27, 0
      %p69 = por %p67, %p68
      %p70 = scmp.ne.s32.totalorder %s58, %s59
      %p71 = scmp.eq.s32.totalorder %s28, 1
      %p72 = por %p70, %p71
      %p74 = scmp.ne.s32.totalorder %s59, %s73
      %p75 = scmp.eq.s32.totalorder %s28, 0
      %p76 = por %p74, %p75
      %s78 = sadd.s32 %s77, 1
      %p81 = scmp.eq.s32.totalorder %s22, 1
      %p82 = scmp.ne.s32.totalorder %s77, %s79
      %p83 = scmp.eq.s32.totalorder %s22, 0
      %p84 = por %p82, %p83
      %p85 = scmp.ne.s32.totalorder %s77, %s79
      %p86 = scmp.eq.s32.totalorder %s27, 1
      %p87 = por %p85, %p86
      %p88 = scmp.ne.s32.totalorder %s79, %s80
      %p89 = scmp.eq.s32.totalorder %s27, 0
      %p90 = por %p88, %p89
      %p91 = scmp.ne.s32.totalorder %s79, %s80
      %p92 = scmp.eq.s32.totalorder %s28, 1
      %p93 = por %p91, %p92
      %p95 = scmp.ne.s32.totalorder %s80, %s94
      %p96 = scmp.eq.s32.totalorder %s28, 0
      %p97 = por %p95, %p96
      %s99 = sadd.s32 %s98, 1
      %p102 = scmp.eq.s32.totalorder %s22, 1
      %p103 = scmp.ne.s32.totalorder %s98, %s100
      %p104 = scmp.eq.s32.totalorder %s22, 0
      %p105 = por %p103, %p104
      %p106 = scmp.ne.s32.totalorder %s98, %s100
      %p107 = scmp.eq.s32.totalorder %s27, 1
      %p108 = por %p106, %p107
      %p109 = scmp.ne.s32.totalorder %s100, %s101
      %p110 = scmp.eq.s32.totalorder %s27, 0
      %p111 = por %p109, %p110
      %p112 = scmp.ne.s32.totalorder %s100, %s101
      %p113 = scmp.eq.s32.totalorder %s28, 1
      %p114 = por %p112, %p113
      %p116 = scmp.ne.s32.totalorder %s101, %s115
      %p117 = scmp.eq.s32.totalorder %s28, 0
      %p118 = por %p116, %p117
      %s120 = sadd.s32 %s119, 1
      %p123 = scmp.eq.s32.totalorder %s22, 1
      %p124 = scmp.ne.s32.totalorder %s119, %s121
      %p125 = scmp.eq.s32.totalorder %s22, 0
      %p126 = por %p124, %p125
      %p127 = scmp.ne.s32.totalorder %s119, %s121
      %p128 = scmp.eq.s32.totalorder %s27, 1
      %p129 = por %p127, %p128
      %p130 = scmp.ne.s32.totalorder %s121, %s122
      %p131 = scmp.eq.s32.totalorder %s27, 0
      %p132 = por %p130, %p131
      %p133 = scmp.ne.s32.totalorder %s121, %s122
      %p134 = scmp.eq.s32.totalorder %s28, 1
      %p135 = por %p133, %p134
      %p137 = scmp.ne.s32.totalorder %s122, %s136
      %p138 = scmp.eq.s32.totalorder %s28, 0
      %p139 = por %p137, %p138
      %s141 = sadd.s32 %s140, 1
      %p144 = scmp.eq.s32.totalorder %s22, 1
      %p145 = scmp.ne.s32.totalorder %s140, %s142
      %p146 = scmp.eq.s32.totalorder %s22, 0
      %p147 = por %p145, %p146
      %p148 = scmp.ne.s32.totalorder %s140, %s142
      %p149 = scmp.eq.s32.totalorder %s27, 1
      %p150 = por %p148, %p149
      %p151 = scmp.ne.s32.totalorder %s142, %s143
      %p152 = scmp.eq.s32.totalorder %s27, 0
      %p153 = por %p151, %p152
      %p154 = scmp.ne.s32.totalorder %s142, %s143
      %p155 = scmp.eq.s32.totalorder %s28, 1
      %p156 = por %p154, %p155
      %p158 = scmp.ne.s32.totalorder %s143, %s157
      %p159 = scmp.eq.s32.totalorder %s28, 0
      %p160 = por %p158, %p159
      %s162 = sadd.s32 %s161, 1
      %p165 = scmp.eq.s32.totalorder %s22, 1
      %p166 = scmp.ne.s32.totalorder %s161, %s163
      %p167 = scmp.eq.s32.totalorder %s22, 0
      %p168 = por %p166, %p167
      %p169 = scmp.ne.s32.totalorder %s161, %s163
      %p170 = scmp.eq.s32.totalorder %s27, 1
      %p171 = por %p169, %p170
      %p172 = scmp.ne.s32.totalorder %s163, %s164
      %p173 = scmp.eq.s32.totalorder %s27, 0
      %p174 = por %p172, %p173
      %p175 = scmp.ne.s32.totalorder %s163, %s164
      %p176 = scmp.eq.s32.totalorder %s28, 1
      %p177 = por %p175, %p176
      %p179 = scmp.ne.s32.totalorder %s164, %s178
      %p180 = scmp.eq.s32.totalorder %s28, 0
      %p181 = por %p179, %p180
      %s183 = sadd.s32 %s182, 1
      %p186 = scmp.eq.s32.totalorder %s22, 1
      %p187 = scmp.ne.s32.totalorder %s182, %s184
      %p188 = scmp.eq.s32.totalorder %s22, 0
      %p189 = por %p187, %p188
      %p190 = scmp.ne.s32.totalorder %s182, %s184
      %p191 = scmp.eq.s32.totalorder %s27, 1
      %p192 = por %p190, %p191
      %p193 = scmp.ne.s32.totalorder %s184, %s185
      %p194 = scmp.eq.s32.totalorder %s27, 0
      %p195 = por %p193, %p194
      %p196 = scmp.ne.s32.totalorder %s184, %s185
      %p197 = scmp.eq.s32.totalorder %s28, 1
      %p198 = por %p196, %p197
      %p200 = scmp.ne.s32.totalorder %s185, %s199
      %p201 = scmp.eq.s32.totalorder %s28, 0
      %p202 = por %p200, %p201
      %s204 = sadd.s32 %s203, 1
      %p207 = scmp.eq.s32.totalorder %s22, 1
      %p208 = scmp.ne.s32.totalorder %s203, %s205
      %p209 = scmp.eq.s32.totalorder %s22, 0
      %p210 = por %p208, %p209
      %p211 = scmp.ne.s32.totalorder %s203, %s205
      %p212 = scmp.eq.s32.totalorder %s27, 1
      %p213 = por %p211, %p212
      %p214 = scmp.ne.s32.totalorder %s205, %s206
      %p215 = scmp.eq.s32.totalorder %s27, 0
      %p216 = por %p214, %p215
      %p217 = scmp.ne.s32.totalorder %s205, %s206
      %p218 = scmp.eq.s32.totalorder %s28, 1
      %p219 = por %p217, %p218
      %p221 = scmp.ne.s32.totalorder %s206, %s220
      %p222 = scmp.eq.s32.totalorder %s28, 0
      %p223 = por %p221, %p222
      %s225 = sadd.s32 %s224, 1
      %p228 = scmp.eq.s32.totalorder %s22, 1
      %p229 = scmp.ne.s32.totalorder %s224, %s226
      %p230 = scmp.eq.s32.totalorder %s22, 0
      %p231 = por %p229, %p230
      %p232 = scmp.ne.s32.totalorder %s224, %s226
      %p233 = scmp.eq.s32.totalorder %s27, 1
      %p234 = por %p232, %p233
      %p235 = scmp.ne.s32.totalorder %s226, %s227
      %p236 = scmp.eq.s32.totalorder %s27, 0
      %p237 = por %p235, %p236
      %p238 = scmp.ne.s32.totalorder %s226, %s227
      %p239 = scmp.eq.s32.totalorder %s28, 1
      %p240 = por %p238, %p239
      %p242 = scmp.ne.s32.totalorder %s227, %s241
      %p243 = scmp.eq.s32.totalorder %s28, 0
      %p244 = por %p242, %p243
      %s246 = sadd.s32 %s245, 1
      %p249 = scmp.eq.s32.totalorder %s22, 1
      %p250 = scmp.ne.s32.totalorder %s245, %s247
      %p251 = scmp.eq.s32.totalorder %s22, 0
      %p252 = por %p250, %p251
      %p253 = scmp.ne.s32.totalorder %s245, %s247
      %p254 = scmp.eq.s32.totalorder %s27, 1
      %p255 = por %p253, %p254
      %p256 = scmp.ne.s32.totalorder %s247, %s248
      %p257 = scmp.eq.s32.totalorder %s27, 0
      %p258 = por %p256, %p257
      %p259 = scmp.ne.s32.totalorder %s247, %s248
      %p260 = scmp.eq.s32.totalorder %s28, 1
      %p261 = por %p259, %p260
      %p263 = scmp.ne.s32.totalorder %s248, %s262
      %p264 = scmp.eq.s32.totalorder %s28, 0
      %p265 = por %p263, %p264
      %s267 = sadd.s32 %s266, 1
      %p270 = scmp.eq.s32.totalorder %s22, 1
      %p271 = scmp.ne.s32.totalorder %s266, %s268
      %p272 = scmp.eq.s32.totalorder %s22, 0
      %p273 = por %p271, %p272
      %p274 = scmp.ne.s32.totalorder %s266, %s268
      %p275 = scmp.eq.s32.totalorder %s27, 1
      %p276 = por %p274, %p275
      %p277 = scmp.ne.s32.totalorder %s268, %s269
      %p278 = scmp.eq.s32.totalorder %s27, 0
      %p279 = por %p277, %p278
      %p280 = scmp.ne.s32.totalorder %s268, %s269
      %p281 = scmp.eq.s32.totalorder %s28, 1
      %p282 = por %p280, %p281
      %p284 = scmp.ne.s32.totalorder %s269, %s283
      %p285 = scmp.eq.s32.totalorder %s28, 0
      %p286 = por %p284, %p285
      %s288 = sadd.s32 %s287, 1
      %p291 = scmp.eq.s32.totalorder %s22, 1
      %p292 = scmp.ne.s32.totalorder %s287, %s289
      %p293 = scmp.eq.s32.totalorder %s22, 0
      %p294 = por %p292, %p293
      %p295 = scmp.ne.s32.totalorder %s287, %s289
      %p296 = scmp.eq.s32.totalorder %s27, 1
      %p297 = por %p295, %p296
      %p298 = scmp.ne.s32.totalorder %s289, %s290
      %p299 = scmp.eq.s32.totalorder %s27, 0
      %p300 = por %p298, %p299
      %p301 = scmp.ne.s32.totalorder %s289, %s290
      %p302 = scmp.eq.s32.totalorder %s28, 1
      %p303 = por %p301, %p302
      %p305 = scmp.ne.s32.totalorder %s290, %s304
      %p306 = scmp.eq.s32.totalorder %s28, 0
      %p307 = por %p305, %p306
      %s308 = ssub.s32 %s22, %s29
      %p309 = scmp.eq.s32.totalorder %s308, 0
      %s311 = sadd.s32 %s310, 1
      %s312 = scalar_select %p309, %s310, %s311
      %p315 = pneg %p309
      %p316 = scmp.eq.s32.totalorder %s22, 1
      %p317 = por %p315, %p316
      %p318 = scmp.ne.s32.totalorder %s310, %s313
      %p319 = scmp.eq.s32.totalorder %s22, 0
      %p320 = por %p318, %p319
      %p321 = scmp.ne.s32.totalorder %s310, %s313
      %p322 = scmp.eq.s32.totalorder %s27, 1
      %p323 = por %p321, %p322
      %p324 = scmp.ne.s32.totalorder %s313, %s314
      %p325 = scmp.eq.s32.totalorder %s27, 0
      %p326 = por %p324, %p325
      %p327 = scmp.ne.s32.totalorder %s313, %s314
      %p328 = scmp.eq.s32.totalorder %s28, 1
      %p329 = por %p327, %p328
      %p331 = scmp.ne.s32.totalorder %s314, %s330
      %p332 = scmp.eq.s32.totalorder %s28, 0
      %p333 = por %p331, %p332
      %p334 = scmp.le.s32.totalorder 1, %s22
      %p335 = scmp.lt.s32.totalorder %s22, 3
      %p336 = pnand %p334, %p335
      %p337 = pneg %p336
      // Predicated region
      $region9: #{tpu_custom_call.1} parent=5 // pred_check
        _
      $region10: #{tpu_custom_call.1} parent=5 // pred_check_branch
        %339 = sbr.rel (%p336) target = $region12
      $region11: #{tpu_custom_call.1} parent=5 // pred_region
        %s340 = ssub.s32 %s22, 1
        // Predicated region
        $region13: #{tpu_custom_call.1} parent=11 // pred_check
          %p341 = pneg %p69
        $region14: #{tpu_custom_call.1} parent=11 // pred_check_branch
          %343 = sbr.rel (%p341) target = $region16
        $region15: #{tpu_custom_call.1} parent=11 // pred_region
          _
        $region16: #{tpu_custom_call.1} parent=11 // pred_fallthru
          _
        // Predicated region
        $region17: #{tpu_custom_call.1} parent=11 // pred_check
          %p344 = pneg %p90
        $region18: #{tpu_custom_call.1} parent=11 // pred_check_branch
          %346 = sbr.rel (%p344) target = $region20
        $region19: #{tpu_custom_call.1} parent=11 // pred_region
          _
        $region20: #{tpu_custom_call.1} parent=11 // pred_fallthru
          _
        // Predicated region
        $region21: #{tpu_custom_call.1} parent=11 // pred_check
          %p347 = pneg %p111
        $region22: #{tpu_custom_call.1} parent=11 // pred_check_branch
          %349 = sbr.rel (%p347) target = $region24
        $region23: #{tpu_custom_call.1} parent=11 // pred_region
          _
        $region24: #{tpu_custom_call.1} parent=11 // pred_fallthru
          _
        // Predicated region
        $region25: #{tpu_custom_call.1} parent=11 // pred_check
          %p350 = pneg %p132
        $region26: #{tpu_custom_call.1} parent=11 // pred_check_branch
          %352 = sbr.rel (%p350) target = $region28
        $region27: #{tpu_custom_call.1} parent=11 // pred_region
          _
        $region28: #{tpu_custom_call.1} parent=11 // pred_fallthru
          _
        // Predicated region
        $region29: #{tpu_custom_call.1} parent=11 // pred_check
          %p353 = pneg %p153
        $region30: #{tpu_custom_call.1} parent=11 // pred_check_branch
          %355 = sbr.rel (%p353) target = $region32
        $region31: #{tpu_custom_call.1} parent=11 // pred_region
          _
        $region32: #{tpu_custom_call.1} parent=11 // pred_fallthru
          _
        // Predicated region
        $region33: #{tpu_custom_call.1} parent=11 // pred_check
          %p356 = pneg %p174
        $region34: #{tpu_custom_call.1} parent=11 // pred_check_branch
          %358 = sbr.rel (%p356) target = $region36
        $region35: #{tpu_custom_call.1} parent=11 // pred_region
          _
        $region36: #{tpu_custom_call.1} parent=11 // pred_fallthru
          _
        // Predicated region
        $region37: #{tpu_custom_call.1} parent=11 // pred_check
          %p359 = pneg %p195
        $region38: #{tpu_custom_call.1} parent=11 // pred_check_branch
          %361 = sbr.rel (%p359) target = $region40
        $region39: #{tpu_custom_call.1} parent=11 // pred_region
          _
        $region40: #{tpu_custom_call.1} parent=11 // pred_fallthru
          _
        // Predicated region
        $region41: #{tpu_custom_call.1} parent=11 // pred_check
          %p362 = pneg %p216
        $region42: #{tpu_custom_call.1} parent=11 // pred_check_branch
          %364 = sbr.rel (%p362) target = $region44
        $region43: #{tpu_custom_call.1} parent=11 // pred_region
          _
        $region44: #{tpu_custom_call.1} parent=11 // pred_fallthru
          _
        // Predicated region
        $region45: #{tpu_custom_call.1} parent=11 // pred_check
          %p365 = pneg %p237
        $region46: #{tpu_custom_call.1} parent=11 // pred_check_branch
          %367 = sbr.rel (%p365) target = $region48
        $region47: #{tpu_custom_call.1} parent=11 // pred_region
          _
        $region48: #{tpu_custom_call.1} parent=11 // pred_fallthru
          _
        // Predicated region
        $region49: #{tpu_custom_call.1} parent=11 // pred_check
          %p368 = pneg %p258
        $region50: #{tpu_custom_call.1} parent=11 // pred_check_branch
          %370 = sbr.rel (%p368) target = $region52
        $region51: #{tpu_custom_call.1} parent=11 // pred_region
          _
        $region52: #{tpu_custom_call.1} parent=11 // pred_fallthru
          _
        // Predicated region
        $region53: #{tpu_custom_call.1} parent=11 // pred_check
          %p371 = pneg %p279
        $region54: #{tpu_custom_call.1} parent=11 // pred_check_branch
          %373 = sbr.rel (%p371) target = $region56
        $region55: #{tpu_custom_call.1} parent=11 // pred_region
          _
        $region56: #{tpu_custom_call.1} parent=11 // pred_fallthru
          _
        // Predicated region
        $region57: #{tpu_custom_call.1} parent=11 // pred_check
          %p374 = pneg %p300
        $region58: #{tpu_custom_call.1} parent=11 // pred_check_branch
          %376 = sbr.rel (%p374) target = $region60
        $region59: #{tpu_custom_call.1} parent=11 // pred_region
          _
        $region60: #{tpu_custom_call.1} parent=11 // pred_fallthru
          _
      $region12: #{tpu_custom_call.1} parent=5 // pred_fallthru
        _
      %p377 = scmp.lt.s32.totalorder %s22, 2
      // Predicated region
      $region61: #{tpu_custom_call.1} parent=5 // pred_check
        %p378 = pneg %p377
      $region62: #{tpu_custom_call.1} parent=5 // pred_check_branch
        %380 = sbr.rel (%p378) target = $region64
      $region63: #{tpu_custom_call.1} parent=5 // pred_region
        // Predicated region
        $region65: #{tpu_custom_call.1} parent=63 // pred_check
          %p381 = pneg %p42
        $region66: #{tpu_custom_call.1} parent=63 // pred_check_branch
          %383 = sbr.rel (%p381) target = $region68
        $region67: #{tpu_custom_call.1} parent=63 // pred_region
          %p384 = scmp.lt.s32.totalorder %s22, 1
          %s385 = scalar_select %p384, %s22, 1
          %s386 = smul.addr %s385, 32
          %s387 = smul.addr %s386, 8
          %s388 = scalar_lea.vmem %s0, %s387
        $region68: #{tpu_custom_call.1} parent=63 // pred_fallthru
          _
      $region64: #{tpu_custom_call.1} parent=5 // pred_fallthru
        _
      %p389 = scmp.le.s32.totalorder 1, %s22
      %p390 = scmp.lt.s32.totalorder %s22, 3
      %p391 = pnand %p389, %p390
      %p392 = pneg %p391
      // Predicated region
      $region69: #{tpu_custom_call.1} parent=5 // pred_check
        _
      $region70: #{tpu_custom_call.1} parent=5 // pred_check_branch
        %394 = sbr.rel (%p391) target = $region72
      $region71: #{tpu_custom_call.1} parent=5 // pred_region
        %s395 = ssub.s32 %s22, 1
        %p396 = scmp.lt.s32.totalorder %s27, 1
        %s397 = scalar_select %p396, %s27, 1
        %s398 = smul.addr %s397, 32
        %s399 = smul.addr %s398, 8
        %s400 = scalar_lea.vmem %s0, %s399
        %p401 = pneg %p48
        %p402 = pneg %p45
        %p403 = pneg %p69
        %p404 = pneg %p66
        %p405 = pneg %p90
        %p406 = pneg %p87
        %p407 = pneg %p111
        %p408 = pneg %p108
        %p409 = pneg %p132
        %p410 = pneg %p129
        %p411 = pneg %p153
        %p412 = pneg %p150
        %p413 = pneg %p174
        %p414 = pneg %p171
        %p415 = pneg %p195
        %p416 = pneg %p192
        %p417 = pneg %p216
        %p418 = pneg %p213
        %p419 = pneg %p237
        %p420 = pneg %p234
        %p421 = pneg %p258
        %p422 = pneg %p255
        %p423 = pneg %p279
        %p424 = pneg %p276
        %p425 = pneg %p300
        %p426 = pneg %p297
        %p427 = pneg %p326
        %p428 = pneg %p323
        %s429 = sand.u32 %s313, 1
        %s430 = scalar_lea.sflag [#allocation5], %s429
        %s431 = sand.u32 %s313, 1
        %s432 = smul.addr %s431, 8
        %s433 = scalar_lea.vmem [#allocation4], %s432
        %p434 = scmp.lt.s32.totalorder %s27, 1
        %s435 = scalar_select %p434, %s27, 1
        %s436 = smul.addr %s435, 32
        %s437 = smul.addr %s436, 8
        %s438 = scalar_lea.vmem %s0, %s437
        %vm439 = vcmask 64512
        %440 = vst.msk [vmem:[#allocation2] sm:$0xff] %vm439, 0.0
        %vm441 = vcmask 58368
        %442 = vst.msk [vmem:[#allocation2 + $0x8] sm:$0x3] %vm441, 0.0
        %443 = vst.msk [vmem:[#allocation2 + $0x10] sm:$0xff] %vm439, 0.0
        %444 = vst.msk [vmem:[#allocation2 + $0x18] sm:$0x3] %vm441, 0.0
        %445 = vst.msk [vmem:[#allocation2 + $0x20] sm:$0xff] %vm439, 0.0
        %446 = vst.msk [vmem:[#allocation2 + $0x28] sm:$0x3] %vm441, 0.0
        %447 = vst.msk [vmem:[#allocation2 + $0x30] sm:$0xff] %vm439, 0.0
        %448 = vst.msk [vmem:[#allocation2 + $0x38] sm:$0x3] %vm441, 0.0
        %449 = vst.msk [vmem:[#allocation2 + $0x40] sm:$0xff] %vm439, 0.0
        %450 = vst.msk [vmem:[#allocation2 + $0x48] sm:$0x3] %vm441, 0.0
        %451 = vst.msk [vmem:[#allocation2 + $0x50] sm:$0xff] %vm439, 0.0
        %452 = vst.msk [vmem:[#allocation2 + $0x58] sm:$0x3] %vm441, 0.0
        %453 = vst.msk [vmem:[#allocation2 + $0x60] sm:$0xff] %vm439, 0.0
        %454 = vst.msk [vmem:[#allocation2 + $0x68] sm:$0x3] %vm441, 0.0
        %455 = vst.msk [vmem:[#allocation2 + $0x70] sm:$0xff] %vm439, 0.0
        %456 = vst.msk [vmem:[#allocation2 + $0x78] sm:$0x3] %vm441, 0.0
        %457 = vst.msk [vmem:[#allocation2 + $0x80] sm:$0xff] %vm439, 0.0
        %458 = vst.msk [vmem:[#allocation2 + $0x88] sm:$0x3] %vm441, 0.0
        %459 = vst.msk [vmem:[#allocation2 + $0x90] sm:$0xff] %vm439, 0.0
        %460 = vst.msk [vmem:[#allocation2 + $0x98] sm:$0x3] %vm441, 0.0
        %v461 = vld [vmem:[%s438] sm:$0xff]
        %v462 = vld [vmem:[%s438 + $0x8] sm:$0xff]
        %v463 = vld [vmem:[%s438 + $0x10] sm:$0xff]
        %v464 = vld [vmem:[%s438 + $0x18] sm:$0xff]
        %v465 = vld [vmem:[%s438 + $0x20] sm:$0xff]
        %v466 = vld [vmem:[%s438 + $0x28] sm:$0xff]
        %v467 = vld [vmem:[%s438 + $0x30] sm:$0xff]
        %v468 = vld [vmem:[%s438 + $0x38] sm:$0xff]
        %v469 = vld [vmem:[%s438 + $0x40] sm:$0xff]
        %v470 = vld [vmem:[%s438 + $0x48] sm:$0xff]
        %v471 = vld [vmem:[%s438 + $0x50] sm:$0xff]
        %v472 = vld [vmem:[%s438 + $0x58] sm:$0xff]
        %v473 = vld [vmem:[%s438 + $0x60] sm:$0xff]
        %v474 = vld [vmem:[%s438 + $0x68] sm:$0xff]
        %v475 = vld [vmem:[%s438 + $0x70] sm:$0xff]
        %v476 = vld [vmem:[%s438 + $0x78] sm:$0xff]
        %v477 = vld [vmem:[%s438 + $0x80] sm:$0xff]
        %v478 = vld [vmem:[%s438 + $0x88] sm:$0xff]
        %v479 = vld [vmem:[%s438 + $0x90] sm:$0xff]
        %v480 = vld [vmem:[%s438 + $0x98] sm:$0xff]
        %v481 = vld [vmem:[%s438 + $0xa0] sm:$0xff]
        %v482 = vld [vmem:[%s438 + $0xa8] sm:$0xff]
        %v483 = vld [vmem:[%s438 + $0xb0] sm:$0xff]
        %v484 = vld [vmem:[%s438 + $0xb8] sm:$0xff]
        %v485 = vld [vmem:[%s438 + $0xc0] sm:$0xff]
        %v486 = vld [vmem:[%s438 + $0xc8] sm:$0xff]
        %v487 = vld [vmem:[%s438 + $0xd0] sm:$0xff]
        %v488 = vld [vmem:[%s438 + $0xd8] sm:$0xff]
        %v489 = vld [vmem:[%s438 + $0xe0] sm:$0xff]
        %v490 = vld [vmem:[%s438 + $0xe8] sm:$0xff]
        %v491 = vld [vmem:[%s438 + $0xf0] sm:$0xff]
        %v492 = vld [vmem:[%s438 + $0xf8] sm:$0xff]
        %v493 = vmax.f32 %v461, %v463
        %v494 = vmax.f32 %v462, %v464
        %v495 = vmax.f32 %v465, %v467
        %v496 = vmax.f32 %v466, %v468
        %v497 = vmax.f32 %v469, %v471
        %v498 = vmax.f32 %v470, %v472
        %v499 = vmax.f32 %v473, %v475
        %v500 = vmax.f32 %v474, %v476
        %v501 = vmax.f32 %v477, %v479
        %v502 = vmax.f32 %v478, %v480
        %v503 = vmax.f32 %v481, %v483
        %v504 = vmax.f32 %v482, %v484
        %v505 = vmax.f32 %v485, %v487
        %v506 = vmax.f32 %v486, %v488
        %v507 = vmax.f32 %v489, %v491
        %v508 = vmax.f32 %v490, %v492
        %v525 = vcombine.high %v493, %v493
        %v527 = vunpack.c.l.s4 1983009808
        %v528 = vunpack.c.0.s8 %v527
        %v529 = vlaneseq
        %v530 = vshrl.u32 %v529, 7
        %v531 = vsub.s32 %v528, %v530
        %v532 = vrot.slane %v493, %v531
        %v534 = vunpack.c.l.s4 1983009808
        %v535 = vunpack.c.0.s8 %v534
        %v536 = vlaneseq
        %v537 = vshrl.u32 %v536, 7
        %v538 = vsub.s32 %v535, %v537
        %v539 = vrot.slane %v525, %v538
        %v540 = vcombine.high %v532, %v532
        %v541 = vcombine.high %v539, %v539
        %v542 = vcombine.high %v494, %v494
        %v544 = vunpack.c.l.s4 1983009808
        %v545 = vunpack.c.0.s8 %v544
        %v546 = vlaneseq
        %v547 = vshrl.u32 %v546, 7
        %v548 = vsub.s32 %v545, %v547
        %v549 = vrot.slane %v494, %v548
        %v551 = vunpack.c.l.s4 1983009808
        %v552 = vunpack.c.0.s8 %v551
        %v553 = vlaneseq
        %v554 = vshrl.u32 %v553, 7
        %v555 = vsub.s32 %v552, %v554
        %v556 = vrot.slane %v542, %v555
        %v557 = vcombine.high %v549, %v549
        %v558 = vcombine.high %v556, %v556
        %v559 = vcombine.high %v495, %v495
        %v561 = vunpack.c.l.s4 1983009808
        %v562 = vunpack.c.0.s8 %v561
        %v563 = vlaneseq
        %v564 = vshrl.u32 %v563, 7
        %v565 = vsub.s32 %v562, %v564
        %v566 = vrot.slane %v495, %v565
        %v568 = vunpack.c.l.s4 1983009808
        %v569 = vunpack.c.0.s8 %v568
        %v570 = vlaneseq
        %v571 = vshrl.u32 %v570, 7
        %v572 = vsub.s32 %v569, %v571
        %v573 = vrot.slane %v559, %v572
        %v574 = vcombine.high %v566, %v566
        %v575 = vcombine.high %v573, %v573
        %v576 = vcombine.high %v496, %v496
        %v578 = vunpack.c.l.s4 1983009808
        %v579 = vunpack.c.0.s8 %v578
        %v580 = vlaneseq
        %v581 = vshrl.u32 %v580, 7
        %v582 = vsub.s32 %v579, %v581
        %v583 = vrot.slane %v496, %v582
        %v585 = vunpack.c.l.s4 1983009808
        %v586 = vunpack.c.0.s8 %v585
        %v587 = vlaneseq
        %v588 = vshrl.u32 %v587, 7
        %v589 = vsub.s32 %v586, %v588
        %v590 = vrot.slane %v576, %v589
        %v591 = vcombine.high %v583, %v583
        %v592 = vcombine.high %v590, %v590
        %v593 = vcombine.high %v497, %v497
        %v595 = vunpack.c.l.s4 1983009808
        %v596 = vunpack.c.0.s8 %v595
        %v597 = vlaneseq
        %v598 = vshrl.u32 %v597, 7
        %v599 = vsub.s32 %v596, %v598
        %v600 = vrot.slane %v497, %v599
        %v602 = vunpack.c.l.s4 1983009808
        %v603 = vunpack.c.0.s8 %v602
        %v604 = vlaneseq
        %v605 = vshrl.u32 %v604, 7
        %v606 = vsub.s32 %v603, %v605
        %v607 = vrot.slane %v593, %v606
        %v608 = vcombine.high %v600, %v600
        %v609 = vcombine.high %v607, %v607
        %v610 = vcombine.high %v498, %v498
        %v612 = vunpack.c.l.s4 1983009808
        %v613 = vunpack.c.0.s8 %v612
        %v614 = vlaneseq
        %v615 = vshrl.u32 %v614, 7
        %v616 = vsub.s32 %v613, %v615
        %v617 = vrot.slane %v498, %v616
        %v619 = vunpack.c.l.s4 1983009808
        %v620 = vunpack.c.0.s8 %v619
        %v621 = vlaneseq
        %v622 = vshrl.u32 %v621, 7
        %v623 = vsub.s32 %v620, %v622
        %v624 = vrot.slane %v610, %v623
        %v625 = vcombine.high %v617, %v617
        %v626 = vcombine.high %v624, %v624
        %v627 = vcombine.high %v499, %v499
        %v629 = vunpack.c.l.s4 1983009808
        %v630 = vunpack.c.0.s8 %v629
        %v631 = vlaneseq
        %v632 = vshrl.u32 %v631, 7
        %v633 = vsub.s32 %v630, %v632
        %v634 = vrot.slane %v499, %v633
        %v636 = vunpack.c.l.s4 1983009808
        %v637 = vunpack.c.0.s8 %v636
        %v638 = vlaneseq
        %v639 = vshrl.u32 %v638, 7
        %v640 = vsub.s32 %v637, %v639
        %v641 = vrot.slane %v627, %v640
        %v642 = vcombine.high %v634, %v634
        %v643 = vcombine.high %v641, %v641
        %v644 = vcombine.high %v500, %v500
        %v646 = vunpack.c.l.s4 1983009808
        %v647 = vunpack.c.0.s8 %v646
        %v648 = vlaneseq
        %v649 = vshrl.u32 %v648, 7
        %v650 = vsub.s32 %v647, %v649
        %v651 = vrot.slane %v500, %v650
        %v653 = vunpack.c.l.s4 1983009808
        %v654 = vunpack.c.0.s8 %v653
        %v655 = vlaneseq
        %v656 = vshrl.u32 %v655, 7
        %v657 = vsub.s32 %v654, %v656
        %v658 = vrot.slane %v644, %v657
        %v659 = vcombine.high %v651, %v651
        %v660 = vcombine.high %v658, %v658
        %v661 = vcombine.high %v501, %v501
        %v663 = vunpack.c.l.s4 1983009808
        %v664 = vunpack.c.0.s8 %v663
        %v665 = vlaneseq
        %v666 = vshrl.u32 %v665, 7
        %v667 = vsub.s32 %v664, %v666
        %v668 = vrot.slane %v501, %v667
        %v670 = vunpack.c.l.s4 1983009808
        %v671 = vunpack.c.0.s8 %v670
        %v672 = vlaneseq
        %v673 = vshrl.u32 %v672, 7
        %v674 = vsub.s32 %v671, %v673
        %v675 = vrot.slane %v661, %v674
        %v676 = vcombine.high %v668, %v668
        %v677 = vcombine.high %v675, %v675
        %v678 = vcombine.high %v502, %v502
        %v680 = vunpack.c.l.s4 1983009808
        %v681 = vunpack.c.0.s8 %v680
        %v682 = vlaneseq
        %v683 = vshrl.u32 %v682, 7
        %v684 = vsub.s32 %v681, %v683
        %v685 = vrot.slane %v502, %v684
        %v687 = vunpack.c.l.s4 1983009808
        %v688 = vunpack.c.0.s8 %v687
        %v689 = vlaneseq
        %v690 = vshrl.u32 %v689, 7
        %v691 = vsub.s32 %v688, %v690
        %v692 = vrot.slane %v678, %v691
        %v693 = vcombine.high %v685, %v685
        %v694 = vcombine.high %v692, %v692
        %v695 = vcombine.high %v503, %v503
        %v697 = vunpack.c.l.s4 1983009808
        %v698 = vunpack.c.0.s8 %v697
        %v699 = vlaneseq
        %v700 = vshrl.u32 %v699, 7
        %v701 = vsub.s32 %v698, %v700
        %v702 = vrot.slane %v503, %v701
        %v704 = vunpack.c.l.s4 1983009808
        %v705 = vunpack.c.0.s8 %v704
        %v706 = vlaneseq
        %v707 = vshrl.u32 %v706, 7
        %v708 = vsub.s32 %v705, %v707
        %v709 = vrot.slane %v695, %v708
        %v710 = vcombine.high %v702, %v702
        %v711 = vcombine.high %v709, %v709
        %v712 = vcombine.high %v504, %v504
        %v714 = vunpack.c.l.s4 1983009808
        %v715 = vunpack.c.0.s8 %v714
        %v716 = vlaneseq
        %v717 = vshrl.u32 %v716, 7
        %v718 = vsub.s32 %v715, %v717
        %v719 = vrot.slane %v504, %v718
        %v721 = vunpack.c.l.s4 1983009808
        %v722 = vunpack.c.0.s8 %v721
        %v723 = vlaneseq
        %v724 = vshrl.u32 %v723, 7
        %v725 = vsub.s32 %v722, %v724
        %v726 = vrot.slane %v712, %v725
        %v727 = vcombine.high %v719, %v719
        %v728 = vcombine.high %v726, %v726
        %v729 = vcombine.high %v505, %v505
        %v731 = vunpack.c.l.s4 1983009808
        %v732 = vunpack.c.0.s8 %v731
        %v733 = vlaneseq
        %v734 = vshrl.u32 %v733, 7
        %v735 = vsub.s32 %v732, %v734
        %v736 = vrot.slane %v505, %v735
        %v738 = vunpack.c.l.s4 1983009808
        %v739 = vunpack.c.0.s8 %v738
        %v740 = vlaneseq
        %v741 = vshrl.u32 %v740, 7
        %v742 = vsub.s32 %v739, %v741
        %v743 = vrot.slane %v729, %v742
        %v744 = vcombine.high %v736, %v736
        %v745 = vcombine.high %v743, %v743
        %v746 = vcombine.high %v506, %v506
        %v748 = vunpack.c.l.s4 1983009808
        %v749 = vunpack.c.0.s8 %v748
        %v750 = vlaneseq
        %v751 = vshrl.u32 %v750, 7
        %v752 = vsub.s32 %v749, %v751
        %v753 = vrot.slane %v506, %v752
        %v755 = vunpack.c.l.s4 1983009808
        %v756 = vunpack.c.0.s8 %v755
        %v757 = vlaneseq
        %v758 = vshrl.u32 %v757, 7
        %v759 = vsub.s32 %v756, %v758
        %v760 = vrot.slane %v746, %v759
        %v761 = vcombine.high %v753, %v753
        %v762 = vcombine.high %v760, %v760
        %v763 = vcombine.high %v507, %v507
        %v765 = vunpack.c.l.s4 1983009808
        %v766 = vunpack.c.0.s8 %v765
        %v767 = vlaneseq
        %v768 = vshrl.u32 %v767, 7
        %v769 = vsub.s32 %v766, %v768
        %v770 = vrot.slane %v507, %v769
        %v772 = vunpack.c.l.s4 1983009808
        %v773 = vunpack.c.0.s8 %v772
        %v774 = vlaneseq
        %v775 = vshrl.u32 %v774, 7
        %v776 = vsub.s32 %v773, %v775
        %v777 = vrot.slane %v763, %v776
        %v778 = vcombine.high %v770, %v770
        %v779 = vcombine.high %v777, %v777
        %v780 = vcombine.high %v508, %v508
        %v782 = vunpack.c.l.s4 1983009808
        %v783 = vunpack.c.0.s8 %v782
        %v784 = vlaneseq
        %v785 = vshrl.u32 %v784, 7
        %v786 = vsub.s32 %v783, %v785
        %v787 = vrot.slane %v508, %v786
        %v789 = vunpack.c.l.s4 1983009808
        %v790 = vunpack.c.0.s8 %v789
        %v791 = vlaneseq
        %v792 = vshrl.u32 %v791, 7
        %v793 = vsub.s32 %v790, %v792
        %v794 = vrot.slane %v780, %v793
        %v795 = vcombine.high %v787, %v787
        %v796 = vcombine.high %v794, %v794
        %v861 = vrot.slane %v532, 7
        %v862 = vrot.slane %v861, 2
        %v863 = vrot.slane %v540, 7
        %v864 = vrot.slane %v863, 2
        %v865 = vrot.slane %v539, 7
        %v866 = vrot.slane %v865, 2
        %v867 = vrot.slane %v541, 7
        %v868 = vrot.slane %v867, 2
        %v869 = vrot.slane %v549, 7
        %v870 = vrot.slane %v869, 2
        %v871 = vrot.slane %v557, 7
        %v872 = vrot.slane %v871, 2
        %v873 = vrot.slane %v556, 7
        %v874 = vrot.slane %v873, 2
        %v875 = vrot.slane %v558, 7
        %v876 = vrot.slane %v875, 2
        %v877 = vrot.slane %v566, 7
        %v878 = vrot.slane %v877, 2
        %v879 = vrot.slane %v574, 7
        %v880 = vrot.slane %v879, 2
        %v881 = vrot.slane %v573, 7
        %v882 = vrot.slane %v881, 2
        %v883 = vrot.slane %v575, 7
        %v884 = vrot.slane %v883, 2
        %v885 = vrot.slane %v583, 7
        %v886 = vrot.slane %v885, 2
        %v887 = vrot.slane %v591, 7
        %v888 = vrot.slane %v887, 2
        %v889 = vrot.slane %v590, 7
        %v890 = vrot.slane %v889, 2
        %v891 = vrot.slane %v592, 7
        %v892 = vrot.slane %v891, 2
        %v893 = vrot.slane %v600, 7
        %v894 = vrot.slane %v893, 2
        %v895 = vrot.slane %v608, 7
        %v896 = vrot.slane %v895, 2
        %v897 = vrot.slane %v607, 7
        %v898 = vrot.slane %v897, 2
        %v899 = vrot.slane %v609, 7
        %v900 = vrot.slane %v899, 2
        %v901 = vrot.slane %v617, 7
        %v902 = vrot.slane %v901, 2
        %v903 = vrot.slane %v625, 7
        %v904 = vrot.slane %v903, 2
        %v905 = vrot.slane %v624, 7
        %v906 = vrot.slane %v905, 2
        %v907 = vrot.slane %v626, 7
        %v908 = vrot.slane %v907, 2
        %v909 = vrot.slane %v634, 7
        %v910 = vrot.slane %v909, 2
        %v911 = vrot.slane %v642, 7
        %v912 = vrot.slane %v911, 2
        %v913 = vrot.slane %v641, 7
        %v914 = vrot.slane %v913, 2
        %v915 = vrot.slane %v643, 7
        %v916 = vrot.slane %v915, 2
        %v917 = vrot.slane %v651, 7
        %v918 = vrot.slane %v917, 2
        %v919 = vrot.slane %v659, 7
        %v920 = vrot.slane %v919, 2
        %v921 = vrot.slane %v658, 7
        %v922 = vrot.slane %v921, 2
        %v923 = vrot.slane %v660, 7
        %v924 = vrot.slane %v923, 2
        %v925 = vrot.slane %v668, 7
        %v926 = vrot.slane %v925, 2
        %v927 = vrot.slane %v676, 7
        %v928 = vrot.slane %v927, 2
        %v929 = vrot.slane %v675, 7
        %v930 = vrot.slane %v929, 2
        %v931 = vrot.slane %v677, 7
        %v932 = vrot.slane %v931, 2
        %v933 = vrot.slane %v685, 7
        %v934 = vrot.slane %v933, 2
        %v935 = vrot.slane %v693, 7
        %v936 = vrot.slane %v935, 2
        %v937 = vrot.slane %v692, 7
        %v938 = vrot.slane %v937, 2
        %v939 = vrot.slane %v694, 7
        %v940 = vrot.slane %v939, 2
        %v941 = vrot.slane %v702, 7
        %v942 = vrot.slane %v941, 2
        %v943 = vrot.slane %v710, 7
        %v944 = vrot.slane %v943, 2
        %v945 = vrot.slane %v709, 7
        %v946 = vrot.slane %v945, 2
        %v947 = vrot.slane %v711, 7
        %v948 = vrot.slane %v947, 2
        %v949 = vrot.slane %v719, 7
        %v950 = vrot.slane %v949, 2
        %v951 = vrot.slane %v727, 7
        %v952 = vrot.slane %v951, 2
        %v953 = vrot.slane %v726, 7
        %v954 = vrot.slane %v953, 2
        %v955 = vrot.slane %v728, 7
        %v956 = vrot.slane %v955, 2
        %v957 = vrot.slane %v736, 7
        %v958 = vrot.slane %v957, 2
        %v959 = vrot.slane %v744, 7
        %v960 = vrot.slane %v959, 2
        %v961 = vrot.slane %v743, 7
        %v962 = vrot.slane %v961, 2
        %v963 = vrot.slane %v745, 7
        %v964 = vrot.slane %v963, 2
        %v965 = vrot.slane %v753, 7
        %v966 = vrot.slane %v965, 2
        %v967 = vrot.slane %v761, 7
        %v968 = vrot.slane %v967, 2
        %v969 = vrot.slane %v760, 7
        %v970 = vrot.slane %v969, 2
        %v971 = vrot.slane %v762, 7
        %v972 = vrot.slane %v971, 2
        %v973 = vrot.slane %v770, 7
        %v974 = vrot.slane %v973, 2
        %v975 = vrot.slane %v778, 7
        %v976 = vrot.slane %v975, 2
        %v977 = vrot.slane %v777, 7
        %v978 = vrot.slane %v977, 2
        %v979 = vrot.slane %v779, 7
        %v980 = vrot.slane %v979, 2
        %v981 = vrot.slane %v787, 7
        %v982 = vrot.slane %v981, 2
        %v983 = vrot.slane %v795, 7
        %v984 = vrot.slane %v983, 2
        %v985 = vrot.slane %v794, 7
        %v986 = vrot.slane %v985, 2
        %v987 = vrot.slane %v796, 7
        %v988 = vrot.slane %v987, 2
        %v1053 = vmax.f32 %v532, %v862
        %v1054 = vmax.f32 %v540, %v864
        %v1055 = vmax.f32 %v539, %v866
        %v1056 = vmax.f32 %v541, %v868
        %v1057 = vmax.f32 %v549, %v870
        %v1058 = vmax.f32 %v557, %v872
        %v1059 = vmax.f32 %v556, %v874
        %v1060 = vmax.f32 %v558, %v876
        %v1061 = vmax.f32 %v566, %v878
        %v1062 = vmax.f32 %v574, %v880
        %v1063 = vmax.f32 %v573, %v882
        %v1064 = vmax.f32 %v575, %v884
        %v1065 = vmax.f32 %v583, %v886
        %v1066 = vmax.f32 %v591, %v888
        %v1067 = vmax.f32 %v590, %v890
        %v1068 = vmax.f32 %v592, %v892
        %v1069 = vmax.f32 %v600, %v894
        %v1070 = vmax.f32 %v608, %v896
        %v1071 = vmax.f32 %v607, %v898
        %v1072 = vmax.f32 %v609, %v900
        %v1073 = vmax.f32 %v617, %v902
        %v1074 = vmax.f32 %v625, %v904
        %v1075 = vmax.f32 %v624, %v906
        %v1076 = vmax.f32 %v626, %v908
        %v1077 = vmax.f32 %v634, %v910
        %v1078 = vmax.f32 %v642, %v912
        %v1079 = vmax.f32 %v641, %v914
        %v1080 = vmax.f32 %v643, %v916
        %v1081 = vmax.f32 %v651, %v918
        %v1082 = vmax.f32 %v659, %v920
        %v1083 = vmax.f32 %v658, %v922
        %v1084 = vmax.f32 %v660, %v924
        %v1085 = vmax.f32 %v668, %v926
        %v1086 = vmax.f32 %v676, %v928
        %v1087 = vmax.f32 %v675, %v930
        %v1088 = vmax.f32 %v677, %v932
        %v1089 = vmax.f32 %v685, %v934
        %v1090 = vmax.f32 %v693, %v936
        %v1091 = vmax.f32 %v692, %v938
        %v1092 = vmax.f32 %v694, %v940
        %v1093 = vmax.f32 %v702, %v942
        %v1094 = vmax.f32 %v710, %v944
        %v1095 = vmax.f32 %v709, %v946
        %v1096 = vmax.f32 %v711, %v948
        %v1097 = vmax.f32 %v719, %v950
        %v1098 = vmax.f32 %v727, %v952
        %v1099 = vmax.f32 %v726, %v954
        %v1100 = vmax.f32 %v728, %v956
        %v1101 = vmax.f32 %v736, %v958
        %v1102 = vmax.f32 %v744, %v960
        %v1103 = vmax.f32 %v743, %v962
        %v1104 = vmax.f32 %v745, %v964
        %v1105 = vmax.f32 %v753, %v966
        %v1106 = vmax.f32 %v761, %v968
        %v1107 = vmax.f32 %v760, %v970
        %v1108 = vmax.f32 %v762, %v972
        %v1109 = vmax.f32 %v770, %v974
        %v1110 = vmax.f32 %v778, %v976
        %v1111 = vmax.f32 %v777, %v978
        %v1112 = vmax.f32 %v779, %v980
        %v1113 = vmax.f32 %v787, %v982
        %v1114 = vmax.f32 %v795, %v984
        %v1115 = vmax.f32 %v794, %v986
        %v1116 = vmax.f32 %v796, %v988
        %v1181 = vlaneseq
        %v1182 = vshrl.u32 %v1181, 7
        %v1183 = vsub.s32 0, %v1182
        %v1184 = vrot.slane %v1053, %v1183
        %v1185 = vlaneseq
        %v1186 = vshrl.u32 %v1185, 7
        %v1187 = vsub.s32 0, %v1186
        %v1188 = vrot.slane %v1054, %v1187
        %v1189 = vlaneseq
        %v1190 = vshrl.u32 %v1189, 7
        %v1191 = vsub.s32 0, %v1190
        %v1192 = vrot.slane %v1055, %v1191
        %v1193 = vlaneseq
        %v1194 = vshrl.u32 %v1193, 7
        %v1195 = vsub.s32 0, %v1194
        %v1196 = vrot.slane %v1056, %v1195
        %v1197 = vlaneseq
        %v1198 = vshrl.u32 %v1197, 7
        %v1199 = vsub.s32 0, %v1198
        %v1200 = vrot.slane %v1057, %v1199
        %v1201 = vlaneseq
        %v1202 = vshrl.u32 %v1201, 7
        %v1203 = vsub.s32 0, %v1202
        %v1204 = vrot.slane %v1058, %v1203
        %v1205 = vlaneseq
        %v1206 = vshrl.u32 %v1205, 7
        %v1207 = vsub.s32 0, %v1206
        %v1208 = vrot.slane %v1059, %v1207
        %v1209 = vlaneseq
        %v1210 = vshrl.u32 %v1209, 7
        %v1211 = vsub.s32 0, %v1210
        %v1212 = vrot.slane %v1060, %v1211
        %v1213 = vlaneseq
        %v1214 = vshrl.u32 %v1213, 7
        %v1215 = vsub.s32 0, %v1214
        %v1216 = vrot.slane %v1061, %v1215
        %v1217 = vlaneseq
        %v1218 = vshrl.u32 %v1217, 7
        %v1219 = vsub.s32 0, %v1218
        %v1220 = vrot.slane %v1062, %v1219
        %v1221 = vlaneseq
        %v1222 = vshrl.u32 %v1221, 7
        %v1223 = vsub.s32 0, %v1222
        %v1224 = vrot.slane %v1063, %v1223
        %v1225 = vlaneseq
        %v1226 = vshrl.u32 %v1225, 7
        %v1227 = vsub.s32 0, %v1226
        %v1228 = vrot.slane %v1064, %v1227
        %v1229 = vlaneseq
        %v1230 = vshrl.u32 %v1229, 7
        %v1231 = vsub.s32 0, %v1230
        %v1232 = vrot.slane %v1065, %v1231
        %v1233 = vlaneseq
        %v1234 = vshrl.u32 %v1233, 7
        %v1235 = vsub.s32 0, %v1234
        %v1236 = vrot.slane %v1066, %v1235
        %v1237 = vlaneseq
        %v1238 = vshrl.u32 %v1237, 7
        %v1239 = vsub.s32 0, %v1238
        %v1240 = vrot.slane %v1067, %v1239
        %v1241 = vlaneseq
        %v1242 = vshrl.u32 %v1241, 7
        %v1243 = vsub.s32 0, %v1242
        %v1244 = vrot.slane %v1068, %v1243
        %v1245 = vlaneseq
        %v1246 = vshrl.u32 %v1245, 7
        %v1247 = vsub.s32 0, %v1246
        %v1248 = vrot.slane %v1069, %v1247
        %v1249 = vlaneseq
        %v1250 = vshrl.u32 %v1249, 7
        %v1251 = vsub.s32 0, %v1250
        %v1252 = vrot.slane %v1070, %v1251
        %v1253 = vlaneseq
        %v1254 = vshrl.u32 %v1253, 7
        %v1255 = vsub.s32 0, %v1254
        %v1256 = vrot.slane %v1071, %v1255
        %v1257 = vlaneseq
        %v1258 = vshrl.u32 %v1257, 7
        %v1259 = vsub.s32 0, %v1258
        %v1260 = vrot.slane %v1072, %v1259
        %v1261 = vlaneseq
        %v1262 = vshrl.u32 %v1261, 7
        %v1263 = vsub.s32 0, %v1262
        %v1264 = vrot.slane %v1073, %v1263
        %v1265 = vlaneseq
        %v1266 = vshrl.u32 %v1265, 7
        %v1267 = vsub.s32 0, %v1266
        %v1268 = vrot.slane %v1074, %v1267
        %v1269 = vlaneseq
        %v1270 = vshrl.u32 %v1269, 7
        %v1271 = vsub.s32 0, %v1270
        %v1272 = vrot.slane %v1075, %v1271
        %v1273 = vlaneseq
        %v1274 = vshrl.u32 %v1273, 7
        %v1275 = vsub.s32 0, %v1274
        %v1276 = vrot.slane %v1076, %v1275
        %v1277 = vlaneseq
        %v1278 = vshrl.u32 %v1277, 7
        %v1279 = vsub.s32 0, %v1278
        %v1280 = vrot.slane %v1077, %v1279
        %v1281 = vlaneseq
        %v1282 = vshrl.u32 %v1281, 7
        %v1283 = vsub.s32 0, %v1282
        %v1284 = vrot.slane %v1078, %v1283
        %v1285 = vlaneseq
        %v1286 = vshrl.u32 %v1285, 7
        %v1287 = vsub.s32 0, %v1286
        %v1288 = vrot.slane %v1079, %v1287
        %v1289 = vlaneseq
        %v1290 = vshrl.u32 %v1289, 7
        %v1291 = vsub.s32 0, %v1290
        %v1292 = vrot.slane %v1080, %v1291
        %v1293 = vlaneseq
        %v1294 = vshrl.u32 %v1293, 7
        %v1295 = vsub.s32 0, %v1294
        %v1296 = vrot.slane %v1081, %v1295
        %v1297 = vlaneseq
        %v1298 = vshrl.u32 %v1297, 7
        %v1299 = vsub.s32 0, %v1298
        %v1300 = vrot.slane %v1082, %v1299
        %v1301 = vlaneseq
        %v1302 = vshrl.u32 %v1301, 7
        %v1303 = vsub.s32 0, %v1302
        %v1304 = vrot.slane %v1083, %v1303
        %v1305 = vlaneseq
        %v1306 = vshrl.u32 %v1305, 7
        %v1307 = vsub.s32 0, %v1306
        %v1308 = vrot.slane %v1084, %v1307
        %v1309 = vlaneseq
        %v1310 = vshrl.u32 %v1309, 7
        %v1311 = vsub.s32 0, %v1310
        %v1312 = vrot.slane %v1085, %v1311
        %v1313 = vlaneseq
        %v1314 = vshrl.u32 %v1313, 7
        %v1315 = vsub.s32 0, %v1314
        %v1316 = vrot.slane %v1086, %v1315
        %v1317 = vlaneseq
        %v1318 = vshrl.u32 %v1317, 7
        %v1319 = vsub.s32 0, %v1318
        %v1320 = vrot.slane %v1087, %v1319
        %v1321 = vlaneseq
        %v1322 = vshrl.u32 %v1321, 7
        %v1323 = vsub.s32 0, %v1322
        %v1324 = vrot.slane %v1088, %v1323
        %v1325 = vlaneseq
        %v1326 = vshrl.u32 %v1325, 7
        %v1327 = vsub.s32 0, %v1326
        %v1328 = vrot.slane %v1089, %v1327
        %v1329 = vlaneseq
        %v1330 = vshrl.u32 %v1329, 7
        %v1331 = vsub.s32 0, %v1330
        %v1332 = vrot.slane %v1090, %v1331
        %v1333 = vlaneseq
        %v1334 = vshrl.u32 %v1333, 7
        %v1335 = vsub.s32 0, %v1334
        %v1336 = vrot.slane %v1091, %v1335
        %v1337 = vlaneseq
        %v1338 = vshrl.u32 %v1337, 7
        %v1339 = vsub.s32 0, %v1338
        %v1340 = vrot.slane %v1092, %v1339
        %v1341 = vlaneseq
        %v1342 = vshrl.u32 %v1341, 7
        %v1343 = vsub.s32 0, %v1342
        %v1344 = vrot.slane %v1093, %v1343
        %v1345 = vlaneseq
        %v1346 = vshrl.u32 %v1345, 7
        %v1347 = vsub.s32 0, %v1346
        %v1348 = vrot.slane %v1094, %v1347
        %v1349 = vlaneseq
        %v1350 = vshrl.u32 %v1349, 7
        %v1351 = vsub.s32 0, %v1350
        %v1352 = vrot.slane %v1095, %v1351
        %v1353 = vlaneseq
        %v1354 = vshrl.u32 %v1353, 7
        %v1355 = vsub.s32 0, %v1354
        %v1356 = vrot.slane %v1096, %v1355
        %v1357 = vlaneseq
        %v1358 = vshrl.u32 %v1357, 7
        %v1359 = vsub.s32 0, %v1358
        %v1360 = vrot.slane %v1097, %v1359
        %v1361 = vlaneseq
        %v1362 = vshrl.u32 %v1361, 7
        %v1363 = vsub.s32 0, %v1362
        %v1364 = vrot.slane %v1098, %v1363
        %v1365 = vlaneseq
        %v1366 = vshrl.u32 %v1365, 7
        %v1367 = vsub.s32 0, %v1366
        %v1368 = vrot.slane %v1099, %v1367
        %v1369 = vlaneseq
        %v1370 = vshrl.u32 %v1369, 7
        %v1371 = vsub.s32 0, %v1370
        %v1372 = vrot.slane %v1100, %v1371
        %v1373 = vlaneseq
        %v1374 = vshrl.u32 %v1373, 7
        %v1375 = vsub.s32 0, %v1374
        %v1376 = vrot.slane %v1101, %v1375
        %v1377 = vlaneseq
        %v1378 = vshrl.u32 %v1377, 7
        %v1379 = vsub.s32 0, %v1378
        %v1380 = vrot.slane %v1102, %v1379
        %v1381 = vlaneseq
        %v1382 = vshrl.u32 %v1381, 7
        %v1383 = vsub.s32 0, %v1382
        %v1384 = vrot.slane %v1103, %v1383
        %v1385 = vlaneseq
        %v1386 = vshrl.u32 %v1385, 7
        %v1387 = vsub.s32 0, %v1386
        %v1388 = vrot.slane %v1104, %v1387
        %v1389 = vlaneseq
        %v1390 = vshrl.u32 %v1389, 7
        %v1391 = vsub.s32 0, %v1390
        %v1392 = vrot.slane %v1105, %v1391
        %v1393 = vlaneseq
        %v1394 = vshrl.u32 %v1393, 7
        %v1395 = vsub.s32 0, %v1394
        %v1396 = vrot.slane %v1106, %v1395
        %v1397 = vlaneseq
        %v1398 = vshrl.u32 %v1397, 7
        %v1399 = vsub.s32 0, %v1398
        %v1400 = vrot.slane %v1107, %v1399
        %v1401 = vlaneseq
        %v1402 = vshrl.u32 %v1401, 7
        %v1403 = vsub.s32 0, %v1402
        %v1404 = vrot.slane %v1108, %v1403
        %v1405 = vlaneseq
        %v1406 = vshrl.u32 %v1405, 7
        %v1407 = vsub.s32 0, %v1406
        %v1408 = vrot.slane %v1109, %v1407
        %v1409 = vlaneseq
        %v1410 = vshrl.u32 %v1409, 7
        %v1411 = vsub.s32 0, %v1410
        %v1412 = vrot.slane %v1110, %v1411
        %v1413 = vlaneseq
        %v1414 = vshrl.u32 %v1413, 7
        %v1415 = vsub.s32 0, %v1414
        %v1416 = vrot.slane %v1111, %v1415
        %v1417 = vlaneseq
        %v1418 = vshrl.u32 %v1417, 7
        %v1419 = vsub.s32 0, %v1418
        %v1420 = vrot.slane %v1112, %v1419
        %v1421 = vlaneseq
        %v1422 = vshrl.u32 %v1421, 7
        %v1423 = vsub.s32 0, %v1422
        %v1424 = vrot.slane %v1113, %v1423
        %v1425 = vlaneseq
        %v1426 = vshrl.u32 %v1425, 7
        %v1427 = vsub.s32 0, %v1426
        %v1428 = vrot.slane %v1114, %v1427
        %v1429 = vlaneseq
        %v1430 = vshrl.u32 %v1429, 7
        %v1431 = vsub.s32 0, %v1430
        %v1432 = vrot.slane %v1115, %v1431
        %v1433 = vlaneseq
        %v1434 = vshrl.u32 %v1433, 7
        %v1435 = vsub.s32 0, %v1434
        %v1436 = vrot.slane %v1116, %v1435
        %vm1437 = vcmask 1041409
        %v1438 = vsel %vm1437, %v1188, %v1184
        %vm1439 = vcmask 1042434
        %v1440 = vsel %vm1439, %v1192, %v1438
        %vm1441 = vcmask 1043459
        %v1442 = vsel %vm1441, %v1196, %v1440
        %vm1443 = vcmask 1044484
        %v1444 = vsel %vm1443, %v1200, %v1442
        %vm1445 = vcmask 1045509
        %v1446 = vsel %vm1445, %v1204, %v1444
        %vm1447 = vcmask 1046534
        %v1448 = vsel %vm1447, %v1208, %v1446
        %vm1449 = vcmask 1047559
        %v1450 = vsel %vm1449, %v1212, %v1448
        %v1451 = vsel %vm1437, %v1220, %v1216
        %v1452 = vsel %vm1439, %v1224, %v1451
        %v1453 = vsel %vm1441, %v1228, %v1452
        %v1454 = vsel %vm1443, %v1232, %v1453
        %v1455 = vsel %vm1445, %v1236, %v1454
        %v1456 = vsel %vm1447, %v1240, %v1455
        %v1457 = vsel %vm1449, %v1244, %v1456
        %v1458 = vsel %vm1437, %v1252, %v1248
        %v1459 = vsel %vm1439, %v1256, %v1458
        %v1460 = vsel %vm1441, %v1260, %v1459
        %v1461 = vsel %vm1443, %v1264, %v1460
        %v1462 = vsel %vm1445, %v1268, %v1461
        %v1463 = vsel %vm1447, %v1272, %v1462
        %v1464 = vsel %vm1449, %v1276, %v1463
        %v1465 = vsel %vm1437, %v1284, %v1280
        %v1466 = vsel %vm1439, %v1288, %v1465
        %v1467 = vsel %vm1441, %v1292, %v1466
        %v1468 = vsel %vm1443, %v1296, %v1467
        %v1469 = vsel %vm1445, %v1300, %v1468
        %v1470 = vsel %vm1447, %v1304, %v1469
        %v1471 = vsel %vm1449, %v1308, %v1470
        %v1472 = vsel %vm1437, %v1316, %v1312
        %v1473 = vsel %vm1439, %v1320, %v1472
        %v1474 = vsel %vm1441, %v1324, %v1473
        %v1475 = vsel %vm1443, %v1328, %v1474
        %v1476 = vsel %vm1445, %v1332, %v1475
        %v1477 = vsel %vm1447, %v1336, %v1476
        %v1478 = vsel %vm1449, %v1340, %v1477
        %v1479 = vsel %vm1437, %v1348, %v1344
        %v1480 = vsel %vm1439, %v1352, %v1479
        %v1481 = vsel %vm1441, %v1356, %v1480
        %v1482 = vsel %vm1443, %v1360, %v1481
        %v1483 = vsel %vm1445, %v1364, %v1482
        %v1484 = vsel %vm1447, %v1368, %v1483
        %v1485 = vsel %vm1449, %v1372, %v1484
        %v1486 = vsel %vm1437, %v1380, %v1376
        %v1487 = vsel %vm1439, %v1384, %v1486
        %v1488 = vsel %vm1441, %v1388, %v1487
        %v1489 = vsel %vm1443, %v1392, %v1488
        %v1490 = vsel %vm1445, %v1396, %v1489
        %v1491 = vsel %vm1447, %v1400, %v1490
        %v1492 = vsel %vm1449, %v1404, %v1491
        %v1493 = vsel %vm1437, %v1412, %v1408
        %v1494 = vsel %vm1439, %v1416, %v1493
        %v1495 = vsel %vm1441, %v1420, %v1494
        %v1496 = vsel %vm1443, %v1424, %v1495
        %v1497 = vsel %vm1445, %v1428, %v1496
        %v1498 = vsel %vm1447, %v1432, %v1497
        %v1499 = vsel %vm1449, %v1436, %v1498
        %s1508 = scalar_lea.vmem [#allocation2], 16
        %vm1509 = vcmask 31744
        %1510 = vst.msk [vmem:[%s1508 + $0x1] sm:$0xff] %vm1509, %v1450
        %1511 = vst.msk [vmem:[%s1508 + $0x11] sm:$0xff] %vm1509, %v1457
        %1512 = vst.msk [vmem:[%s1508 + $0x21] sm:$0xff] %vm1509, %v1464
        %1513 = vst.msk [vmem:[%s1508 + $0x31] sm:$0xff] %vm1509, %v1471
        %1514 = vst.msk [vmem:[%s1508 + $0x41] sm:$0xff] %vm1509, %v1478
        %1515 = vst.msk [vmem:[%s1508 + $0x51] sm:$0xff] %vm1509, %v1485
        %1516 = vst.msk [vmem:[%s1508 + $0x61] sm:$0xff] %vm1509, %v1492
        %1517 = vst.msk [vmem:[%s1508 + $0x71] sm:$0xff] %vm1509, %v1499
        %v1518 = vld [vmem:[#allocation2] sm:$0xff]
        %v1519 = vld [vmem:[#allocation2 + $0x10] sm:$0xff]
        %v1520 = vld [vmem:[#allocation2 + $0x20] sm:$0xff]
        %v1521 = vld [vmem:[#allocation2 + $0x30] sm:$0xff]
        %v1522 = vld [vmem:[#allocation2 + $0x40] sm:$0xff]
        %v1523 = vld [vmem:[#allocation2 + $0x50] sm:$0xff]
        %v1524 = vld [vmem:[#allocation2 + $0x60] sm:$0xff]
        %v1525 = vld [vmem:[#allocation2 + $0x70] sm:$0xff]
        %1526 = vst.msk [vmem:[#allocation3] sm:$0xff] %vm1509, %v1518
        %1527 = vst.msk [vmem:[#allocation3 + $0x8] sm:$0xff] %vm1509, %v1519
        %1528 = vst.msk [vmem:[#allocation3 + $0x10] sm:$0xff] %vm1509, %v1520
        %1529 = vst.msk [vmem:[#allocation3 + $0x18] sm:$0xff] %vm1509, %v1521
        %1530 = vst.msk [vmem:[#allocation3 + $0x20] sm:$0xff] %vm1509, %v1522
        %1531 = vst.msk [vmem:[#allocation3 + $0x28] sm:$0xff] %vm1509, %v1523
        %1532 = vst.msk [vmem:[#allocation3 + $0x30] sm:$0xff] %vm1509, %v1524
        %1533 = vst.msk [vmem:[#allocation3 + $0x38] sm:$0xff] %vm1509, %v1525
        %v1534 = vld [vmem:[#allocation2 + $0x1] sm:$0xff]
        %v1535 = vld [vmem:[#allocation2 + $0x11] sm:$0xff]
        %v1536 = vld [vmem:[#allocation2 + $0x21] sm:$0xff]
        %v1537 = vld [vmem:[#allocation2 + $0x31] sm:$0xff]
        %v1538 = vld [vmem:[#allocation2 + $0x41] sm:$0xff]
        %v1539 = vld [vmem:[#allocation2 + $0x51] sm:$0xff]
        %v1540 = vld [vmem:[#allocation2 + $0x61] sm:$0xff]
        %v1541 = vld [vmem:[#allocation2 + $0x71] sm:$0xff]
        %1550 = vrot.lane.b32.xlu0 %v1534, 4
        %v1551 = vpop.permute.xlu0 %1550
        %1552 = vrot.lane.b32.xlu0 %v1535, 4
        %v1553 = vpop.permute.xlu0 %1552
        %1554 = vrot.lane.b32.xlu0 %v1536, 4
        %v1555 = vpop.permute.xlu0 %1554
        %1556 = vrot.lane.b32.xlu0 %v1537, 4
        %v1557 = vpop.permute.xlu0 %1556
        %1558 = vrot.lane.b32.xlu0 %v1538, 4
        %v1559 = vpop.permute.xlu0 %1558
        %1560 = vrot.lane.b32.xlu0 %v1539, 4
        %v1561 = vpop.permute.xlu0 %1560
        %1562 = vrot.lane.b32.xlu0 %v1540, 4
        %v1563 = vpop.permute.xlu0 %1562
        %1564 = vrot.lane.b32.xlu0 %v1541, 4
        %v1565 = vpop.permute.xlu0 %1564
        %vm1574 = vcmask 64544
        %1575 = vst.msk [vmem:[#allocation3] sm:$0xff] %vm1574, %v1551
        %1576 = vst.msk [vmem:[#allocation3 + $0x8] sm:$0xff] %vm1574, %v1553
        %1577 = vst.msk [vmem:[#allocation3 + $0x10] sm:$0xff] %vm1574, %v1555
        %1578 = vst.msk [vmem:[#allocation3 + $0x18] sm:$0xff] %vm1574, %v1557
        %1579 = vst.msk [vmem:[#allocation3 + $0x20] sm:$0xff] %vm1574, %v1559
        %1580 = vst.msk [vmem:[#allocation3 + $0x28] sm:$0xff] %vm1574, %v1561
        %1581 = vst.msk [vmem:[#allocation3 + $0x30] sm:$0xff] %vm1574, %v1563
        %1582 = vst.msk [vmem:[#allocation3 + $0x38] sm:$0xff] %vm1574, %v1565
        %v1583 = vld [vmem:[#allocation2 + $0x2] sm:$0xff]
        %v1584 = vld [vmem:[#allocation2 + $0x12] sm:$0xff]
        %v1585 = vld [vmem:[#allocation2 + $0x22] sm:$0xff]
        %v1586 = vld [vmem:[#allocation2 + $0x32] sm:$0xff]
        %v1587 = vld [vmem:[#allocation2 + $0x42] sm:$0xff]
        %v1588 = vld [vmem:[#allocation2 + $0x52] sm:$0xff]
        %v1589 = vld [vmem:[#allocation2 + $0x62] sm:$0xff]
        %v1590 = vld [vmem:[#allocation2 + $0x72] sm:$0xff]
        %1599 = vrot.lane.b32.xlu0 %v1583, 8
        %v1600 = vpop.permute.xlu0 %1599
        %1601 = vrot.lane.b32.xlu0 %v1584, 8
        %v1602 = vpop.permute.xlu0 %1601
        %1603 = vrot.lane.b32.xlu0 %v1585, 8
        %v1604 = vpop.permute.xlu0 %1603
        %1605 = vrot.lane.b32.xlu0 %v1586, 8
        %v1606 = vpop.permute.xlu0 %1605
        %1607 = vrot.lane.b32.xlu0 %v1587, 8
        %v1608 = vpop.permute.xlu0 %1607
        %1609 = vrot.lane.b32.xlu0 %v1588, 8
        %v1610 = vpop.permute.xlu0 %1609
        %1611 = vrot.lane.b32.xlu0 %v1589, 8
        %v1612 = vpop.permute.xlu0 %1611
        %1613 = vrot.lane.b32.xlu0 %v1590, 8
        %v1614 = vpop.permute.xlu0 %1613
        %vm1623 = vcmask 97344
        %1624 = vst.msk [vmem:[#allocation3] sm:$0xff] %vm1623, %v1600
        %1625 = vst.msk [vmem:[#allocation3 + $0x8] sm:$0xff] %vm1623, %v1602
        %1626 = vst.msk [vmem:[#allocation3 + $0x10] sm:$0xff] %vm1623, %v1604
        %1627 = vst.msk [vmem:[#allocation3 + $0x18] sm:$0xff] %vm1623, %v1606
        %1628 = vst.msk [vmem:[#allocation3 + $0x20] sm:$0xff] %vm1623, %v1608
        %1629 = vst.msk [vmem:[#allocation3 + $0x28] sm:$0xff] %vm1623, %v1610
        %1630 = vst.msk [vmem:[#allocation3 + $0x30] sm:$0xff] %vm1623, %v1612
        %1631 = vst.msk [vmem:[#allocation3 + $0x38] sm:$0xff] %vm1623, %v1614
        %v1632 = vld [vmem:[%s1508] sm:$0xff]
        %v1633 = vld [vmem:[%s1508 + $0x10] sm:$0xff]
        %v1634 = vld [vmem:[%s1508 + $0x20] sm:$0xff]
        %v1635 = vld [vmem:[%s1508 + $0x30] sm:$0xff]
        %v1636 = vld [vmem:[%s1508 + $0x40] sm:$0xff]
        %v1637 = vld [vmem:[%s1508 + $0x50] sm:$0xff]
        %v1638 = vld [vmem:[%s1508 + $0x60] sm:$0xff]
        %v1639 = vld [vmem:[%s1508 + $0x70] sm:$0xff]
        %1648 = vrot.lane.b32.xlu0 %v1632, 12
        %v1649 = vpop.permute.xlu0 %1648
        %1650 = vrot.lane.b32.xlu0 %v1633, 12
        %v1651 = vpop.permute.xlu0 %1650
        %1652 = vrot.lane.b32.xlu0 %v1634, 12
        %v1653 = vpop.permute.xlu0 %1652
        %1654 = vrot.lane.b32.xlu0 %v1635, 12
        %v1655 = vpop.permute.xlu0 %1654
        %1656 = vrot.lane.b32.xlu0 %v1636, 12
        %v1657 = vpop.permute.xlu0 %1656
        %1658 = vrot.lane.b32.xlu0 %v1637, 12
        %v1659 = vpop.permute.xlu0 %1658
        %1660 = vrot.lane.b32.xlu0 %v1638, 12
        %v1661 = vpop.permute.xlu0 %1660
        %1662 = vrot.lane.b32.xlu0 %v1639, 12
        %v1663 = vpop.permute.xlu0 %1662
        %vm1672 = vcmask 130144
        %1673 = vst.msk [vmem:[#allocation3] sm:$0xff] %vm1672, %v1649
        %1674 = vst.msk [vmem:[#allocation3 + $0x8] sm:$0xff] %vm1672, %v1651
        %1675 = vst.msk [vmem:[#allocation3 + $0x10] sm:$0xff] %vm1672, %v1653
        %1676 = vst.msk [vmem:[#allocation3 + $0x18] sm:$0xff] %vm1672, %v1655
        %1677 = vst.msk [vmem:[#allocation3 + $0x20] sm:$0xff] %vm1672, %v1657
        %1678 = vst.msk [vmem:[#allocation3 + $0x28] sm:$0xff] %vm1672, %v1659
        %1679 = vst.msk [vmem:[#allocation3 + $0x30] sm:$0xff] %vm1672, %v1661
        %1680 = vst.msk [vmem:[#allocation3 + $0x38] sm:$0xff] %vm1672, %v1663
        %v1681 = vld [vmem:[%s1508 + $0x1] sm:$0xff]
        %v1682 = vld [vmem:[%s1508 + $0x11] sm:$0xff]
        %v1683 = vld [vmem:[%s1508 + $0x21] sm:$0xff]
        %v1684 = vld [vmem:[%s1508 + $0x31] sm:$0xff]
        %v1685 = vld [vmem:[%s1508 + $0x41] sm:$0xff]
        %v1686 = vld [vmem:[%s1508 + $0x51] sm:$0xff]
        %v1687 = vld [vmem:[%s1508 + $0x61] sm:$0xff]
        %v1688 = vld [vmem:[%s1508 + $0x71] sm:$0xff]
        %1697 = vrot.lane.b32.xlu0 %v1681, 16
        %v1698 = vpop.permute.xlu0 %1697
        %1699 = vrot.lane.b32.xlu0 %v1682, 16
        %v1700 = vpop.permute.xlu0 %1699
        %1701 = vrot.lane.b32.xlu0 %v1683, 16
        %v1702 = vpop.permute.xlu0 %1701
        %1703 = vrot.lane.b32.xlu0 %v1684, 16
        %v1704 = vpop.permute.xlu0 %1703
        %1705 = vrot.lane.b32.xlu0 %v1685, 16
        %v1706 = vpop.permute.xlu0 %1705
        %1707 = vrot.lane.b32.xlu0 %v1686, 16
        %v1708 = vpop.permute.xlu0 %1707
        %1709 = vrot.lane.b32.xlu0 %v1687, 16
        %v1710 = vpop.permute.xlu0 %1709
        %1711 = vrot.lane.b32.xlu0 %v1688, 16
        %v1712 = vpop.permute.xlu0 %1711
        %vm1721 = vcmask 162944
        %1722 = vst.msk [vmem:[#allocation3] sm:$0xff] %vm1721, %v1698
        %1723 = vst.msk [vmem:[#allocation3 + $0x8] sm:$0xff] %vm1721, %v1700
        %1724 = vst.msk [vmem:[#allocation3 + $0x10] sm:$0xff] %vm1721, %v1702
        %1725 = vst.msk [vmem:[#allocation3 + $0x18] sm:$0xff] %vm1721, %v1704
        %1726 = vst.msk [vmem:[#allocation3 + $0x20] sm:$0xff] %vm1721, %v1706
        %1727 = vst.msk [vmem:[#allocation3 + $0x28] sm:$0xff] %vm1721, %v1708
        %1728 = vst.msk [vmem:[#allocation3 + $0x30] sm:$0xff] %vm1721, %v1710
        %1729 = vst.msk [vmem:[#allocation3 + $0x38] sm:$0xff] %vm1721, %v1712
        %v1730 = vld [vmem:[%s1508 + $0x2] sm:$0xff]
        %v1731 = vld [vmem:[%s1508 + $0x12] sm:$0xff]
        %v1732 = vld [vmem:[%s1508 + $0x22] sm:$0xff]
        %v1733 = vld [vmem:[%s1508 + $0x32] sm:$0xff]
        %v1734 = vld [vmem:[%s1508 + $0x42] sm:$0xff]
        %v1735 = vld [vmem:[%s1508 + $0x52] sm:$0xff]
        %v1736 = vld [vmem:[%s1508 + $0x62] sm:$0xff]
        %v1737 = vld [vmem:[%s1508 + $0x72] sm:$0xff]
        %1746 = vrot.lane.b32.xlu0 %v1730, 20
        %v1747 = vpop.permute.xlu0 %1746
        %1748 = vrot.lane.b32.xlu0 %v1731, 20
        %v1749 = vpop.permute.xlu0 %1748
        %1750 = vrot.lane.b32.xlu0 %v1732, 20
        %v1751 = vpop.permute.xlu0 %1750
        %1752 = vrot.lane.b32.xlu0 %v1733, 20
        %v1753 = vpop.permute.xlu0 %1752
        %1754 = vrot.lane.b32.xlu0 %v1734, 20
        %v1755 = vpop.permute.xlu0 %1754
        %1756 = vrot.lane.b32.xlu0 %v1735, 20
        %v1757 = vpop.permute.xlu0 %1756
        %1758 = vrot.lane.b32.xlu0 %v1736, 20
        %v1759 = vpop.permute.xlu0 %1758
        %1760 = vrot.lane.b32.xlu0 %v1737, 20
        %v1761 = vpop.permute.xlu0 %1760
        %vm1770 = vcmask 195744
        %1771 = vst.msk [vmem:[#allocation3] sm:$0xff] %vm1770, %v1747
        %1772 = vst.msk [vmem:[#allocation3 + $0x8] sm:$0xff] %vm1770, %v1749
        %1773 = vst.msk [vmem:[#allocation3 + $0x10] sm:$0xff] %vm1770, %v1751
        %1774 = vst.msk [vmem:[#allocation3 + $0x18] sm:$0xff] %vm1770, %v1753
        %1775 = vst.msk [vmem:[#allocation3 + $0x20] sm:$0xff] %vm1770, %v1755
        %1776 = vst.msk [vmem:[#allocation3 + $0x28] sm:$0xff] %vm1770, %v1757
        %1777 = vst.msk [vmem:[#allocation3 + $0x30] sm:$0xff] %vm1770, %v1759
        %1778 = vst.msk [vmem:[#allocation3 + $0x38] sm:$0xff] %vm1770, %v1761
        %s1779 = scalar_lea.vmem [#allocation2], 32
        %v1780 = vld [vmem:[%s1779] sm:$0xff]
        %v1781 = vld [vmem:[%s1779 + $0x10] sm:$0xff]
        %v1782 = vld [vmem:[%s1779 + $0x20] sm:$0xff]
        %v1783 = vld [vmem:[%s1779 + $0x30] sm:$0xff]
        %v1784 = vld [vmem:[%s1779 + $0x40] sm:$0xff]
        %v1785 = vld [vmem:[%s1779 + $0x50] sm:$0xff]
        %v1786 = vld [vmem:[%s1779 + $0x60] sm:$0xff]
        %v1787 = vld [vmem:[%s1779 + $0x70] sm:$0xff]
        %1796 = vrot.lane.b32.xlu0 %v1780, 24
        %v1797 = vpop.permute.xlu0 %1796
        %1798 = vrot.lane.b32.xlu0 %v1781, 24
        %v1799 = vpop.permute.xlu0 %1798
        %1800 = vrot.lane.b32.xlu0 %v1782, 24
        %v1801 = vpop.permute.xlu0 %1800
        %1802 = vrot.lane.b32.xlu0 %v1783, 24
        %v1803 = vpop.permute.xlu0 %1802
        %1804 = vrot.lane.b32.xlu0 %v1784, 24
        %v1805 = vpop.permute.xlu0 %1804
        %1806 = vrot.lane.b32.xlu0 %v1785, 24
        %v1807 = vpop.permute.xlu0 %1806
        %1808 = vrot.lane.b32.xlu0 %v1786, 24
        %v1809 = vpop.permute.xlu0 %1808
        %1810 = vrot.lane.b32.xlu0 %v1787, 24
        %v1811 = vpop.permute.xlu0 %1810
        %vm1820 = vcmask 228544
        %1821 = vst.msk [vmem:[#allocation3] sm:$0xff] %vm1820, %v1797
        %1822 = vst.msk [vmem:[#allocation3 + $0x8] sm:$0xff] %vm1820, %v1799
        %1823 = vst.msk [vmem:[#allocation3 + $0x10] sm:$0xff] %vm1820, %v1801
        %1824 = vst.msk [vmem:[#allocation3 + $0x18] sm:$0xff] %vm1820, %v1803
        %1825 = vst.msk [vmem:[#allocation3 + $0x20] sm:$0xff] %vm1820, %v1805
        %1826 = vst.msk [vmem:[#allocation3 + $0x28] sm:$0xff] %vm1820, %v1807
        %1827 = vst.msk [vmem:[#allocation3 + $0x30] sm:$0xff] %vm1820, %v1809
        %1828 = vst.msk [vmem:[#allocation3 + $0x38] sm:$0xff] %vm1820, %v1811
        %v1829 = vld [vmem:[%s1779 + $0x1] sm:$0xff]
        %v1830 = vld [vmem:[%s1779 + $0x11] sm:$0xff]
        %v1831 = vld [vmem:[%s1779 + $0x21] sm:$0xff]
        %v1832 = vld [vmem:[%s1779 + $0x31] sm:$0xff]
        %v1833 = vld [vmem:[%s1779 + $0x41] sm:$0xff]
        %v1834 = vld [vmem:[%s1779 + $0x51] sm:$0xff]
        %v1835 = vld [vmem:[%s1779 + $0x61] sm:$0xff]
        %v1836 = vld [vmem:[%s1779 + $0x71] sm:$0xff]
        %1845 = vrot.lane.b32.xlu0 %v1829, 28
        %v1846 = vpop.permute.xlu0 %1845
        %1847 = vrot.lane.b32.xlu0 %v1830, 28
        %v1848 = vpop.permute.xlu0 %1847
        %1849 = vrot.lane.b32.xlu0 %v1831, 28
        %v1850 = vpop.permute.xlu0 %1849
        %1851 = vrot.lane.b32.xlu0 %v1832, 28
        %v1852 = vpop.permute.xlu0 %1851
        %1853 = vrot.lane.b32.xlu0 %v1833, 28
        %v1854 = vpop.permute.xlu0 %1853
        %1855 = vrot.lane.b32.xlu0 %v1834, 28
        %v1856 = vpop.permute.xlu0 %1855
        %1857 = vrot.lane.b32.xlu0 %v1835, 28
        %v1858 = vpop.permute.xlu0 %1857
        %1859 = vrot.lane.b32.xlu0 %v1836, 28
        %v1860 = vpop.permute.xlu0 %1859
        %vm1869 = vcmask 261344
        %1870 = vst.msk [vmem:[#allocation3] sm:$0xff] %vm1869, %v1846
        %1871 = vst.msk [vmem:[#allocation3 + $0x8] sm:$0xff] %vm1869, %v1848
        %1872 = vst.msk [vmem:[#allocation3 + $0x10] sm:$0xff] %vm1869, %v1850
        %1873 = vst.msk [vmem:[#allocation3 + $0x18] sm:$0xff] %vm1869, %v1852
        %1874 = vst.msk [vmem:[#allocation3 + $0x20] sm:$0xff] %vm1869, %v1854
        %1875 = vst.msk [vmem:[#allocation3 + $0x28] sm:$0xff] %vm1869, %v1856
        %1876 = vst.msk [vmem:[#allocation3 + $0x30] sm:$0xff] %vm1869, %v1858
        %1877 = vst.msk [vmem:[#allocation3 + $0x38] sm:$0xff] %vm1869, %v1860
        %v1878 = vld [vmem:[%s1779 + $0x2] sm:$0xff]
        %v1879 = vld [vmem:[%s1779 + $0x12] sm:$0xff]
        %v1880 = vld [vmem:[%s1779 + $0x22] sm:$0xff]
        %v1881 = vld [vmem:[%s1779 + $0x32] sm:$0xff]
        %v1882 = vld [vmem:[%s1779 + $0x42] sm:$0xff]
        %v1883 = vld [vmem:[%s1779 + $0x52] sm:$0xff]
        %v1884 = vld [vmem:[%s1779 + $0x62] sm:$0xff]
        %v1885 = vld [vmem:[%s1779 + $0x72] sm:$0xff]
        %1894 = vrot.lane.b32.xlu0 %v1878, 32
        %v1895 = vpop.permute.xlu0 %1894
        %1896 = vrot.lane.b32.xlu0 %v1879, 32
        %v1897 = vpop.permute.xlu0 %1896
        %1898 = vrot.lane.b32.xlu0 %v1880, 32
        %v1899 = vpop.permute.xlu0 %1898
        %1900 = vrot.lane.b32.xlu0 %v1881, 32
        %v1901 = vpop.permute.xlu0 %1900
        %1902 = vrot.lane.b32.xlu0 %v1882, 32
        %v1903 = vpop.permute.xlu0 %1902
        %1904 = vrot.lane.b32.xlu0 %v1883, 32
        %v1905 = vpop.permute.xlu0 %1904
        %1906 = vrot.lane.b32.xlu0 %v1884, 32
        %v1907 = vpop.permute.xlu0 %1906
        %1908 = vrot.lane.b32.xlu0 %v1885, 32
        %v1909 = vpop.permute.xlu0 %1908
        %vm1918 = vcmask 294144
        %1919 = vst.msk [vmem:[#allocation3] sm:$0xff] %vm1918, %v1895
        %1920 = vst.msk [vmem:[#allocation3 + $0x8] sm:$0xff] %vm1918, %v1897
        %1921 = vst.msk [vmem:[#allocation3 + $0x10] sm:$0xff] %vm1918, %v1899
        %1922 = vst.msk [vmem:[#allocation3 + $0x18] sm:$0xff] %vm1918, %v1901
        %1923 = vst.msk [vmem:[#allocation3 + $0x20] sm:$0xff] %vm1918, %v1903
        %1924 = vst.msk [vmem:[#allocation3 + $0x28] sm:$0xff] %vm1918, %v1905
        %1925 = vst.msk [vmem:[#allocation3 + $0x30] sm:$0xff] %vm1918, %v1907
        %1926 = vst.msk [vmem:[#allocation3 + $0x38] sm:$0xff] %vm1918, %v1909
        %v1927 = vld [vmem:[#allocation3] sm:$0xff]
        %v1928 = vld [vmem:[#allocation3 + $0x8] sm:$0xff]
        %v1929 = vld [vmem:[#allocation3 + $0x10] sm:$0xff]
        %v1930 = vld [vmem:[#allocation3 + $0x18] sm:$0xff]
        %v1931 = vld [vmem:[#allocation3 + $0x20] sm:$0xff]
        %v1932 = vld [vmem:[#allocation3 + $0x28] sm:$0xff]
        %v1933 = vld [vmem:[#allocation3 + $0x30] sm:$0xff]
        %v1934 = vld [vmem:[#allocation3 + $0x38] sm:$0xff]
        %v1935 = vld [vmem:[%s1] sm:$0xff]
        %v1936 = vld [vmem:[%s1 + $0x8] sm:$0xff]
        %v1937 = vld [vmem:[%s1 + $0x10] sm:$0xff]
        %v1938 = vld [vmem:[%s1 + $0x18] sm:$0xff]
        %v1939 = vld [vmem:[%s1 + $0x20] sm:$0xf]
        %vm1940 = vcmask 293888
        %v1942 = vsel %vm1940, %v1927, 0
        %v1945 = vsel %vm1940, %v1928, 0
        %v1948 = vsel %vm1940, %v1929, 0
        %v1951 = vsel %vm1940, %v1930, 0
        %v1954 = vsel %vm1940, %v1931, 0
        %v1957 = vsel %vm1940, %v1932, 0
        %v1960 = vsel %vm1940, %v1933, 0
        %v1963 = vsel %vm1940, %v1934, 0
        %vm1965 = vcmask 1043456
        %v1967 = vsel %vm1965, %v1939, 0
        %1969 = vmatprep.subr.mxu0 0.0
        %1970 = vmatpush1.msra.mxu0 0.0
        %1971 = vmatprep.subr.mxu0 0.0
        %1972 = vmatpush1.msra.mxu0 0.0
        %1973 = vmatprep.subr.mxu0 0.0
        %1974 = vmatpush1.msra.mxu0 0.0
        %1975 = vmatprep.subr.mxu0 0.0
        %1976 = vmatpush1.msra.mxu0 0.0
        %1977 = vmatprep.subr.mxu0 0.0
        %1978 = vmatpush1.msra.mxu0 0.0
        %1979 = vmatprep.subr.mxu0 0.0
        %1980 = vmatpush1.msra.mxu0 0.0
        %1981 = vmatprep.subr.mxu0 0.0
        %1982 = vmatpush1.msra.mxu0 0.0
        %1983 = vmatprep.subr.mxu0 0.0
        %1984 = vmatpush1.msra.mxu0 0.0
        %1985 = vmatprep.subr.mxu0 0.0
        %1986 = vmatpush1.msra.mxu0 0.0
        %1987 = vmatprep.subr.mxu0 0.0
        %1988 = vmatpush1.msra.mxu0 0.0
        %1989 = vmatprep.subr.mxu0 0.0
        %1990 = vmatpush1.msra.mxu0 0.0
        %1991 = vmatprep.subr.mxu0 0.0
        %1992 = vmatpush1.msra.mxu0 %v1967
        %1993 = vmatprep.subr.mxu0 0.0
        %1994 = vmatpush1.msra.mxu0 %v1938
        %1995 = vmatprep.subr.mxu0 0.0
        %1996 = vmatpush1.msra.mxu0 %v1937
        %1997 = vmatprep.subr.mxu0 0.0
        %1998 = vmatpush1.msra.mxu0 %v1936
        %1999 = vmatprep.subr.mxu0 0.0
        %2000 = vmatpush1.msra.mxu0 %v1935
        %2001 = vmatprep.subr.mxu0 0.0
        %2002 = vmatpush2.msra.mxu0 0.0
        %2003 = vmatprep.subr.mxu0 0.0
        %2004 = vmatpush2.msra.mxu0 0.0
        %2005 = vmatprep.subr.mxu0 0.0
        %2006 = vmatpush2.msra.mxu0 0.0
        %2007 = vmatprep.subr.mxu0 0.0
        %2008 = vmatpush2.msra.mxu0 0.0
        %2009 = vmatprep.subr.mxu0 0.0
        %2010 = vmatpush2.msra.mxu0 0.0
        %2011 = vmatprep.subr.mxu0 0.0
        %2012 = vmatpush2.msra.mxu0 0.0
        %2013 = vmatprep.subr.mxu0 0.0
        %2014 = vmatpush2.msra.mxu0 0.0
        %2015 = vmatprep.subr.mxu0 0.0
        %2016 = vmatpush2.msra.mxu0 0.0
        %2017 = vmatprep.subr.mxu0 0.0
        %2018 = vmatpush2.msra.mxu0 0.0
        %2019 = vmatprep.subr.mxu0 0.0
        %2020 = vmatpush2.msra.mxu0 0.0
        %2021 = vmatprep.subr.mxu0 0.0
        %2022 = vmatpush2.msra.mxu0 0.0
        %2023 = vmatprep.subr.mxu0 0.0
        %2024 = vmatpush2.msra.mxu0 0.0
        %2025 = vmatprep.subr.mxu0 0.0
        %2026 = vmatpush2.msra.mxu0 0.0
        %2027 = vmatprep.subr.mxu0 0.0
        %2028 = vmatpush2.msra.mxu0 0.0
        %2029 = vmatprep.subr.mxu0 0.0
        %2030 = vmatpush2.msra.mxu0 0.0
        %2031 = vmatprep.subr.mxu0 0.0
        %2032 = vmatpush2.msra.mxu0 0.0
        %2033 = vmatprep.mubr.f32.mxu0 0.0
        %2034 = vmatmul.mubr.f32.gmra.mxu0 %v1942
        %v2035 = vpop.f32.mrf.mxu0
        %v2036 = vadd.f32 0.0, %v2035
        %v2037 = vpop.f32.mrf.mxu0
        %2038 = vmatprep.mubr.f32.mxu0 0.0
        %2039 = vmatmul.mubr.f32.gmra.mxu0 %v1945
        %v2040 = vpop.f32.mrf.mxu0
        %v2041 = vadd.f32 0.0, %v2040
        %v2042 = vpop.f32.mrf.mxu0
        %2043 = vmatprep.mubr.f32.mxu0 0.0
        %2044 = vmatmul.mubr.f32.gmra.mxu0 %v1948
        %v2045 = vpop.f32.mrf.mxu0
        %v2046 = vadd.f32 0.0, %v2045
        %v2047 = vpop.f32.mrf.mxu0
        %2048 = vmatprep.mubr.f32.mxu0 0.0
        %2049 = vmatmul.mubr.f32.gmra.mxu0 %v1951
        %v2050 = vpop.f32.mrf.mxu0
        %v2051 = vadd.f32 0.0, %v2050
        %v2052 = vpop.f32.mrf.mxu0
        %2053 = vmatprep.mubr.f32.mxu0 0.0
        %2054 = vmatmul.mubr.f32.gmra.mxu0 %v1954
        %v2055 = vpop.f32.mrf.mxu0
        %v2056 = vadd.f32 0.0, %v2055
        %v2057 = vpop.f32.mrf.mxu0
        %2058 = vmatprep.mubr.f32.mxu0 0.0
        %2059 = vmatmul.mubr.f32.gmra.mxu0 %v1957
        %v2060 = vpop.f32.mrf.mxu0
        %v2061 = vadd.f32 0.0, %v2060
        %v2062 = vpop.f32.mrf.mxu0
        %2063 = vmatprep.mubr.f32.mxu0 0.0
        %2064 = vmatmul.mubr.f32.gmra.mxu0 %v1960
        %v2065 = vpop.f32.mrf.mxu0
        %v2066 = vadd.f32 0.0, %v2065
        %v2067 = vpop.f32.mrf.mxu0
        %2068 = vmatprep.mubr.f32.mxu0 0.0
        %2069 = vmatmul.mubr.f32.gmra.mxu0 %v1963
        %v2070 = vpop.f32.mrf.mxu0
        %v2071 = vadd.f32 0.0, %v2070
        %v2072 = vpop.f32.mrf.mxu0
        %2073 = vdwg.mxu0
        %v2074 = vsel %vm1509, %v2036, 0.0
        %v2075 = vsel %vm1509, %v2041, 0.0
        %v2076 = vadd.f32 %v2074, %v2075
        %v2077 = vsel %vm1509, %v2046, 0.0
        %v2078 = vadd.f32 %v2076, %v2077
        %v2079 = vsel %vm1509, %v2051, 0.0
        %v2080 = vadd.f32 %v2078, %v2079
        %v2081 = vsel %vm1509, %v2056, 0.0
        %v2082 = vadd.f32 %v2080, %v2081
        %v2083 = vsel %vm1509, %v2061, 0.0
        %v2084 = vadd.f32 %v2082, %v2083
        %v2085 = vsel %vm1509, %v2066, 0.0
        %v2086 = vadd.f32 %v2084, %v2085
        %v2087 = vsel %vm1509, %v2071, 0.0
        %v2088 = vadd.f32 %v2086, %v2087
        %2089 = vadd.xlane.f32.xlu0 %v2088
        %v2090 = vpop.xlane.xlu0 %2089
        %v2091 = vrot.slane %v2090, 4
        %v2092 = vadd.f32 %v2090, %v2091
        %v2093 = vrot.slane %v2092, 2
        %v2094 = vadd.f32 %v2092, %v2093
        %v2095 = vrot.slane %v2094, 1
        %v2096 = vadd.f32 %v2094, %v2095
        %s2097 = vtos %v2096
        %v2098 = vrcp.pop 256.0
        %s2099 = vtos %v2098
        %s2100 = smul.f32 %s2097, %s2099
        %v2101 = vstv %s2100
        %v2102 = vsub.f32 %v2036, %v2101
        %v2103 = vsub.f32 %v2041, %v2101
        %v2104 = vsub.f32 %v2046, %v2101
        %v2105 = vsub.f32 %v2051, %v2101
        %v2106 = vsub.f32 %v2056, %v2101
        %v2107 = vsub.f32 %v2061, %v2101
        %v2108 = vsub.f32 %v2066, %v2101
        %v2109 = vsub.f32 %v2071, %v2101
        %v2110 = vmul.f32 %v2102, %v2102
        %v2111 = vmul.f32 %v2103, %v2103
        %v2112 = vmul.f32 %v2104, %v2104
        %v2113 = vmul.f32 %v2105, %v2105
        %v2114 = vmul.f32 %v2106, %v2106
        %v2115 = vmul.f32 %v2107, %v2107
        %v2116 = vmul.f32 %v2108, %v2108
        %v2117 = vmul.f32 %v2109, %v2109
        %v2118 = vsel %vm1509, %v2110, 0.0
        %v2119 = vsel %vm1509, %v2111, 0.0
        %v2120 = vadd.f32 %v2118, %v2119
        %v2121 = vsel %vm1509, %v2112, 0.0
        %v2122 = vadd.f32 %v2120, %v2121
        %v2123 = vsel %vm1509, %v2113, 0.0
        %v2124 = vadd.f32 %v2122, %v2123
        %v2125 = vsel %vm1509, %v2114, 0.0
        %v2126 = vadd.f32 %v2124, %v2125
        %v2127 = vsel %vm1509, %v2115, 0.0
        %v2128 = vadd.f32 %v2126, %v2127
        %v2129 = vsel %vm1509, %v2116, 0.0
        %v2130 = vadd.f32 %v2128, %v2129
        %v2131 = vsel %vm1509, %v2117, 0.0
        %v2132 = vadd.f32 %v2130, %v2131
        %2133 = vadd.xlane.f32.xlu0 %v2132
        %v2134 = vpop.xlane.xlu0 %2133
        %v2135 = vrot.slane %v2134, 4
        %v2136 = vadd.f32 %v2134, %v2135
        %v2137 = vrot.slane %v2136, 2
        %v2138 = vadd.f32 %v2136, %v2137
        %v2139 = vrot.slane %v2138, 1
        %v2140 = vadd.f32 %v2138, %v2139
        %s2141 = vtos %v2140
        %v2142 = vrcp.pop 256.0
        %s2143 = vtos %v2142
        %s2144 = smul.f32 %s2141, %s2143
        %s2145 = sadd.f32 %s2144, 1e-05
        %v2146 = vstv %s2145
        %v2147 = vrsqrt.pop %v2146
        %s2148 = vtos %v2147
        %v2149 = vstv %s2148
        %v2150 = vmul.f32 %v2102, %v2149
        %v2151 = vmul.f32 %v2103, %v2149
        %v2152 = vmul.f32 %v2104, %v2149
        %v2153 = vmul.f32 %v2105, %v2149
        %v2154 = vmul.f32 %v2106, %v2149
        %v2155 = vmul.f32 %v2107, %v2149
        %v2156 = vmul.f32 %v2108, %v2149
        %v2157 = vmul.f32 %v2109, %v2149
        %v2158 = vld [vmem:[%s2] sm:$0x1]
        %v2160 = vlaneseq
        %v2161 = vshrl.u32 %v2160, 7
        %v2162 = vsub.s32 0, %v2161
        %v2163 = vrot.slane %v2158, %v2162
        %v2165 = vmul.f32 %v2150, %v2163
        %v2166 = vmul.f32 %v2151, %v2163
        %v2167 = vmul.f32 %v2152, %v2163
        %v2168 = vmul.f32 %v2153, %v2163
        %v2169 = vmul.f32 %v2154, %v2163
        %v2170 = vmul.f32 %v2155, %v2163
        %v2171 = vmul.f32 %v2156, %v2163
        %v2172 = vmul.f32 %v2157, %v2163
        %v2173 = vld [vmem:[%s3] sm:$0x1]
        %v2175 = vlaneseq
        %v2176 = vshrl.u32 %v2175, 7
        %v2177 = vsub.s32 0, %v2176
        %v2178 = vrot.slane %v2173, %v2177
        %v2180 = vadd.f32 %v2165, %v2178
        %v2181 = vadd.f32 %v2166, %v2178
        %v2182 = vadd.f32 %v2167, %v2178
        %v2183 = vadd.f32 %v2168, %v2178
        %v2184 = vadd.f32 %v2169, %v2178
        %v2185 = vadd.f32 %v2170, %v2178
        %v2186 = vadd.f32 %v2171, %v2178
        %v2187 = vadd.f32 %v2172, %v2178
        %v2188 = vmul.f32 %v2180, 0.5
        %v2189 = vmul.f32 %v2181, 0.5
        %v2190 = vmul.f32 %v2182, 0.5
        %v2191 = vmul.f32 %v2183, 0.5
        %v2192 = vmul.f32 %v2184, 0.5
        %v2193 = vmul.f32 %v2185, 0.5
        %v2194 = vmul.f32 %v2186, 0.5
        %v2195 = vmul.f32 %v2187, 0.5
        %v2196 = vmul.f32 %v2180, 0.70710677
        %v2197 = vmul.f32 %v2181, 0.70710677
        %v2198 = vmul.f32 %v2182, 0.70710677
        %v2199 = vmul.f32 %v2183, 0.70710677
        %v2200 = vmul.f32 %v2184, 0.70710677
        %v2201 = vmul.f32 %v2185, 0.70710677
        %v2202 = vmul.f32 %v2186, 0.70710677
        %v2203 = vmul.f32 %v2187, 0.70710677
        %v2204 = verf.f32.pop %v2196
        %v2205 = verf.f32.pop %v2197
        %v2206 = verf.f32.pop %v2198
        %v2207 = verf.f32.pop %v2199
        %v2208 = verf.f32.pop %v2200
        %v2209 = verf.f32.pop %v2201
        %v2210 = verf.f32.pop %v2202
        %v2211 = verf.f32.pop %v2203
        %v2212 = vadd.f32 %v2204, 1.0
        %v2213 = vadd.f32 %v2205, 1.0
        %v2214 = vadd.f32 %v2206, 1.0
        %v2215 = vadd.f32 %v2207, 1.0
        %v2216 = vadd.f32 %v2208, 1.0
        %v2217 = vadd.f32 %v2209, 1.0
        %v2218 = vadd.f32 %v2210, 1.0
        %v2219 = vadd.f32 %v2211, 1.0
        %v2220 = vmul.f32 %v2188, %v2212
        %v2221 = vmul.f32 %v2189, %v2213
        %v2222 = vmul.f32 %v2190, %v2214
        %v2223 = vmul.f32 %v2191, %v2215
        %v2224 = vmul.f32 %v2192, %v2216
        %v2225 = vmul.f32 %v2193, %v2217
        %v2226 = vmul.f32 %v2194, %v2218
        %v2227 = vmul.f32 %v2195, %v2219
        %2228 = vst.msk [vmem:[%s1508 + $0x1] sm:$0xff] %vm1509, %v2220
        %2229 = vst.msk [vmem:[%s1508 + $0x11] sm:$0xff] %vm1509, %v2221
        %2230 = vst.msk [vmem:[%s1508 + $0x21] sm:$0xff] %vm1509, %v2222
        %2231 = vst.msk [vmem:[%s1508 + $0x31] sm:$0xff] %vm1509, %v2223
        %2232 = vst.msk [vmem:[%s1508 + $0x41] sm:$0xff] %vm1509, %v2224
        %2233 = vst.msk [vmem:[%s1508 + $0x51] sm:$0xff] %vm1509, %v2225
        %2234 = vst.msk [vmem:[%s1508 + $0x61] sm:$0xff] %vm1509, %v2226
        %2235 = vst.msk [vmem:[%s1508 + $0x71] sm:$0xff] %vm1509, %v2227
        %v2236 = vld [vmem:[#allocation2] sm:$0xff]
        %v2237 = vld [vmem:[#allocation2 + $0x10] sm:$0xff]
        %v2238 = vld [vmem:[#allocation2 + $0x20] sm:$0xff]
        %v2239 = vld [vmem:[#allocation2 + $0x30] sm:$0xff]
        %v2240 = vld [vmem:[#allocation2 + $0x40] sm:$0xff]
        %v2241 = vld [vmem:[#allocation2 + $0x50] sm:$0xff]
        %v2242 = vld [vmem:[#allocation2 + $0x60] sm:$0xff]
        %v2243 = vld [vmem:[#allocation2 + $0x70] sm:$0xff]
        %2244 = vst.msk [vmem:[#allocation3] sm:$0xff] %vm1509, %v2236
        %2245 = vst.msk [vmem:[#allocation3 + $0x8] sm:$0xff] %vm1509, %v2237
        %2246 = vst.msk [vmem:[#allocation3 + $0x10] sm:$0xff] %vm1509, %v2238
        %2247 = vst.msk [vmem:[#allocation3 + $0x18] sm:$0xff] %vm1509, %v2239
        %2248 = vst.msk [vmem:[#allocation3 + $0x20] sm:$0xff] %vm1509, %v2240
        %2249 = vst.msk [vmem:[#allocation3 + $0x28] sm:$0xff] %vm1509, %v2241
        %2250 = vst.msk [vmem:[#allocation3 + $0x30] sm:$0xff] %vm1509, %v2242
        %2251 = vst.msk [vmem:[#allocation3 + $0x38] sm:$0xff] %vm1509, %v2243
        %v2252 = vld [vmem:[#allocation2 + $0x1] sm:$0xff]
        %v2253 = vld [vmem:[#allocation2 + $0x11] sm:$0xff]
        %v2254 = vld [vmem:[#allocation2 + $0x21] sm:$0xff]
        %v2255 = vld [vmem:[#allocation2 + $0x31] sm:$0xff]
        %v2256 = vld [vmem:[#allocation2 + $0x41] sm:$0xff]
        %v2257 = vld [vmem:[#allocation2 + $0x51] sm:$0xff]
        %v2258 = vld [vmem:[#allocation2 + $0x61] sm:$0xff]
        %v2259 = vld [vmem:[#allocation2 + $0x71] sm:$0xff]
        %2268 = vrot.lane.b32.xlu0 %v2252, 4
        %v2269 = vpop.permute.xlu0 %2268
        %2270 = vrot.lane.b32.xlu0 %v2253, 4
        %v2271 = vpop.permute.xlu0 %2270
        %2272 = vrot.lane.b32.xlu0 %v2254, 4
        %v2273 = vpop.permute.xlu0 %2272
        %2274 = vrot.lane.b32.xlu0 %v2255, 4
        %v2275 = vpop.permute.xlu0 %2274
        %2276 = vrot.lane.b32.xlu0 %v2256, 4
        %v2277 = vpop.permute.xlu0 %2276
        %2278 = vrot.lane.b32.xlu0 %v2257, 4
        %v2279 = vpop.permute.xlu0 %2278
        %2280 = vrot.lane.b32.xlu0 %v2258, 4
        %v2281 = vpop.permute.xlu0 %2280
        %2282 = vrot.lane.b32.xlu0 %v2259, 4
        %v2283 = vpop.permute.xlu0 %2282
        %2292 = vst.msk [vmem:[#allocation3] sm:$0xff] %vm1574, %v2269
        %2293 = vst.msk [vmem:[#allocation3 + $0x8] sm:$0xff] %vm1574, %v2271
        %2294 = vst.msk [vmem:[#allocation3 + $0x10] sm:$0xff] %vm1574, %v2273
        %2295 = vst.msk [vmem:[#allocation3 + $0x18] sm:$0xff] %vm1574, %v2275
        %2296 = vst.msk [vmem:[#allocation3 + $0x20] sm:$0xff] %vm1574, %v2277
        %2297 = vst.msk [vmem:[#allocation3 + $0x28] sm:$0xff] %vm1574, %v2279
        %2298 = vst.msk [vmem:[#allocation3 + $0x30] sm:$0xff] %vm1574, %v2281
        %2299 = vst.msk [vmem:[#allocation3 + $0x38] sm:$0xff] %vm1574, %v2283
        %v2300 = vld [vmem:[#allocation2 + $0x2] sm:$0xff]
        %v2301 = vld [vmem:[#allocation2 + $0x12] sm:$0xff]
        %v2302 = vld [vmem:[#allocation2 + $0x22] sm:$0xff]
        %v2303 = vld [vmem:[#allocation2 + $0x32] sm:$0xff]
        %v2304 = vld [vmem:[#allocation2 + $0x42] sm:$0xff]
        %v2305 = vld [vmem:[#allocation2 + $0x52] sm:$0xff]
        %v2306 = vld [vmem:[#allocation2 + $0x62] sm:$0xff]
        %v2307 = vld [vmem:[#allocation2 + $0x72] sm:$0xff]
        %2316 = vrot.lane.b32.xlu0 %v2300, 8
        %v2317 = vpop.permute.xlu0 %2316
        %2318 = vrot.lane.b32.xlu0 %v2301, 8
        %v2319 = vpop.permute.xlu0 %2318
        %2320 = vrot.lane.b32.xlu0 %v2302, 8
        %v2321 = vpop.permute.xlu0 %2320
        %2322 = vrot.lane.b32.xlu0 %v2303, 8
        %v2323 = vpop.permute.xlu0 %2322
        %2324 = vrot.lane.b32.xlu0 %v2304, 8
        %v2325 = vpop.permute.xlu0 %2324
        %2326 = vrot.lane.b32.xlu0 %v2305, 8
        %v2327 = vpop.permute.xlu0 %2326
        %2328 = vrot.lane.b32.xlu0 %v2306, 8
        %v2329 = vpop.permute.xlu0 %2328
        %2330 = vrot.lane.b32.xlu0 %v2307, 8
        %v2331 = vpop.permute.xlu0 %2330
        %2340 = vst.msk [vmem:[#allocation3] sm:$0xff] %vm1623, %v2317
        %2341 = vst.msk [vmem:[#allocation3 + $0x8] sm:$0xff] %vm1623, %v2319
        %2342 = vst.msk [vmem:[#allocation3 + $0x10] sm:$0xff] %vm1623, %v2321
        %2343 = vst.msk [vmem:[#allocation3 + $0x18] sm:$0xff] %vm1623, %v2323
        %2344 = vst.msk [vmem:[#allocation3 + $0x20] sm:$0xff] %vm1623, %v2325
        %2345 = vst.msk [vmem:[#allocation3 + $0x28] sm:$0xff] %vm1623, %v2327
        %2346 = vst.msk [vmem:[#allocation3 + $0x30] sm:$0xff] %vm1623, %v2329
        %2347 = vst.msk [vmem:[#allocation3 + $0x38] sm:$0xff] %vm1623, %v2331
        %v2348 = vld [vmem:[%s1508] sm:$0xff]
        %v2349 = vld [vmem:[%s1508 + $0x10] sm:$0xff]
        %v2350 = vld [vmem:[%s1508 + $0x20] sm:$0xff]
        %v2351 = vld [vmem:[%s1508 + $0x30] sm:$0xff]
        %v2352 = vld [vmem:[%s1508 + $0x40] sm:$0xff]
        %v2353 = vld [vmem:[%s1508 + $0x50] sm:$0xff]
        %v2354 = vld [vmem:[%s1508 + $0x60] sm:$0xff]
        %v2355 = vld [vmem:[%s1508 + $0x70] sm:$0xff]
        %2364 = vrot.lane.b32.xlu0 %v2348, 12
        %v2365 = vpop.permute.xlu0 %2364
        %2366 = vrot.lane.b32.xlu0 %v2349, 12
        %v2367 = vpop.permute.xlu0 %2366
        %2368 = vrot.lane.b32.xlu0 %v2350, 12
        %v2369 = vpop.permute.xlu0 %2368
        %2370 = vrot.lane.b32.xlu0 %v2351, 12
        %v2371 = vpop.permute.xlu0 %2370
        %2372 = vrot.lane.b32.xlu0 %v2352, 12
        %v2373 = vpop.permute.xlu0 %2372
        %2374 = vrot.lane.b32.xlu0 %v2353, 12
        %v2375 = vpop.permute.xlu0 %2374
        %2376 = vrot.lane.b32.xlu0 %v2354, 12
        %v2377 = vpop.permute.xlu0 %2376
        %2378 = vrot.lane.b32.xlu0 %v2355, 12
        %v2379 = vpop.permute.xlu0 %2378
        %2388 = vst.msk [vmem:[#allocation3] sm:$0xff] %vm1672, %v2365
        %2389 = vst.msk [vmem:[#allocation3 + $0x8] sm:$0xff] %vm1672, %v2367
        %2390 = vst.msk [vmem:[#allocation3 + $0x10] sm:$0xff] %vm1672, %v2369
        %2391 = vst.msk [vmem:[#allocation3 + $0x18] sm:$0xff] %vm1672, %v2371
        %2392 = vst.msk [vmem:[#allocation3 + $0x20] sm:$0xff] %vm1672, %v2373
        %2393 = vst.msk [vmem:[#allocation3 + $0x28] sm:$0xff] %vm1672, %v2375
        %2394 = vst.msk [vmem:[#allocation3 + $0x30] sm:$0xff] %vm1672, %v2377
        %2395 = vst.msk [vmem:[#allocation3 + $0x38] sm:$0xff] %vm1672, %v2379
        %v2396 = vld [vmem:[%s1508 + $0x1] sm:$0xff]
        %v2397 = vld [vmem:[%s1508 + $0x11] sm:$0xff]
        %v2398 = vld [vmem:[%s1508 + $0x21] sm:$0xff]
        %v2399 = vld [vmem:[%s1508 + $0x31] sm:$0xff]
        %v2400 = vld [vmem:[%s1508 + $0x41] sm:$0xff]
        %v2401 = vld [vmem:[%s1508 + $0x51] sm:$0xff]
        %v2402 = vld [vmem:[%s1508 + $0x61] sm:$0xff]
        %v2403 = vld [vmem:[%s1508 + $0x71] sm:$0xff]
        %2412 = vrot.lane.b32.xlu0 %v2396, 16
        %v2413 = vpop.permute.xlu0 %2412
        %2414 = vrot.lane.b32.xlu0 %v2397, 16
        %v2415 = vpop.permute.xlu0 %2414
        %2416 = vrot.lane.b32.xlu0 %v2398, 16
        %v2417 = vpop.permute.xlu0 %2416
        %2418 = vrot.lane.b32.xlu0 %v2399, 16
        %v2419 = vpop.permute.xlu0 %2418
        %2420 = vrot.lane.b32.xlu0 %v2400, 16
        %v2421 = vpop.permute.xlu0 %2420
        %2422 = vrot.lane.b32.xlu0 %v2401, 16
        %v2423 = vpop.permute.xlu0 %2422
        %2424 = vrot.lane.b32.xlu0 %v2402, 16
        %v2425 = vpop.permute.xlu0 %2424
        %2426 = vrot.lane.b32.xlu0 %v2403, 16
        %v2427 = vpop.permute.xlu0 %2426
        %2436 = vst.msk [vmem:[#allocation3] sm:$0xff] %vm1721, %v2413
        %2437 = vst.msk [vmem:[#allocation3 + $0x8] sm:$0xff] %vm1721, %v2415
        %2438 = vst.msk [vmem:[#allocation3 + $0x10] sm:$0xff] %vm1721, %v2417
        %2439 = vst.msk [vmem:[#allocation3 + $0x18] sm:$0xff] %vm1721, %v2419
        %2440 = vst.msk [vmem:[#allocation3 + $0x20] sm:$0xff] %vm1721, %v2421
        %2441 = vst.msk [vmem:[#allocation3 + $0x28] sm:$0xff] %vm1721, %v2423
        %2442 = vst.msk [vmem:[#allocation3 + $0x30] sm:$0xff] %vm1721, %v2425
        %2443 = vst.msk [vmem:[#allocation3 + $0x38] sm:$0xff] %vm1721, %v2427
        %v2444 = vld [vmem:[%s1508 + $0x2] sm:$0xff]
        %v2445 = vld [vmem:[%s1508 + $0x12] sm:$0xff]
        %v2446 = vld [vmem:[%s1508 + $0x22] sm:$0xff]
        %v2447 = vld [vmem:[%s1508 + $0x32] sm:$0xff]
        %v2448 = vld [vmem:[%s1508 + $0x42] sm:$0xff]
        %v2449 = vld [vmem:[%s1508 + $0x52] sm:$0xff]
        %v2450 = vld [vmem:[%s1508 + $0x62] sm:$0xff]
        %v2451 = vld [vmem:[%s1508 + $0x72] sm:$0xff]
        %2460 = vrot.lane.b32.xlu0 %v2444, 20
        %v2461 = vpop.permute.xlu0 %2460
        %2462 = vrot.lane.b32.xlu0 %v2445, 20
        %v2463 = vpop.permute.xlu0 %2462
        %2464 = vrot.lane.b32.xlu0 %v2446, 20
        %v2465 = vpop.permute.xlu0 %2464
        %2466 = vrot.lane.b32.xlu0 %v2447, 20
        %v2467 = vpop.permute.xlu0 %2466
        %2468 = vrot.lane.b32.xlu0 %v2448, 20
        %v2469 = vpop.permute.xlu0 %2468
        %2470 = vrot.lane.b32.xlu0 %v2449, 20
        %v2471 = vpop.permute.xlu0 %2470
        %2472 = vrot.lane.b32.xlu0 %v2450, 20
        %v2473 = vpop.permute.xlu0 %2472
        %2474 = vrot.lane.b32.xlu0 %v2451, 20
        %v2475 = vpop.permute.xlu0 %2474
        %2484 = vst.msk [vmem:[#allocation3] sm:$0xff] %vm1770, %v2461
        %2485 = vst.msk [vmem:[#allocation3 + $0x8] sm:$0xff] %vm1770, %v2463
        %2486 = vst.msk [vmem:[#allocation3 + $0x10] sm:$0xff] %vm1770, %v2465
        %2487 = vst.msk [vmem:[#allocation3 + $0x18] sm:$0xff] %vm1770, %v2467
        %2488 = vst.msk [vmem:[#allocation3 + $0x20] sm:$0xff] %vm1770, %v2469
        %2489 = vst.msk [vmem:[#allocation3 + $0x28] sm:$0xff] %vm1770, %v2471
        %2490 = vst.msk [vmem:[#allocation3 + $0x30] sm:$0xff] %vm1770, %v2473
        %2491 = vst.msk [vmem:[#allocation3 + $0x38] sm:$0xff] %vm1770, %v2475
        %v2492 = vld [vmem:[%s1779] sm:$0xff]
        %v2493 = vld [vmem:[%s1779 + $0x10] sm:$0xff]
        %v2494 = vld [vmem:[%s1779 + $0x20] sm:$0xff]
        %v2495 = vld [vmem:[%s1779 + $0x30] sm:$0xff]
        %v2496 = vld [vmem:[%s1779 + $0x40] sm:$0xff]
        %v2497 = vld [vmem:[%s1779 + $0x50] sm:$0xff]
        %v2498 = vld [vmem:[%s1779 + $0x60] sm:$0xff]
        %v2499 = vld [vmem:[%s1779 + $0x70] sm:$0xff]
        %2508 = vrot.lane.b32.xlu0 %v2492, 24
        %v2509 = vpop.permute.xlu0 %2508
        %2510 = vrot.lane.b32.xlu0 %v2493, 24
        %v2511 = vpop.permute.xlu0 %2510
        %2512 = vrot.lane.b32.xlu0 %v2494, 24
        %v2513 = vpop.permute.xlu0 %2512
        %2514 = vrot.lane.b32.xlu0 %v2495, 24
        %v2515 = vpop.permute.xlu0 %2514
        %2516 = vrot.lane.b32.xlu0 %v2496, 24
        %v2517 = vpop.permute.xlu0 %2516
        %2518 = vrot.lane.b32.xlu0 %v2497, 24
        %v2519 = vpop.permute.xlu0 %2518
        %2520 = vrot.lane.b32.xlu0 %v2498, 24
        %v2521 = vpop.permute.xlu0 %2520
        %2522 = vrot.lane.b32.xlu0 %v2499, 24
        %v2523 = vpop.permute.xlu0 %2522
        %2532 = vst.msk [vmem:[#allocation3] sm:$0xff] %vm1820, %v2509
        %2533 = vst.msk [vmem:[#allocation3 + $0x8] sm:$0xff] %vm1820, %v2511
        %2534 = vst.msk [vmem:[#allocation3 + $0x10] sm:$0xff] %vm1820, %v2513
        %2535 = vst.msk [vmem:[#allocation3 + $0x18] sm:$0xff] %vm1820, %v2515
        %2536 = vst.msk [vmem:[#allocation3 + $0x20] sm:$0xff] %vm1820, %v2517
        %2537 = vst.msk [vmem:[#allocation3 + $0x28] sm:$0xff] %vm1820, %v2519
        %2538 = vst.msk [vmem:[#allocation3 + $0x30] sm:$0xff] %vm1820, %v2521
        %2539 = vst.msk [vmem:[#allocation3 + $0x38] sm:$0xff] %vm1820, %v2523
        %v2540 = vld [vmem:[%s1779 + $0x1] sm:$0xff]
        %v2541 = vld [vmem:[%s1779 + $0x11] sm:$0xff]
        %v2542 = vld [vmem:[%s1779 + $0x21] sm:$0xff]
        %v2543 = vld [vmem:[%s1779 + $0x31] sm:$0xff]
        %v2544 = vld [vmem:[%s1779 + $0x41] sm:$0xff]
        %v2545 = vld [vmem:[%s1779 + $0x51] sm:$0xff]
        %v2546 = vld [vmem:[%s1779 + $0x61] sm:$0xff]
        %v2547 = vld [vmem:[%s1779 + $0x71] sm:$0xff]
        %2556 = vrot.lane.b32.xlu0 %v2540, 28
        %v2557 = vpop.permute.xlu0 %2556
        %2558 = vrot.lane.b32.xlu0 %v2541, 28
        %v2559 = vpop.permute.xlu0 %2558
        %2560 = vrot.lane.b32.xlu0 %v2542, 28
        %v2561 = vpop.permute.xlu0 %2560
        %2562 = vrot.lane.b32.xlu0 %v2543, 28
        %v2563 = vpop.permute.xlu0 %2562
        %2564 = vrot.lane.b32.xlu0 %v2544, 28
        %v2565 = vpop.permute.xlu0 %2564
        %2566 = vrot.lane.b32.xlu0 %v2545, 28
        %v2567 = vpop.permute.xlu0 %2566
        %2568 = vrot.lane.b32.xlu0 %v2546, 28
        %v2569 = vpop.permute.xlu0 %2568
        %2570 = vrot.lane.b32.xlu0 %v2547, 28
        %v2571 = vpop.permute.xlu0 %2570
        %2580 = vst.msk [vmem:[#allocation3] sm:$0xff] %vm1869, %v2557
        %2581 = vst.msk [vmem:[#allocation3 + $0x8] sm:$0xff] %vm1869, %v2559
        %2582 = vst.msk [vmem:[#allocation3 + $0x10] sm:$0xff] %vm1869, %v2561
        %2583 = vst.msk [vmem:[#allocation3 + $0x18] sm:$0xff] %vm1869, %v2563
        %2584 = vst.msk [vmem:[#allocation3 + $0x20] sm:$0xff] %vm1869, %v2565
        %2585 = vst.msk [vmem:[#allocation3 + $0x28] sm:$0xff] %vm1869, %v2567
        %2586 = vst.msk [vmem:[#allocation3 + $0x30] sm:$0xff] %vm1869, %v2569
        %2587 = vst.msk [vmem:[#allocation3 + $0x38] sm:$0xff] %vm1869, %v2571
        %v2588 = vld [vmem:[%s1779 + $0x2] sm:$0xff]
        %v2589 = vld [vmem:[%s1779 + $0x12] sm:$0xff]
        %v2590 = vld [vmem:[%s1779 + $0x22] sm:$0xff]
        %v2591 = vld [vmem:[%s1779 + $0x32] sm:$0xff]
        %v2592 = vld [vmem:[%s1779 + $0x42] sm:$0xff]
        %v2593 = vld [vmem:[%s1779 + $0x52] sm:$0xff]
        %v2594 = vld [vmem:[%s1779 + $0x62] sm:$0xff]
        %v2595 = vld [vmem:[%s1779 + $0x72] sm:$0xff]
        %2604 = vrot.lane.b32.xlu0 %v2588, 32
        %v2605 = vpop.permute.xlu0 %2604
        %2606 = vrot.lane.b32.xlu0 %v2589, 32
        %v2607 = vpop.permute.xlu0 %2606
        %2608 = vrot.lane.b32.xlu0 %v2590, 32
        %v2609 = vpop.permute.xlu0 %2608
        %2610 = vrot.lane.b32.xlu0 %v2591, 32
        %v2611 = vpop.permute.xlu0 %2610
        %2612 = vrot.lane.b32.xlu0 %v2592, 32
        %v2613 = vpop.permute.xlu0 %2612
        %2614 = vrot.lane.b32.xlu0 %v2593, 32
        %v2615 = vpop.permute.xlu0 %2614
        %2616 = vrot.lane.b32.xlu0 %v2594, 32
        %v2617 = vpop.permute.xlu0 %2616
        %2618 = vrot.lane.b32.xlu0 %v2595, 32
        %v2619 = vpop.permute.xlu0 %2618
        %2628 = vst.msk [vmem:[#allocation3] sm:$0xff] %vm1918, %v2605
        %2629 = vst.msk [vmem:[#allocation3 + $0x8] sm:$0xff] %vm1918, %v2607
        %2630 = vst.msk [vmem:[#allocation3 + $0x10] sm:$0xff] %vm1918, %v2609
        %2631 = vst.msk [vmem:[#allocation3 + $0x18] sm:$0xff] %vm1918, %v2611
        %2632 = vst.msk [vmem:[#allocation3 + $0x20] sm:$0xff] %vm1918, %v2613
        %2633 = vst.msk [vmem:[#allocation3 + $0x28] sm:$0xff] %vm1918, %v2615
        %2634 = vst.msk [vmem:[#allocation3 + $0x30] sm:$0xff] %vm1918, %v2617
        %2635 = vst.msk [vmem:[#allocation3 + $0x38] sm:$0xff] %vm1918, %v2619
        %v2636 = vld [vmem:[#allocation3] sm:$0xff]
        %v2637 = vld [vmem:[#allocation3 + $0x8] sm:$0xff]
        %v2638 = vld [vmem:[#allocation3 + $0x10] sm:$0xff]
        %v2639 = vld [vmem:[#allocation3 + $0x18] sm:$0xff]
        %v2640 = vld [vmem:[#allocation3 + $0x20] sm:$0xff]
        %v2641 = vld [vmem:[#allocation3 + $0x28] sm:$0xff]
        %v2642 = vld [vmem:[#allocation3 + $0x30] sm:$0xff]
        %v2643 = vld [vmem:[#allocation3 + $0x38] sm:$0xff]
        %v2644 = vld [vmem:[%s4] sm:$0xff]
        %v2645 = vld [vmem:[%s4 + $0x8] sm:$0xff]
        %v2646 = vld [vmem:[%s4 + $0x10] sm:$0xff]
        %v2647 = vld [vmem:[%s4 + $0x18] sm:$0xff]
        %v2648 = vld [vmem:[%s4 + $0x20] sm:$0xf]
        %v2650 = vsel %vm1940, %v2636, 0
        %v2653 = vsel %vm1940, %v2637, 0
        %v2656 = vsel %vm1940, %v2638, 0
        %v2659 = vsel %vm1940, %v2639, 0
        %v2662 = vsel %vm1940, %v2640, 0
        %v2665 = vsel %vm1940, %v2641, 0
        %v2668 = vsel %vm1940, %v2642, 0
        %v2671 = vsel %vm1940, %v2643, 0
        %v2674 = vsel %vm1965, %v2648, 0
        %2676 = vmatprep.subr.mxu0 0.0
        %2677 = vmatpush1.msra.mxu0 0.0
        %2678 = vmatprep.subr.mxu0 0.0
        %2679 = vmatpush1.msra.mxu0 0.0
        %2680 = vmatprep.subr.mxu0 0.0
        %2681 = vmatpush1.msra.mxu0 0.0
        %2682 = vmatprep.subr.mxu0 0.0
        %2683 = vmatpush1.msra.mxu0 0.0
        %2684 = vmatprep.subr.mxu0 0.0
        %2685 = vmatpush1.msra.mxu0 0.0
        %2686 = vmatprep.subr.mxu0 0.0
        %2687 = vmatpush1.msra.mxu0 0.0
        %2688 = vmatprep.subr.mxu0 0.0
        %2689 = vmatpush1.msra.mxu0 0.0
        %2690 = vmatprep.subr.mxu0 0.0
        %2691 = vmatpush1.msra.mxu0 0.0
        %2692 = vmatprep.subr.mxu0 0.0
        %2693 = vmatpush1.msra.mxu0 0.0
        %2694 = vmatprep.subr.mxu0 0.0
        %2695 = vmatpush1.msra.mxu0 0.0
        %2696 = vmatprep.subr.mxu0 0.0
        %2697 = vmatpush1.msra.mxu0 0.0
        %2698 = vmatprep.subr.mxu0 0.0
        %2699 = vmatpush1.msra.mxu0 %v2674
        %2700 = vmatprep.subr.mxu0 0.0
        %2701 = vmatpush1.msra.mxu0 %v2647
        %2702 = vmatprep.subr.mxu0 0.0
        %2703 = vmatpush1.msra.mxu0 %v2646
        %2704 = vmatprep.subr.mxu0 0.0
        %2705 = vmatpush1.msra.mxu0 %v2645
        %2706 = vmatprep.subr.mxu0 0.0
        %2707 = vmatpush1.msra.mxu0 %v2644
        %2708 = vmatprep.subr.mxu0 0.0
        %2709 = vmatpush2.msra.mxu0 0.0
        %2710 = vmatprep.subr.mxu0 0.0
        %2711 = vmatpush2.msra.mxu0 0.0
        %2712 = vmatprep.subr.mxu0 0.0
        %2713 = vmatpush2.msra.mxu0 0.0
        %2714 = vmatprep.subr.mxu0 0.0
        %2715 = vmatpush2.msra.mxu0 0.0
        %2716 = vmatprep.subr.mxu0 0.0
        %2717 = vmatpush2.msra.mxu0 0.0
        %2718 = vmatprep.subr.mxu0 0.0
        %2719 = vmatpush2.msra.mxu0 0.0
        %2720 = vmatprep.subr.mxu0 0.0
        %2721 = vmatpush2.msra.mxu0 0.0
        %2722 = vmatprep.subr.mxu0 0.0
        %2723 = vmatpush2.msra.mxu0 0.0
        %2724 = vmatprep.subr.mxu0 0.0
        %2725 = vmatpush2.msra.mxu0 0.0
        %2726 = vmatprep.subr.mxu0 0.0
        %2727 = vmatpush2.msra.mxu0 0.0
        %2728 = vmatprep.subr.mxu0 0.0
        %2729 = vmatpush2.msra.mxu0 0.0
        %2730 = vmatprep.subr.mxu0 0.0
        %2731 = vmatpush2.msra.mxu0 0.0
        %2732 = vmatprep.subr.mxu0 0.0
        %2733 = vmatpush2.msra.mxu0 0.0
        %2734 = vmatprep.subr.mxu0 0.0
        %2735 = vmatpush2.msra.mxu0 0.0
        %2736 = vmatprep.subr.mxu0 0.0
        %2737 = vmatpush2.msra.mxu0 0.0
        %2738 = vmatprep.subr.mxu0 0.0
        %2739 = vmatpush2.msra.mxu0 0.0
        %2740 = vmatprep.mubr.f32.mxu0 0.0
        %2741 = vmatmul.mubr.f32.gmra.mxu0 %v2650
        %v2742 = vpop.f32.mrf.mxu0
        %v2743 = vadd.f32 0.0, %v2742
        %v2744 = vpop.f32.mrf.mxu0
        %2745 = vmatprep.mubr.f32.mxu0 0.0
        %2746 = vmatmul.mubr.f32.gmra.mxu0 %v2653
        %v2747 = vpop.f32.mrf.mxu0
        %v2748 = vadd.f32 0.0, %v2747
        %v2749 = vpop.f32.mrf.mxu0
        %2750 = vmatprep.mubr.f32.mxu0 0.0
        %2751 = vmatmul.mubr.f32.gmra.mxu0 %v2656
        %v2752 = vpop.f32.mrf.mxu0
        %v2753 = vadd.f32 0.0, %v2752
        %v2754 = vpop.f32.mrf.mxu0
        %2755 = vmatprep.mubr.f32.mxu0 0.0
        %2756 = vmatmul.mubr.f32.gmra.mxu0 %v2659
        %v2757 = vpop.f32.mrf.mxu0
        %v2758 = vadd.f32 0.0, %v2757
        %v2759 = vpop.f32.mrf.mxu0
        %2760 = vmatprep.mubr.f32.mxu0 0.0
        %2761 = vmatmul.mubr.f32.gmra.mxu0 %v2662
        %v2762 = vpop.f32.mrf.mxu0
        %v2763 = vadd.f32 0.0, %v2762
        %v2764 = vpop.f32.mrf.mxu0
        %2765 = vmatprep.mubr.f32.mxu0 0.0
        %2766 = vmatmul.mubr.f32.gmra.mxu0 %v2665
        %v2767 = vpop.f32.mrf.mxu0
        %v2768 = vadd.f32 0.0, %v2767
        %v2769 = vpop.f32.mrf.mxu0
        %2770 = vmatprep.mubr.f32.mxu0 0.0
        %2771 = vmatmul.mubr.f32.gmra.mxu0 %v2668
        %v2772 = vpop.f32.mrf.mxu0
        %v2773 = vadd.f32 0.0, %v2772
        %v2774 = vpop.f32.mrf.mxu0
        %2775 = vmatprep.mubr.f32.mxu0 0.0
        %2776 = vmatmul.mubr.f32.gmra.mxu0 %v2671
        %v2777 = vpop.f32.mrf.mxu0
        %v2778 = vadd.f32 0.0, %v2777
        %v2779 = vpop.f32.mrf.mxu0
        %2780 = vdwg.mxu0
        %v2781 = vsel %vm1509, %v2743, 0.0
        %v2782 = vsel %vm1509, %v2748, 0.0
        %v2783 = vadd.f32 %v2781, %v2782
        %v2784 = vsel %vm1509, %v2753, 0.0
        %v2785 = vadd.f32 %v2783, %v2784
        %v2786 = vsel %vm1509, %v2758, 0.0
        %v2787 = vadd.f32 %v2785, %v2786
        %v2788 = vsel %vm1509, %v2763, 0.0
        %v2789 = vadd.f32 %v2787, %v2788
        %v2790 = vsel %vm1509, %v2768, 0.0
        %v2791 = vadd.f32 %v2789, %v2790
        %v2792 = vsel %vm1509, %v2773, 0.0
        %v2793 = vadd.f32 %v2791, %v2792
        %v2794 = vsel %vm1509, %v2778, 0.0
        %v2795 = vadd.f32 %v2793, %v2794
        %2796 = vadd.xlane.f32.xlu0 %v2795
        %v2797 = vpop.xlane.xlu0 %2796
        %v2798 = vrot.slane %v2797, 4
        %v2799 = vadd.f32 %v2797, %v2798
        %v2800 = vrot.slane %v2799, 2
        %v2801 = vadd.f32 %v2799, %v2800
        %v2802 = vrot.slane %v2801, 1
        %v2803 = vadd.f32 %v2801, %v2802
        %s2804 = vtos %v2803
        %v2805 = vrcp.pop 256.0
        %s2806 = vtos %v2805
        %s2807 = smul.f32 %s2804, %s2806
        %v2808 = vstv %s2807
        %v2809 = vsub.f32 %v2743, %v2808
        %v2810 = vsub.f32 %v2748, %v2808
        %v2811 = vsub.f32 %v2753, %v2808
        %v2812 = vsub.f32 %v2758, %v2808
        %v2813 = vsub.f32 %v2763, %v2808
        %v2814 = vsub.f32 %v2768, %v2808
        %v2815 = vsub.f32 %v2773, %v2808
        %v2816 = vsub.f32 %v2778, %v2808
        %v2817 = vmul.f32 %v2809, %v2809
        %v2818 = vmul.f32 %v2810, %v2810
        %v2819 = vmul.f32 %v2811, %v2811
        %v2820 = vmul.f32 %v2812, %v2812
        %v2821 = vmul.f32 %v2813, %v2813
        %v2822 = vmul.f32 %v2814, %v2814
        %v2823 = vmul.f32 %v2815, %v2815
        %v2824 = vmul.f32 %v2816, %v2816
        %v2825 = vsel %vm1509, %v2817, 0.0
        %v2826 = vsel %vm1509, %v2818, 0.0
        %v2827 = vadd.f32 %v2825, %v2826
        %v2828 = vsel %vm1509, %v2819, 0.0
        %v2829 = vadd.f32 %v2827, %v2828
        %v2830 = vsel %vm1509, %v2820, 0.0
        %v2831 = vadd.f32 %v2829, %v2830
        %v2832 = vsel %vm1509, %v2821, 0.0
        %v2833 = vadd.f32 %v2831, %v2832
        %v2834 = vsel %vm1509, %v2822, 0.0
        %v2835 = vadd.f32 %v2833, %v2834
        %v2836 = vsel %vm1509, %v2823, 0.0
        %v2837 = vadd.f32 %v2835, %v2836
        %v2838 = vsel %vm1509, %v2824, 0.0
        %v2839 = vadd.f32 %v2837, %v2838
        %2840 = vadd.xlane.f32.xlu0 %v2839
        %v2841 = vpop.xlane.xlu0 %2840
        %v2842 = vrot.slane %v2841, 4
        %v2843 = vadd.f32 %v2841, %v2842
        %v2844 = vrot.slane %v2843, 2
        %v2845 = vadd.f32 %v2843, %v2844
        %v2846 = vrot.slane %v2845, 1
        %v2847 = vadd.f32 %v2845, %v2846
        %s2848 = vtos %v2847
        %v2849 = vrcp.pop 256.0
        %s2850 = vtos %v2849
        %s2851 = smul.f32 %s2848, %s2850
        %s2852 = sadd.f32 %s2851, 1e-05
        %v2853 = vstv %s2852
        %v2854 = vrsqrt.pop %v2853
        %s2855 = vtos %v2854
        %v2856 = vstv %s2855
        %v2857 = vmul.f32 %v2809, %v2856
        %v2858 = vmul.f32 %v2810, %v2856
        %v2859 = vmul.f32 %v2811, %v2856
        %v2860 = vmul.f32 %v2812, %v2856
        %v2861 = vmul.f32 %v2813, %v2856
        %v2862 = vmul.f32 %v2814, %v2856
        %v2863 = vmul.f32 %v2815, %v2856
        %v2864 = vmul.f32 %v2816, %v2856
        %v2865 = vld [vmem:[%s5] sm:$0x1]
        %v2867 = vlaneseq
        %v2868 = vshrl.u32 %v2867, 7
        %v2869 = vsub.s32 0, %v2868
        %v2870 = vrot.slane %v2865, %v2869
        %v2872 = vmul.f32 %v2857, %v2870
        %v2873 = vmul.f32 %v2858, %v2870
        %v2874 = vmul.f32 %v2859, %v2870
        %v2875 = vmul.f32 %v2860, %v2870
        %v2876 = vmul.f32 %v2861, %v2870
        %v2877 = vmul.f32 %v2862, %v2870
        %v2878 = vmul.f32 %v2863, %v2870
        %v2879 = vmul.f32 %v2864, %v2870
        %v2880 = vld [vmem:[%s6] sm:$0x1]
        %v2882 = vlaneseq
        %v2883 = vshrl.u32 %v2882, 7
        %v2884 = vsub.s32 0, %v2883
        %v2885 = vrot.slane %v2880, %v2884
        %v2887 = vadd.f32 %v2872, %v2885
        %v2888 = vadd.f32 %v2873, %v2885
        %v2889 = vadd.f32 %v2874, %v2885
        %v2890 = vadd.f32 %v2875, %v2885
        %v2891 = vadd.f32 %v2876, %v2885
        %v2892 = vadd.f32 %v2877, %v2885
        %v2893 = vadd.f32 %v2878, %v2885
        %v2894 = vadd.f32 %v2879, %v2885
        %v2903 = vcombine.high %v2887, %v2887
        %v2905 = vunpack.c.l.s4 1983009808
        %v2906 = vunpack.c.0.s8 %v2905
        %v2907 = vlaneseq
        %v2908 = vshrl.u32 %v2907, 7
        %v2909 = vsub.s32 %v2906, %v2908
        %v2910 = vrot.slane %v2887, %v2909
        %v2912 = vunpack.c.l.s4 1983009808
        %v2913 = vunpack.c.0.s8 %v2912
        %v2914 = vlaneseq
        %v2915 = vshrl.u32 %v2914, 7
        %v2916 = vsub.s32 %v2913, %v2915
        %v2917 = vrot.slane %v2903, %v2916
        %v2918 = vcombine.high %v2910, %v2910
        %v2919 = vcombine.high %v2917, %v2917
        %v2920 = vcombine.high %v2888, %v2888
        %v2922 = vunpack.c.l.s4 1983009808
        %v2923 = vunpack.c.0.s8 %v2922
        %v2924 = vlaneseq
        %v2925 = vshrl.u32 %v2924, 7
        %v2926 = vsub.s32 %v2923, %v2925
        %v2927 = vrot.slane %v2888, %v2926
        %v2929 = vunpack.c.l.s4 1983009808
        %v2930 = vunpack.c.0.s8 %v2929
        %v2931 = vlaneseq
        %v2932 = vshrl.u32 %v2931, 7
        %v2933 = vsub.s32 %v2930, %v2932
        %v2934 = vrot.slane %v2920, %v2933
        %v2935 = vcombine.high %v2927, %v2927
        %v2936 = vcombine.high %v2934, %v2934
        %v2937 = vcombine.high %v2889, %v2889
        %v2939 = vunpack.c.l.s4 1983009808
        %v2940 = vunpack.c.0.s8 %v2939
        %v2941 = vlaneseq
        %v2942 = vshrl.u32 %v2941, 7
        %v2943 = vsub.s32 %v2940, %v2942
        %v2944 = vrot.slane %v2889, %v2943
        %v2946 = vunpack.c.l.s4 1983009808
        %v2947 = vunpack.c.0.s8 %v2946
        %v2948 = vlaneseq
        %v2949 = vshrl.u32 %v2948, 7
        %v2950 = vsub.s32 %v2947, %v2949
        %v2951 = vrot.slane %v2937, %v2950
        %v2952 = vcombine.high %v2944, %v2944
        %v2953 = vcombine.high %v2951, %v2951
        %v2954 = vcombine.high %v2890, %v2890
        %v2956 = vunpack.c.l.s4 1983009808
        %v2957 = vunpack.c.0.s8 %v2956
        %v2958 = vlaneseq
        %v2959 = vshrl.u32 %v2958, 7
        %v2960 = vsub.s32 %v2957, %v2959
        %v2961 = vrot.slane %v2890, %v2960
        %v2963 = vunpack.c.l.s4 1983009808
        %v2964 = vunpack.c.0.s8 %v2963
        %v2965 = vlaneseq
        %v2966 = vshrl.u32 %v2965, 7
        %v2967 = vsub.s32 %v2964, %v2966
        %v2968 = vrot.slane %v2954, %v2967
        %v2969 = vcombine.high %v2961, %v2961
        %v2970 = vcombine.high %v2968, %v2968
        %v2971 = vcombine.high %v2891, %v2891
        %v2973 = vunpack.c.l.s4 1983009808
        %v2974 = vunpack.c.0.s8 %v2973
        %v2975 = vlaneseq
        %v2976 = vshrl.u32 %v2975, 7
        %v2977 = vsub.s32 %v2974, %v2976
        %v2978 = vrot.slane %v2891, %v2977
        %v2980 = vunpack.c.l.s4 1983009808
        %v2981 = vunpack.c.0.s8 %v2980
        %v2982 = vlaneseq
        %v2983 = vshrl.u32 %v2982, 7
        %v2984 = vsub.s32 %v2981, %v2983
        %v2985 = vrot.slane %v2971, %v2984
        %v2986 = vcombine.high %v2978, %v2978
        %v2987 = vcombine.high %v2985, %v2985
        %v2988 = vcombine.high %v2892, %v2892
        %v2990 = vunpack.c.l.s4 1983009808
        %v2991 = vunpack.c.0.s8 %v2990
        %v2992 = vlaneseq
        %v2993 = vshrl.u32 %v2992, 7
        %v2994 = vsub.s32 %v2991, %v2993
        %v2995 = vrot.slane %v2892, %v2994
        %v2997 = vunpack.c.l.s4 1983009808
        %v2998 = vunpack.c.0.s8 %v2997
        %v2999 = vlaneseq
        %v3000 = vshrl.u32 %v2999, 7
        %v3001 = vsub.s32 %v2998, %v3000
        %v3002 = vrot.slane %v2988, %v3001
        %v3003 = vcombine.high %v2995, %v2995
        %v3004 = vcombine.high %v3002, %v3002
        %v3005 = vcombine.high %v2893, %v2893
        %v3007 = vunpack.c.l.s4 1983009808
        %v3008 = vunpack.c.0.s8 %v3007
        %v3009 = vlaneseq
        %v3010 = vshrl.u32 %v3009, 7
        %v3011 = vsub.s32 %v3008, %v3010
        %v3012 = vrot.slane %v2893, %v3011
        %v3014 = vunpack.c.l.s4 1983009808
        %v3015 = vunpack.c.0.s8 %v3014
        %v3016 = vlaneseq
        %v3017 = vshrl.u32 %v3016, 7
        %v3018 = vsub.s32 %v3015, %v3017
        %v3019 = vrot.slane %v3005, %v3018
        %v3020 = vcombine.high %v3012, %v3012
        %v3021 = vcombine.high %v3019, %v3019
        %v3022 = vcombine.high %v2894, %v2894
        %v3024 = vunpack.c.l.s4 1983009808
        %v3025 = vunpack.c.0.s8 %v3024
        %v3026 = vlaneseq
        %v3027 = vshrl.u32 %v3026, 7
        %v3028 = vsub.s32 %v3025, %v3027
        %v3029 = vrot.slane %v2894, %v3028
        %v3031 = vunpack.c.l.s4 1983009808
        %v3032 = vunpack.c.0.s8 %v3031
        %v3033 = vlaneseq
        %v3034 = vshrl.u32 %v3033, 7
        %v3035 = vsub.s32 %v3032, %v3034
        %v3036 = vrot.slane %v3022, %v3035
        %v3037 = vcombine.high %v3029, %v3029
        %v3038 = vcombine.high %v3036, %v3036
        %v3039 = vrot.slane %v2910, 1
        %v3040 = vrot.slane %v2918, 1
        %v3041 = vrot.slane %v2917, 1
        %v3042 = vrot.slane %v2919, 1
        %v3043 = vrot.slane %v2927, 1
        %v3044 = vrot.slane %v2935, 1
        %v3045 = vrot.slane %v2934, 1
        %v3046 = vrot.slane %v2936, 1
        %v3047 = vrot.slane %v2944, 1
        %v3048 = vrot.slane %v2952, 1
        %v3049 = vrot.slane %v2951, 1
        %v3050 = vrot.slane %v2953, 1
        %v3051 = vrot.slane %v2961, 1
        %v3052 = vrot.slane %v2969, 1
        %v3053 = vrot.slane %v2968, 1
        %v3054 = vrot.slane %v2970, 1
        %v3055 = vrot.slane %v2978, 1
        %v3056 = vrot.slane %v2986, 1
        %v3057 = vrot.slane %v2985, 1
        %v3058 = vrot.slane %v2987, 1
        %v3059 = vrot.slane %v2995, 1
        %v3060 = vrot.slane %v3003, 1
        %v3061 = vrot.slane %v3002, 1
        %v3062 = vrot.slane %v3004, 1
        %v3063 = vrot.slane %v3012, 1
        %v3064 = vrot.slane %v3020, 1
        %v3065 = vrot.slane %v3019, 1
        %v3066 = vrot.slane %v3021, 1
        %v3067 = vrot.slane %v3029, 1
        %v3068 = vrot.slane %v3037, 1
        %v3069 = vrot.slane %v3036, 1
        %v3070 = vrot.slane %v3038, 1
        %v3135 = vadd.f32 %v1053, %v2910
        %v3136 = vadd.f32 %v1054, %v3039
        %v3137 = vadd.f32 %v1055, %v2918
        %v3138 = vadd.f32 %v1056, %v3040
        %v3139 = vadd.f32 %v1057, %v2917
        %v3140 = vadd.f32 %v1058, %v3041
        %v3141 = vadd.f32 %v1059, %v2919
        %v3142 = vadd.f32 %v1060, %v3042
        %v3143 = vadd.f32 %v1061, %v2927
        %v3144 = vadd.f32 %v1062, %v3043
        %v3145 = vadd.f32 %v1063, %v2935
        %v3146 = vadd.f32 %v1064, %v3044
        %v3147 = vadd.f32 %v1065, %v2934
        %v3148 = vadd.f32 %v1066, %v3045
        %v3149 = vadd.f32 %v1067, %v2936
        %v3150 = vadd.f32 %v1068, %v3046
        %v3151 = vadd.f32 %v1069, %v2944
        %v3152 = vadd.f32 %v1070, %v3047
        %v3153 = vadd.f32 %v1071, %v2952
        %v3154 = vadd.f32 %v1072, %v3048
        %v3155 = vadd.f32 %v1073, %v2951
        %v3156 = vadd.f32 %v1074, %v3049
        %v3157 = vadd.f32 %v1075, %v2953
        %v3158 = vadd.f32 %v1076, %v3050
        %v3159 = vadd.f32 %v1077, %v2961
        %v3160 = vadd.f32 %v1078, %v3051
        %v3161 = vadd.f32 %v1079, %v2969
        %v3162 = vadd.f32 %v1080, %v3052
        %v3163 = vadd.f32 %v1081, %v2968
        %v3164 = vadd.f32 %v1082, %v3053
        %v3165 = vadd.f32 %v1083, %v2970
        %v3166 = vadd.f32 %v1084, %v3054
        %v3167 = vadd.f32 %v1085, %v2978
        %v3168 = vadd.f32 %v1086, %v3055
        %v3169 = vadd.f32 %v1087, %v2986
        %v3170 = vadd.f32 %v1088, %v3056
        %v3171 = vadd.f32 %v1089, %v2985
        %v3172 = vadd.f32 %v1090, %v3057
        %v3173 = vadd.f32 %v1091, %v2987
        %v3174 = vadd.f32 %v1092, %v3058
        %v3175 = vadd.f32 %v1093, %v2995
        %v3176 = vadd.f32 %v1094, %v3059
        %v3177 = vadd.f32 %v1095, %v3003
        %v3178 = vadd.f32 %v1096, %v3060
        %v3179 = vadd.f32 %v1097, %v3002
        %v3180 = vadd.f32 %v1098, %v3061
        %v3181 = vadd.f32 %v1099, %v3004
        %v3182 = vadd.f32 %v1100, %v3062
        %v3183 = vadd.f32 %v1101, %v3012
        %v3184 = vadd.f32 %v1102, %v3063
        %v3185 = vadd.f32 %v1103, %v3020
        %v3186 = vadd.f32 %v1104, %v3064
        %v3187 = vadd.f32 %v1105, %v3019
        %v3188 = vadd.f32 %v1106, %v3065
        %v3189 = vadd.f32 %v1107, %v3021
        %v3190 = vadd.f32 %v1108, %v3066
        %v3191 = vadd.f32 %v1109, %v3029
        %v3192 = vadd.f32 %v1110, %v3067
        %v3193 = vadd.f32 %v1111, %v3037
        %v3194 = vadd.f32 %v1112, %v3068
        %v3195 = vadd.f32 %v1113, %v3036
        %v3196 = vadd.f32 %v1114, %v3069
        %v3197 = vadd.f32 %v1115, %v3038
        %v3198 = vadd.f32 %v1116, %v3070
        %v3199 = vmul.f32 %v3135, 0.5
        %v3200 = vmul.f32 %v3136, 0.5
        %v3201 = vmul.f32 %v3137, 0.5
        %v3202 = vmul.f32 %v3138, 0.5
        %v3203 = vmul.f32 %v3139, 0.5
        %v3204 = vmul.f32 %v3140, 0.5
        %v3205 = vmul.f32 %v3141, 0.5
        %v3206 = vmul.f32 %v3142, 0.5
        %v3207 = vmul.f32 %v3143, 0.5
        %v3208 = vmul.f32 %v3144, 0.5
        %v3209 = vmul.f32 %v3145, 0.5
        %v3210 = vmul.f32 %v3146, 0.5
        %v3211 = vmul.f32 %v3147, 0.5
        %v3212 = vmul.f32 %v3148, 0.5
        %v3213 = vmul.f32 %v3149, 0.5
        %v3214 = vmul.f32 %v3150, 0.5
        %v3215 = vmul.f32 %v3151, 0.5
        %v3216 = vmul.f32 %v3152, 0.5
        %v3217 = vmul.f32 %v3153, 0.5
        %v3218 = vmul.f32 %v3154, 0.5
        %v3219 = vmul.f32 %v3155, 0.5
        %v3220 = vmul.f32 %v3156, 0.5
        %v3221 = vmul.f32 %v3157, 0.5
        %v3222 = vmul.f32 %v3158, 0.5
        %v3223 = vmul.f32 %v3159, 0.5
        %v3224 = vmul.f32 %v3160, 0.5
        %v3225 = vmul.f32 %v3161, 0.5
        %v3226 = vmul.f32 %v3162, 0.5
        %v3227 = vmul.f32 %v3163, 0.5
        %v3228 = vmul.f32 %v3164, 0.5
        %v3229 = vmul.f32 %v3165, 0.5
        %v3230 = vmul.f32 %v3166, 0.5
        %v3231 = vmul.f32 %v3167, 0.5
        %v3232 = vmul.f32 %v3168, 0.5
        %v3233 = vmul.f32 %v3169, 0.5
        %v3234 = vmul.f32 %v3170, 0.5
        %v3235 = vmul.f32 %v3171, 0.5
        %v3236 = vmul.f32 %v3172, 0.5
        %v3237 = vmul.f32 %v3173, 0.5
        %v3238 = vmul.f32 %v3174, 0.5
        %v3239 = vmul.f32 %v3175, 0.5
        %v3240 = vmul.f32 %v3176, 0.5
        %v3241 = vmul.f32 %v3177, 0.5
        %v3242 = vmul.f32 %v3178, 0.5
        %v3243 = vmul.f32 %v3179, 0.5
        %v3244 = vmul.f32 %v3180, 0.5
        %v3245 = vmul.f32 %v3181, 0.5
        %v3246 = vmul.f32 %v3182, 0.5
        %v3247 = vmul.f32 %v3183, 0.5
        %v3248 = vmul.f32 %v3184, 0.5
        %v3249 = vmul.f32 %v3185, 0.5
        %v3250 = vmul.f32 %v3186, 0.5
        %v3251 = vmul.f32 %v3187, 0.5
        %v3252 = vmul.f32 %v3188, 0.5
        %v3253 = vmul.f32 %v3189, 0.5
        %v3254 = vmul.f32 %v3190, 0.5
        %v3255 = vmul.f32 %v3191, 0.5
        %v3256 = vmul.f32 %v3192, 0.5
        %v3257 = vmul.f32 %v3193, 0.5
        %v3258 = vmul.f32 %v3194, 0.5
        %v3259 = vmul.f32 %v3195, 0.5
        %v3260 = vmul.f32 %v3196, 0.5
        %v3261 = vmul.f32 %v3197, 0.5
        %v3262 = vmul.f32 %v3198, 0.5
        %v3263 = vmul.f32 %v3135, 0.70710677
        %v3264 = vmul.f32 %v3136, 0.70710677
        %v3265 = vmul.f32 %v3137, 0.70710677
        %v3266 = vmul.f32 %v3138, 0.70710677
        %v3267 = vmul.f32 %v3139, 0.70710677
        %v3268 = vmul.f32 %v3140, 0.70710677
        %v3269 = vmul.f32 %v3141, 0.70710677
        %v3270 = vmul.f32 %v3142, 0.70710677
        %v3271 = vmul.f32 %v3143, 0.70710677
        %v3272 = vmul.f32 %v3144, 0.70710677
        %v3273 = vmul.f32 %v3145, 0.70710677
        %v3274 = vmul.f32 %v3146, 0.70710677
        %v3275 = vmul.f32 %v3147, 0.70710677
        %v3276 = vmul.f32 %v3148, 0.70710677
        %v3277 = vmul.f32 %v3149, 0.70710677
        %v3278 = vmul.f32 %v3150, 0.70710677
        %v3279 = vmul.f32 %v3151, 0.70710677
        %v3280 = vmul.f32 %v3152, 0.70710677
        %v3281 = vmul.f32 %v3153, 0.70710677
        %v3282 = vmul.f32 %v3154, 0.70710677
        %v3283 = vmul.f32 %v3155, 0.70710677
        %v3284 = vmul.f32 %v3156, 0.70710677
        %v3285 = vmul.f32 %v3157, 0.70710677
        %v3286 = vmul.f32 %v3158, 0.70710677
        %v3287 = vmul.f32 %v3159, 0.70710677
        %v3288 = vmul.f32 %v3160, 0.70710677
        %v3289 = vmul.f32 %v3161, 0.70710677
        %v3290 = vmul.f32 %v3162, 0.70710677
        %v3291 = vmul.f32 %v3163, 0.70710677
        %v3292 = vmul.f32 %v3164, 0.70710677
        %v3293 = vmul.f32 %v3165, 0.70710677
        %v3294 = vmul.f32 %v3166, 0.70710677
        %v3295 = vmul.f32 %v3167, 0.70710677
        %v3296 = vmul.f32 %v3168, 0.70710677
        %v3297 = vmul.f32 %v3169, 0.70710677
        %v3298 = vmul.f32 %v3170, 0.70710677
        %v3299 = vmul.f32 %v3171, 0.70710677
        %v3300 = vmul.f32 %v3172, 0.70710677
        %v3301 = vmul.f32 %v3173, 0.70710677
        %v3302 = vmul.f32 %v3174, 0.70710677
        %v3303 = vmul.f32 %v3175, 0.70710677
        %v3304 = vmul.f32 %v3176, 0.70710677
        %v3305 = vmul.f32 %v3177, 0.70710677
        %v3306 = vmul.f32 %v3178, 0.70710677
        %v3307 = vmul.f32 %v3179, 0.70710677
        %v3308 = vmul.f32 %v3180, 0.70710677
        %v3309 = vmul.f32 %v3181, 0.70710677
        %v3310 = vmul.f32 %v3182, 0.70710677
        %v3311 = vmul.f32 %v3183, 0.70710677
        %v3312 = vmul.f32 %v3184, 0.70710677
        %v3313 = vmul.f32 %v3185, 0.70710677
        %v3314 = vmul.f32 %v3186, 0.70710677
        %v3315 = vmul.f32 %v3187, 0.70710677
        %v3316 = vmul.f32 %v3188, 0.70710677
        %v3317 = vmul.f32 %v3189, 0.70710677
        %v3318 = vmul.f32 %v3190, 0.70710677
        %v3319 = vmul.f32 %v3191, 0.70710677
        %v3320 = vmul.f32 %v3192, 0.70710677
        %v3321 = vmul.f32 %v3193, 0.70710677
        %v3322 = vmul.f32 %v3194, 0.70710677
        %v3323 = vmul.f32 %v3195, 0.70710677
        %v3324 = vmul.f32 %v3196, 0.70710677
        %v3325 = vmul.f32 %v3197, 0.70710677
        %v3326 = vmul.f32 %v3198, 0.70710677
        %v3327 = verf.f32.pop %v3263
        %v3328 = verf.f32.pop %v3264
        %v3329 = verf.f32.pop %v3265
        %v3330 = verf.f32.pop %v3266
        %v3331 = verf.f32.pop %v3267
        %v3332 = verf.f32.pop %v3268
        %v3333 = verf.f32.pop %v3269
        %v3334 = verf.f32.pop %v3270
        %v3335 = verf.f32.pop %v3271
        %v3336 = verf.f32.pop %v3272
        %v3337 = verf.f32.pop %v3273
        %v3338 = verf.f32.pop %v3274
        %v3339 = verf.f32.pop %v3275
        %v3340 = verf.f32.pop %v3276
        %v3341 = verf.f32.pop %v3277
        %v3342 = verf.f32.pop %v3278
        %v3343 = verf.f32.pop %v3279
        %v3344 = verf.f32.pop %v3280
        %v3345 = verf.f32.pop %v3281
        %v3346 = verf.f32.pop %v3282
        %v3347 = verf.f32.pop %v3283
        %v3348 = verf.f32.pop %v3284
        %v3349 = verf.f32.pop %v3285
        %v3350 = verf.f32.pop %v3286
        %v3351 = verf.f32.pop %v3287
        %v3352 = verf.f32.pop %v3288
        %v3353 = verf.f32.pop %v3289
        %v3354 = verf.f32.pop %v3290
        %v3355 = verf.f32.pop %v3291
        %v3356 = verf.f32.pop %v3292
        %v3357 = verf.f32.pop %v3293
        %v3358 = verf.f32.pop %v3294
        %v3359 = verf.f32.pop %v3295
        %v3360 = verf.f32.pop %v3296
        %v3361 = verf.f32.pop %v3297
        %v3362 = verf.f32.pop %v3298
        %v3363 = verf.f32.pop %v3299
        %v3364 = verf.f32.pop %v3300
        %v3365 = verf.f32.pop %v3301
        %v3366 = verf.f32.pop %v3302
        %v3367 = verf.f32.pop %v3303
        %v3368 = verf.f32.pop %v3304
        %v3369 = verf.f32.pop %v3305
        %v3370 = verf.f32.pop %v3306
        %v3371 = verf.f32.pop %v3307
        %v3372 = verf.f32.pop %v3308
        %v3373 = verf.f32.pop %v3309
        %v3374 = verf.f32.pop %v3310
        %v3375 = verf.f32.pop %v3311
        %v3376 = verf.f32.pop %v3312
        %v3377 = verf.f32.pop %v3313
        %v3378 = verf.f32.pop %v3314
        %v3379 = verf.f32.pop %v3315
        %v3380 = verf.f32.pop %v3316
        %v3381 = verf.f32.pop %v3317
        %v3382 = verf.f32.pop %v3318
        %v3383 = verf.f32.pop %v3319
        %v3384 = verf.f32.pop %v3320
        %v3385 = verf.f32.pop %v3321
        %v3386 = verf.f32.pop %v3322
        %v3387 = verf.f32.pop %v3323
        %v3388 = verf.f32.pop %v3324
        %v3389 = verf.f32.pop %v3325
        %v3390 = verf.f32.pop %v3326
        %v3391 = vadd.f32 %v3327, 1.0
        %v3392 = vadd.f32 %v3328, 1.0
        %v3393 = vadd.f32 %v3329, 1.0
        %v3394 = vadd.f32 %v3330, 1.0
        %v3395 = vadd.f32 %v3331, 1.0
        %v3396 = vadd.f32 %v3332, 1.0
        %v3397 = vadd.f32 %v3333, 1.0
        %v3398 = vadd.f32 %v3334, 1.0
        %v3399 = vadd.f32 %v3335, 1.0
        %v3400 = vadd.f32 %v3336, 1.0
        %v3401 = vadd.f32 %v3337, 1.0
        %v3402 = vadd.f32 %v3338, 1.0
        %v3403 = vadd.f32 %v3339, 1.0
        %v3404 = vadd.f32 %v3340, 1.0
        %v3405 = vadd.f32 %v3341, 1.0
        %v3406 = vadd.f32 %v3342, 1.0
        %v3407 = vadd.f32 %v3343, 1.0
        %v3408 = vadd.f32 %v3344, 1.0
        %v3409 = vadd.f32 %v3345, 1.0
        %v3410 = vadd.f32 %v3346, 1.0
        %v3411 = vadd.f32 %v3347, 1.0
        %v3412 = vadd.f32 %v3348, 1.0
        %v3413 = vadd.f32 %v3349, 1.0
        %v3414 = vadd.f32 %v3350, 1.0
        %v3415 = vadd.f32 %v3351, 1.0
        %v3416 = vadd.f32 %v3352, 1.0
        %v3417 = vadd.f32 %v3353, 1.0
        %v3418 = vadd.f32 %v3354, 1.0
        %v3419 = vadd.f32 %v3355, 1.0
        %v3420 = vadd.f32 %v3356, 1.0
        %v3421 = vadd.f32 %v3357, 1.0
        %v3422 = vadd.f32 %v3358, 1.0
        %v3423 = vadd.f32 %v3359, 1.0
        %v3424 = vadd.f32 %v3360, 1.0
        %v3425 = vadd.f32 %v3361, 1.0
        %v3426 = vadd.f32 %v3362, 1.0
        %v3427 = vadd.f32 %v3363, 1.0
        %v3428 = vadd.f32 %v3364, 1.0
        %v3429 = vadd.f32 %v3365, 1.0
        %v3430 = vadd.f32 %v3366, 1.0
        %v3431 = vadd.f32 %v3367, 1.0
        %v3432 = vadd.f32 %v3368, 1.0
        %v3433 = vadd.f32 %v3369, 1.0
        %v3434 = vadd.f32 %v3370, 1.0
        %v3435 = vadd.f32 %v3371, 1.0
        %v3436 = vadd.f32 %v3372, 1.0
        %v3437 = vadd.f32 %v3373, 1.0
        %v3438 = vadd.f32 %v3374, 1.0
        %v3439 = vadd.f32 %v3375, 1.0
        %v3440 = vadd.f32 %v3376, 1.0
        %v3441 = vadd.f32 %v3377, 1.0
        %v3442 = vadd.f32 %v3378, 1.0
        %v3443 = vadd.f32 %v3379, 1.0
        %v3444 = vadd.f32 %v3380, 1.0
        %v3445 = vadd.f32 %v3381, 1.0
        %v3446 = vadd.f32 %v3382, 1.0
        %v3447 = vadd.f32 %v3383, 1.0
        %v3448 = vadd.f32 %v3384, 1.0
        %v3449 = vadd.f32 %v3385, 1.0
        %v3450 = vadd.f32 %v3386, 1.0
        %v3451 = vadd.f32 %v3387, 1.0
        %v3452 = vadd.f32 %v3388, 1.0
        %v3453 = vadd.f32 %v3389, 1.0
        %v3454 = vadd.f32 %v3390, 1.0
        %v3455 = vmul.f32 %v3199, %v3391
        %v3456 = vmul.f32 %v3200, %v3392
        %v3457 = vmul.f32 %v3201, %v3393
        %v3458 = vmul.f32 %v3202, %v3394
        %v3459 = vmul.f32 %v3203, %v3395
        %v3460 = vmul.f32 %v3204, %v3396
        %v3461 = vmul.f32 %v3205, %v3397
        %v3462 = vmul.f32 %v3206, %v3398
        %v3463 = vmul.f32 %v3207, %v3399
        %v3464 = vmul.f32 %v3208, %v3400
        %v3465 = vmul.f32 %v3209, %v3401
        %v3466 = vmul.f32 %v3210, %v3402
        %v3467 = vmul.f32 %v3211, %v3403
        %v3468 = vmul.f32 %v3212, %v3404
        %v3469 = vmul.f32 %v3213, %v3405
        %v3470 = vmul.f32 %v3214, %v3406
        %v3471 = vmul.f32 %v3215, %v3407
        %v3472 = vmul.f32 %v3216, %v3408
        %v3473 = vmul.f32 %v3217, %v3409
        %v3474 = vmul.f32 %v3218, %v3410
        %v3475 = vmul.f32 %v3219, %v3411
        %v3476 = vmul.f32 %v3220, %v3412
        %v3477 = vmul.f32 %v3221, %v3413
        %v3478 = vmul.f32 %v3222, %v3414
        %v3479 = vmul.f32 %v3223, %v3415
        %v3480 = vmul.f32 %v3224, %v3416
        %v3481 = vmul.f32 %v3225, %v3417
        %v3482 = vmul.f32 %v3226, %v3418
        %v3483 = vmul.f32 %v3227, %v3419
        %v3484 = vmul.f32 %v3228, %v3420
        %v3485 = vmul.f32 %v3229, %v3421
        %v3486 = vmul.f32 %v3230, %v3422
        %v3487 = vmul.f32 %v3231, %v3423
        %v3488 = vmul.f32 %v3232, %v3424
        %v3489 = vmul.f32 %v3233, %v3425
        %v3490 = vmul.f32 %v3234, %v3426
        %v3491 = vmul.f32 %v3235, %v3427
        %v3492 = vmul.f32 %v3236, %v3428
        %v3493 = vmul.f32 %v3237, %v3429
        %v3494 = vmul.f32 %v3238, %v3430
        %v3495 = vmul.f32 %v3239, %v3431
        %v3496 = vmul.f32 %v3240, %v3432
        %v3497 = vmul.f32 %v3241, %v3433
        %v3498 = vmul.f32 %v3242, %v3434
        %v3499 = vmul.f32 %v3243, %v3435
        %v3500 = vmul.f32 %v3244, %v3436
        %v3501 = vmul.f32 %v3245, %v3437
        %v3502 = vmul.f32 %v3246, %v3438
        %v3503 = vmul.f32 %v3247, %v3439
        %v3504 = vmul.f32 %v3248, %v3440
        %v3505 = vmul.f32 %v3249, %v3441
        %v3506 = vmul.f32 %v3250, %v3442
        %v3507 = vmul.f32 %v3251, %v3443
        %v3508 = vmul.f32 %v3252, %v3444
        %v3509 = vmul.f32 %v3253, %v3445
        %v3510 = vmul.f32 %v3254, %v3446
        %v3511 = vmul.f32 %v3255, %v3447
        %v3512 = vmul.f32 %v3256, %v3448
        %v3513 = vmul.f32 %v3257, %v3449
        %v3514 = vmul.f32 %v3258, %v3450
        %v3515 = vmul.f32 %v3259, %v3451
        %v3516 = vmul.f32 %v3260, %v3452
        %v3517 = vmul.f32 %v3261, %v3453
        %v3518 = vmul.f32 %v3262, %v3454
        %v3583 = vlaneseq
        %v3584 = vshrl.u32 %v3583, 7
        %v3585 = vsub.s32 0, %v3584
        %v3586 = vrot.slane %v3455, %v3585
        %v3587 = vlaneseq
        %v3588 = vshrl.u32 %v3587, 7
        %v3589 = vsub.s32 0, %v3588
        %v3590 = vrot.slane %v3456, %v3589
        %v3591 = vlaneseq
        %v3592 = vshrl.u32 %v3591, 7
        %v3593 = vsub.s32 0, %v3592
        %v3594 = vrot.slane %v3457, %v3593
        %v3595 = vlaneseq
        %v3596 = vshrl.u32 %v3595, 7
        %v3597 = vsub.s32 0, %v3596
        %v3598 = vrot.slane %v3458, %v3597
        %v3599 = vlaneseq
        %v3600 = vshrl.u32 %v3599, 7
        %v3601 = vsub.s32 0, %v3600
        %v3602 = vrot.slane %v3459, %v3601
        %v3603 = vlaneseq
        %v3604 = vshrl.u32 %v3603, 7
        %v3605 = vsub.s32 0, %v3604
        %v3606 = vrot.slane %v3460, %v3605
        %v3607 = vlaneseq
        %v3608 = vshrl.u32 %v3607, 7
        %v3609 = vsub.s32 0, %v3608
        %v3610 = vrot.slane %v3461, %v3609
        %v3611 = vlaneseq
        %v3612 = vshrl.u32 %v3611, 7
        %v3613 = vsub.s32 0, %v3612
        %v3614 = vrot.slane %v3462, %v3613
        %v3615 = vlaneseq
        %v3616 = vshrl.u32 %v3615, 7
        %v3617 = vsub.s32 0, %v3616
        %v3618 = vrot.slane %v3463, %v3617
        %v3619 = vlaneseq
        %v3620 = vshrl.u32 %v3619, 7
        %v3621 = vsub.s32 0, %v3620
        %v3622 = vrot.slane %v3464, %v3621
        %v3623 = vlaneseq
        %v3624 = vshrl.u32 %v3623, 7
        %v3625 = vsub.s32 0, %v3624
        %v3626 = vrot.slane %v3465, %v3625
        %v3627 = vlaneseq
        %v3628 = vshrl.u32 %v3627, 7
        %v3629 = vsub.s32 0, %v3628
        %v3630 = vrot.slane %v3466, %v3629
        %v3631 = vlaneseq
        %v3632 = vshrl.u32 %v3631, 7
        %v3633 = vsub.s32 0, %v3632
        %v3634 = vrot.slane %v3467, %v3633
        %v3635 = vlaneseq
        %v3636 = vshrl.u32 %v3635, 7
        %v3637 = vsub.s32 0, %v3636
        %v3638 = vrot.slane %v3468, %v3637
        %v3639 = vlaneseq
        %v3640 = vshrl.u32 %v3639, 7
        %v3641 = vsub.s32 0, %v3640
        %v3642 = vrot.slane %v3469, %v3641
        %v3643 = vlaneseq
        %v3644 = vshrl.u32 %v3643, 7
        %v3645 = vsub.s32 0, %v3644
        %v3646 = vrot.slane %v3470, %v3645
        %v3647 = vlaneseq
        %v3648 = vshrl.u32 %v3647, 7
        %v3649 = vsub.s32 0, %v3648
        %v3650 = vrot.slane %v3471, %v3649
        %v3651 = vlaneseq
        %v3652 = vshrl.u32 %v3651, 7
        %v3653 = vsub.s32 0, %v3652
        %v3654 = vrot.slane %v3472, %v3653
        %v3655 = vlaneseq
        %v3656 = vshrl.u32 %v3655, 7
        %v3657 = vsub.s32 0, %v3656
        %v3658 = vrot.slane %v3473, %v3657
        %v3659 = vlaneseq
        %v3660 = vshrl.u32 %v3659, 7
        %v3661 = vsub.s32 0, %v3660
        %v3662 = vrot.slane %v3474, %v3661
        %v3663 = vlaneseq
        %v3664 = vshrl.u32 %v3663, 7
        %v3665 = vsub.s32 0, %v3664
        %v3666 = vrot.slane %v3475, %v3665
        %v3667 = vlaneseq
        %v3668 = vshrl.u32 %v3667, 7
        %v3669 = vsub.s32 0, %v3668
        %v3670 = vrot.slane %v3476, %v3669
        %v3671 = vlaneseq
        %v3672 = vshrl.u32 %v3671, 7
        %v3673 = vsub.s32 0, %v3672
        %v3674 = vrot.slane %v3477, %v3673
        %v3675 = vlaneseq
        %v3676 = vshrl.u32 %v3675, 7
        %v3677 = vsub.s32 0, %v3676
        %v3678 = vrot.slane %v3478, %v3677
        %v3679 = vlaneseq
        %v3680 = vshrl.u32 %v3679, 7
        %v3681 = vsub.s32 0, %v3680
        %v3682 = vrot.slane %v3479, %v3681
        %v3683 = vlaneseq
        %v3684 = vshrl.u32 %v3683, 7
        %v3685 = vsub.s32 0, %v3684
        %v3686 = vrot.slane %v3480, %v3685
        %v3687 = vlaneseq
        %v3688 = vshrl.u32 %v3687, 7
        %v3689 = vsub.s32 0, %v3688
        %v3690 = vrot.slane %v3481, %v3689
        %v3691 = vlaneseq
        %v3692 = vshrl.u32 %v3691, 7
        %v3693 = vsub.s32 0, %v3692
        %v3694 = vrot.slane %v3482, %v3693
        %v3695 = vlaneseq
        %v3696 = vshrl.u32 %v3695, 7
        %v3697 = vsub.s32 0, %v3696
        %v3698 = vrot.slane %v3483, %v3697
        %v3699 = vlaneseq
        %v3700 = vshrl.u32 %v3699, 7
        %v3701 = vsub.s32 0, %v3700
        %v3702 = vrot.slane %v3484, %v3701
        %v3703 = vlaneseq
        %v3704 = vshrl.u32 %v3703, 7
        %v3705 = vsub.s32 0, %v3704
        %v3706 = vrot.slane %v3485, %v3705
        %v3707 = vlaneseq
        %v3708 = vshrl.u32 %v3707, 7
        %v3709 = vsub.s32 0, %v3708
        %v3710 = vrot.slane %v3486, %v3709
        %v3711 = vlaneseq
        %v3712 = vshrl.u32 %v3711, 7
        %v3713 = vsub.s32 0, %v3712
        %v3714 = vrot.slane %v3487, %v3713
        %v3715 = vlaneseq
        %v3716 = vshrl.u32 %v3715, 7
        %v3717 = vsub.s32 0, %v3716
        %v3718 = vrot.slane %v3488, %v3717
        %v3719 = vlaneseq
        %v3720 = vshrl.u32 %v3719, 7
        %v3721 = vsub.s32 0, %v3720
        %v3722 = vrot.slane %v3489, %v3721
        %v3723 = vlaneseq
        %v3724 = vshrl.u32 %v3723, 7
        %v3725 = vsub.s32 0, %v3724
        %v3726 = vrot.slane %v3490, %v3725
        %v3727 = vlaneseq
        %v3728 = vshrl.u32 %v3727, 7
        %v3729 = vsub.s32 0, %v3728
        %v3730 = vrot.slane %v3491, %v3729
        %v3731 = vlaneseq
        %v3732 = vshrl.u32 %v3731, 7
        %v3733 = vsub.s32 0, %v3732
        %v3734 = vrot.slane %v3492, %v3733
        %v3735 = vlaneseq
        %v3736 = vshrl.u32 %v3735, 7
        %v3737 = vsub.s32 0, %v3736
        %v3738 = vrot.slane %v3493, %v3737
        %v3739 = vlaneseq
        %v3740 = vshrl.u32 %v3739, 7
        %v3741 = vsub.s32 0, %v3740
        %v3742 = vrot.slane %v3494, %v3741
        %v3743 = vlaneseq
        %v3744 = vshrl.u32 %v3743, 7
        %v3745 = vsub.s32 0, %v3744
        %v3746 = vrot.slane %v3495, %v3745
        %v3747 = vlaneseq
        %v3748 = vshrl.u32 %v3747, 7
        %v3749 = vsub.s32 0, %v3748
        %v3750 = vrot.slane %v3496, %v3749
        %v3751 = vlaneseq
        %v3752 = vshrl.u32 %v3751, 7
        %v3753 = vsub.s32 0, %v3752
        %v3754 = vrot.slane %v3497, %v3753
        %v3755 = vlaneseq
        %v3756 = vshrl.u32 %v3755, 7
        %v3757 = vsub.s32 0, %v3756
        %v3758 = vrot.slane %v3498, %v3757
        %v3759 = vlaneseq
        %v3760 = vshrl.u32 %v3759, 7
        %v3761 = vsub.s32 0, %v3760
        %v3762 = vrot.slane %v3499, %v3761
        %v3763 = vlaneseq
        %v3764 = vshrl.u32 %v3763, 7
        %v3765 = vsub.s32 0, %v3764
        %v3766 = vrot.slane %v3500, %v3765
        %v3767 = vlaneseq
        %v3768 = vshrl.u32 %v3767, 7
        %v3769 = vsub.s32 0, %v3768
        %v3770 = vrot.slane %v3501, %v3769
        %v3771 = vlaneseq
        %v3772 = vshrl.u32 %v3771, 7
        %v3773 = vsub.s32 0, %v3772
        %v3774 = vrot.slane %v3502, %v3773
        %v3775 = vlaneseq
        %v3776 = vshrl.u32 %v3775, 7
        %v3777 = vsub.s32 0, %v3776
        %v3778 = vrot.slane %v3503, %v3777
        %v3779 = vlaneseq
        %v3780 = vshrl.u32 %v3779, 7
        %v3781 = vsub.s32 0, %v3780
        %v3782 = vrot.slane %v3504, %v3781
        %v3783 = vlaneseq
        %v3784 = vshrl.u32 %v3783, 7
        %v3785 = vsub.s32 0, %v3784
        %v3786 = vrot.slane %v3505, %v3785
        %v3787 = vlaneseq
        %v3788 = vshrl.u32 %v3787, 7
        %v3789 = vsub.s32 0, %v3788
        %v3790 = vrot.slane %v3506, %v3789
        %v3791 = vlaneseq
        %v3792 = vshrl.u32 %v3791, 7
        %v3793 = vsub.s32 0, %v3792
        %v3794 = vrot.slane %v3507, %v3793
        %v3795 = vlaneseq
        %v3796 = vshrl.u32 %v3795, 7
        %v3797 = vsub.s32 0, %v3796
        %v3798 = vrot.slane %v3508, %v3797
        %v3799 = vlaneseq
        %v3800 = vshrl.u32 %v3799, 7
        %v3801 = vsub.s32 0, %v3800
        %v3802 = vrot.slane %v3509, %v3801
        %v3803 = vlaneseq
        %v3804 = vshrl.u32 %v3803, 7
        %v3805 = vsub.s32 0, %v3804
        %v3806 = vrot.slane %v3510, %v3805
        %v3807 = vlaneseq
        %v3808 = vshrl.u32 %v3807, 7
        %v3809 = vsub.s32 0, %v3808
        %v3810 = vrot.slane %v3511, %v3809
        %v3811 = vlaneseq
        %v3812 = vshrl.u32 %v3811, 7
        %v3813 = vsub.s32 0, %v3812
        %v3814 = vrot.slane %v3512, %v3813
        %v3815 = vlaneseq
        %v3816 = vshrl.u32 %v3815, 7
        %v3817 = vsub.s32 0, %v3816
        %v3818 = vrot.slane %v3513, %v3817
        %v3819 = vlaneseq
        %v3820 = vshrl.u32 %v3819, 7
        %v3821 = vsub.s32 0, %v3820
        %v3822 = vrot.slane %v3514, %v3821
        %v3823 = vlaneseq
        %v3824 = vshrl.u32 %v3823, 7
        %v3825 = vsub.s32 0, %v3824
        %v3826 = vrot.slane %v3515, %v3825
        %v3827 = vlaneseq
        %v3828 = vshrl.u32 %v3827, 7
        %v3829 = vsub.s32 0, %v3828
        %v3830 = vrot.slane %v3516, %v3829
        %v3831 = vlaneseq
        %v3832 = vshrl.u32 %v3831, 7
        %v3833 = vsub.s32 0, %v3832
        %v3834 = vrot.slane %v3517, %v3833
        %v3835 = vlaneseq
        %v3836 = vshrl.u32 %v3835, 7
        %v3837 = vsub.s32 0, %v3836
        %v3838 = vrot.slane %v3518, %v3837
        %v3839 = vsel %vm1437, %v3590, %v3586
        %v3840 = vsel %vm1439, %v3594, %v3839
        %v3841 = vsel %vm1441, %v3598, %v3840
        %v3842 = vsel %vm1443, %v3602, %v3841
        %v3843 = vsel %vm1445, %v3606, %v3842
        %v3844 = vsel %vm1447, %v3610, %v3843
        %v3845 = vsel %vm1449, %v3614, %v3844
        %v3846 = vsel %vm1437, %v3622, %v3618
        %v3847 = vsel %vm1439, %v3626, %v3846
        %v3848 = vsel %vm1441, %v3630, %v3847
        %v3849 = vsel %vm1443, %v3634, %v3848
        %v3850 = vsel %vm1445, %v3638, %v3849
        %v3851 = vsel %vm1447, %v3642, %v3850
        %v3852 = vsel %vm1449, %v3646, %v3851
        %v3853 = vsel %vm1437, %v3654, %v3650
        %v3854 = vsel %vm1439, %v3658, %v3853
        %v3855 = vsel %vm1441, %v3662, %v3854
        %v3856 = vsel %vm1443, %v3666, %v3855
        %v3857 = vsel %vm1445, %v3670, %v3856
        %v3858 = vsel %vm1447, %v3674, %v3857
        %v3859 = vsel %vm1449, %v3678, %v3858
        %v3860 = vsel %vm1437, %v3686, %v3682
        %v3861 = vsel %vm1439, %v3690, %v3860
        %v3862 = vsel %vm1441, %v3694, %v3861
        %v3863 = vsel %vm1443, %v3698, %v3862
        %v3864 = vsel %vm1445, %v3702, %v3863
        %v3865 = vsel %vm1447, %v3706, %v3864
        %v3866 = vsel %vm1449, %v3710, %v3865
        %v3867 = vsel %vm1437, %v3718, %v3714
        %v3868 = vsel %vm1439, %v3722, %v3867
        %v3869 = vsel %vm1441, %v3726, %v3868
        %v3870 = vsel %vm1443, %v3730, %v3869
        %v3871 = vsel %vm1445, %v3734, %v3870
        %v3872 = vsel %vm1447, %v3738, %v3871
        %v3873 = vsel %vm1449, %v3742, %v3872
        %v3874 = vsel %vm1437, %v3750, %v3746
        %v3875 = vsel %vm1439, %v3754, %v3874
        %v3876 = vsel %vm1441, %v3758, %v3875
        %v3877 = vsel %vm1443, %v3762, %v3876
        %v3878 = vsel %vm1445, %v3766, %v3877
        %v3879 = vsel %vm1447, %v3770, %v3878
        %v3880 = vsel %vm1449, %v3774, %v3879
        %v3881 = vsel %vm1437, %v3782, %v3778
        %v3882 = vsel %vm1439, %v3786, %v3881
        %v3883 = vsel %vm1441, %v3790, %v3882
        %v3884 = vsel %vm1443, %v3794, %v3883
        %v3885 = vsel %vm1445, %v3798, %v3884
        %v3886 = vsel %vm1447, %v3802, %v3885
        %v3887 = vsel %vm1449, %v3806, %v3886
        %v3888 = vsel %vm1437, %v3814, %v3810
        %v3889 = vsel %vm1439, %v3818, %v3888
        %v3890 = vsel %vm1441, %v3822, %v3889
        %v3891 = vsel %vm1443, %v3826, %v3890
        %v3892 = vsel %vm1445, %v3830, %v3891
        %v3893 = vsel %vm1447, %v3834, %v3892
        %v3894 = vsel %vm1449, %v3838, %v3893
        %3903 = vst.msk [vmem:[%s1508 + $0x1] sm:$0xff] %vm1509, %v3845
        %3904 = vst.msk [vmem:[%s1508 + $0x11] sm:$0xff] %vm1509, %v3852
        %3905 = vst.msk [vmem:[%s1508 + $0x21] sm:$0xff] %vm1509, %v3859
        %3906 = vst.msk [vmem:[%s1508 + $0x31] sm:$0xff] %vm1509, %v3866
        %3907 = vst.msk [vmem:[%s1508 + $0x41] sm:$0xff] %vm1509, %v3873
        %3908 = vst.msk [vmem:[%s1508 + $0x51] sm:$0xff] %vm1509, %v3880
        %3909 = vst.msk [vmem:[%s1508 + $0x61] sm:$0xff] %vm1509, %v3887
        %3910 = vst.msk [vmem:[%s1508 + $0x71] sm:$0xff] %vm1509, %v3894
        %v3911 = vld [vmem:[#allocation2] sm:$0xff]
        %v3912 = vld [vmem:[#allocation2 + $0x10] sm:$0xff]
        %v3913 = vld [vmem:[#allocation2 + $0x20] sm:$0xff]
        %v3914 = vld [vmem:[#allocation2 + $0x30] sm:$0xff]
        %v3915 = vld [vmem:[#allocation2 + $0x40] sm:$0xff]
        %v3916 = vld [vmem:[#allocation2 + $0x50] sm:$0xff]
        %v3917 = vld [vmem:[#allocation2 + $0x60] sm:$0xff]
        %v3918 = vld [vmem:[#allocation2 + $0x70] sm:$0xff]
        %3919 = vst.msk [vmem:[#allocation3] sm:$0xff] %vm1509, %v3911
        %3920 = vst.msk [vmem:[#allocation3 + $0x8] sm:$0xff] %vm1509, %v3912
        %3921 = vst.msk [vmem:[#allocation3 + $0x10] sm:$0xff] %vm1509, %v3913
        %3922 = vst.msk [vmem:[#allocation3 + $0x18] sm:$0xff] %vm1509, %v3914
        %3923 = vst.msk [vmem:[#allocation3 + $0x20] sm:$0xff] %vm1509, %v3915
        %3924 = vst.msk [vmem:[#allocation3 + $0x28] sm:$0xff] %vm1509, %v3916
        %3925 = vst.msk [vmem:[#allocation3 + $0x30] sm:$0xff] %vm1509, %v3917
        %3926 = vst.msk [vmem:[#allocation3 + $0x38] sm:$0xff] %vm1509, %v3918
        %v3927 = vld [vmem:[#allocation2 + $0x1] sm:$0xff]
        %v3928 = vld [vmem:[#allocation2 + $0x11] sm:$0xff]
        %v3929 = vld [vmem:[#allocation2 + $0x21] sm:$0xff]
        %v3930 = vld [vmem:[#allocation2 + $0x31] sm:$0xff]
        %v3931 = vld [vmem:[#allocation2 + $0x41] sm:$0xff]
        %v3932 = vld [vmem:[#allocation2 + $0x51] sm:$0xff]
        %v3933 = vld [vmem:[#allocation2 + $0x61] sm:$0xff]
        %v3934 = vld [vmem:[#allocation2 + $0x71] sm:$0xff]
        %3943 = vrot.lane.b32.xlu0 %v3927, 4
        %v3944 = vpop.permute.xlu0 %3943
        %3945 = vrot.lane.b32.xlu0 %v3928, 4
        %v3946 = vpop.permute.xlu0 %3945
        %3947 = vrot.lane.b32.xlu0 %v3929, 4
        %v3948 = vpop.permute.xlu0 %3947
        %3949 = vrot.lane.b32.xlu0 %v3930, 4
        %v3950 = vpop.permute.xlu0 %3949
        %3951 = vrot.lane.b32.xlu0 %v3931, 4
        %v3952 = vpop.permute.xlu0 %3951
        %3953 = vrot.lane.b32.xlu0 %v3932, 4
        %v3954 = vpop.permute.xlu0 %3953
        %3955 = vrot.lane.b32.xlu0 %v3933, 4
        %v3956 = vpop.permute.xlu0 %3955
        %3957 = vrot.lane.b32.xlu0 %v3934, 4
        %v3958 = vpop.permute.xlu0 %3957
        %3967 = vst.msk [vmem:[#allocation3] sm:$0xff] %vm1574, %v3944
        %3968 = vst.msk [vmem:[#allocation3 + $0x8] sm:$0xff] %vm1574, %v3946
        %3969 = vst.msk [vmem:[#allocation3 + $0x10] sm:$0xff] %vm1574, %v3948
        %3970 = vst.msk [vmem:[#allocation3 + $0x18] sm:$0xff] %vm1574, %v3950
        %3971 = vst.msk [vmem:[#allocation3 + $0x20] sm:$0xff] %vm1574, %v3952
        %3972 = vst.msk [vmem:[#allocation3 + $0x28] sm:$0xff] %vm1574, %v3954
        %3973 = vst.msk [vmem:[#allocation3 + $0x30] sm:$0xff] %vm1574, %v3956
        %3974 = vst.msk [vmem:[#allocation3 + $0x38] sm:$0xff] %vm1574, %v3958
        %v3975 = vld [vmem:[#allocation2 + $0x2] sm:$0xff]
        %v3976 = vld [vmem:[#allocation2 + $0x12] sm:$0xff]
        %v3977 = vld [vmem:[#allocation2 + $0x22] sm:$0xff]
        %v3978 = vld [vmem:[#allocation2 + $0x32] sm:$0xff]
        %v3979 = vld [vmem:[#allocation2 + $0x42] sm:$0xff]
        %v3980 = vld [vmem:[#allocation2 + $0x52] sm:$0xff]
        %v3981 = vld [vmem:[#allocation2 + $0x62] sm:$0xff]
        %v3982 = vld [vmem:[#allocation2 + $0x72] sm:$0xff]
        %3991 = vrot.lane.b32.xlu0 %v3975, 8
        %v3992 = vpop.permute.xlu0 %3991
        %3993 = vrot.lane.b32.xlu0 %v3976, 8
        %v3994 = vpop.permute.xlu0 %3993
        %3995 = vrot.lane.b32.xlu0 %v3977, 8
        %v3996 = vpop.permute.xlu0 %3995
        %3997 = vrot.lane.b32.xlu0 %v3978, 8
        %v3998 = vpop.permute.xlu0 %3997
        %3999 = vrot.lane.b32.xlu0 %v3979, 8
        %v4000 = vpop.permute.xlu0 %3999
        %4001 = vrot.lane.b32.xlu0 %v3980, 8
        %v4002 = vpop.permute.xlu0 %4001
        %4003 = vrot.lane.b32.xlu0 %v3981, 8
        %v4004 = vpop.permute.xlu0 %4003
        %4005 = vrot.lane.b32.xlu0 %v3982, 8
        %v4006 = vpop.permute.xlu0 %4005
        %4015 = vst.msk [vmem:[#allocation3] sm:$0xff] %vm1623, %v3992
        %4016 = vst.msk [vmem:[#allocation3 + $0x8] sm:$0xff] %vm1623, %v3994
        %4017 = vst.msk [vmem:[#allocation3 + $0x10] sm:$0xff] %vm1623, %v3996
        %4018 = vst.msk [vmem:[#allocation3 + $0x18] sm:$0xff] %vm1623, %v3998
        %4019 = vst.msk [vmem:[#allocation3 + $0x20] sm:$0xff] %vm1623, %v4000
        %4020 = vst.msk [vmem:[#allocation3 + $0x28] sm:$0xff] %vm1623, %v4002
        %4021 = vst.msk [vmem:[#allocation3 + $0x30] sm:$0xff] %vm1623, %v4004
        %4022 = vst.msk [vmem:[#allocation3 + $0x38] sm:$0xff] %vm1623, %v4006
        %v4023 = vld [vmem:[%s1508] sm:$0xff]
        %v4024 = vld [vmem:[%s1508 + $0x10] sm:$0xff]
        %v4025 = vld [vmem:[%s1508 + $0x20] sm:$0xff]
        %v4026 = vld [vmem:[%s1508 + $0x30] sm:$0xff]
        %v4027 = vld [vmem:[%s1508 + $0x40] sm:$0xff]
        %v4028 = vld [vmem:[%s1508 + $0x50] sm:$0xff]
        %v4029 = vld [vmem:[%s1508 + $0x60] sm:$0xff]
        %v4030 = vld [vmem:[%s1508 + $0x70] sm:$0xff]
        %4039 = vrot.lane.b32.xlu0 %v4023, 12
        %v4040 = vpop.permute.xlu0 %4039
        %4041 = vrot.lane.b32.xlu0 %v4024, 12
        %v4042 = vpop.permute.xlu0 %4041
        %4043 = vrot.lane.b32.xlu0 %v4025, 12
        %v4044 = vpop.permute.xlu0 %4043
        %4045 = vrot.lane.b32.xlu0 %v4026, 12
        %v4046 = vpop.permute.xlu0 %4045
        %4047 = vrot.lane.b32.xlu0 %v4027, 12
        %v4048 = vpop.permute.xlu0 %4047
        %4049 = vrot.lane.b32.xlu0 %v4028, 12
        %v4050 = vpop.permute.xlu0 %4049
        %4051 = vrot.lane.b32.xlu0 %v4029, 12
        %v4052 = vpop.permute.xlu0 %4051
        %4053 = vrot.lane.b32.xlu0 %v4030, 12
        %v4054 = vpop.permute.xlu0 %4053
        %4063 = vst.msk [vmem:[#allocation3] sm:$0xff] %vm1672, %v4040
        %4064 = vst.msk [vmem:[#allocation3 + $0x8] sm:$0xff] %vm1672, %v4042
        %4065 = vst.msk [vmem:[#allocation3 + $0x10] sm:$0xff] %vm1672, %v4044
        %4066 = vst.msk [vmem:[#allocation3 + $0x18] sm:$0xff] %vm1672, %v4046
        %4067 = vst.msk [vmem:[#allocation3 + $0x20] sm:$0xff] %vm1672, %v4048
        %4068 = vst.msk [vmem:[#allocation3 + $0x28] sm:$0xff] %vm1672, %v4050
        %4069 = vst.msk [vmem:[#allocation3 + $0x30] sm:$0xff] %vm1672, %v4052
        %4070 = vst.msk [vmem:[#allocation3 + $0x38] sm:$0xff] %vm1672, %v4054
        %v4071 = vld [vmem:[%s1508 + $0x1] sm:$0xff]
        %v4072 = vld [vmem:[%s1508 + $0x11] sm:$0xff]
        %v4073 = vld [vmem:[%s1508 + $0x21] sm:$0xff]
        %v4074 = vld [vmem:[%s1508 + $0x31] sm:$0xff]
        %v4075 = vld [vmem:[%s1508 + $0x41] sm:$0xff]
        %v4076 = vld [vmem:[%s1508 + $0x51] sm:$0xff]
        %v4077 = vld [vmem:[%s1508 + $0x61] sm:$0xff]
        %v4078 = vld [vmem:[%s1508 + $0x71] sm:$0xff]
        %4087 = vrot.lane.b32.xlu0 %v4071, 16
        %v4088 = vpop.permute.xlu0 %4087
        %4089 = vrot.lane.b32.xlu0 %v4072, 16
        %v4090 = vpop.permute.xlu0 %4089
        %4091 = vrot.lane.b32.xlu0 %v4073, 16
        %v4092 = vpop.permute.xlu0 %4091
        %4093 = vrot.lane.b32.xlu0 %v4074, 16
        %v4094 = vpop.permute.xlu0 %4093
        %4095 = vrot.lane.b32.xlu0 %v4075, 16
        %v4096 = vpop.permute.xlu0 %4095
        %4097 = vrot.lane.b32.xlu0 %v4076, 16
        %v4098 = vpop.permute.xlu0 %4097
        %4099 = vrot.lane.b32.xlu0 %v4077, 16
        %v4100 = vpop.permute.xlu0 %4099
        %4101 = vrot.lane.b32.xlu0 %v4078, 16
        %v4102 = vpop.permute.xlu0 %4101
        %4111 = vst.msk [vmem:[#allocation3] sm:$0xff] %vm1721, %v4088
        %4112 = vst.msk [vmem:[#allocation3 + $0x8] sm:$0xff] %vm1721, %v4090
        %4113 = vst.msk [vmem:[#allocation3 + $0x10] sm:$0xff] %vm1721, %v4092
        %4114 = vst.msk [vmem:[#allocation3 + $0x18] sm:$0xff] %vm1721, %v4094
        %4115 = vst.msk [vmem:[#allocation3 + $0x20] sm:$0xff] %vm1721, %v4096
        %4116 = vst.msk [vmem:[#allocation3 + $0x28] sm:$0xff] %vm1721, %v4098
        %4117 = vst.msk [vmem:[#allocation3 + $0x30] sm:$0xff] %vm1721, %v4100
        %4118 = vst.msk [vmem:[#allocation3 + $0x38] sm:$0xff] %vm1721, %v4102
        %v4119 = vld [vmem:[%s1508 + $0x2] sm:$0xff]
        %v4120 = vld [vmem:[%s1508 + $0x12] sm:$0xff]
        %v4121 = vld [vmem:[%s1508 + $0x22] sm:$0xff]
        %v4122 = vld [vmem:[%s1508 + $0x32] sm:$0xff]
        %v4123 = vld [vmem:[%s1508 + $0x42] sm:$0xff]
        %v4124 = vld [vmem:[%s1508 + $0x52] sm:$0xff]
        %v4125 = vld [vmem:[%s1508 + $0x62] sm:$0xff]
        %v4126 = vld [vmem:[%s1508 + $0x72] sm:$0xff]
        %4135 = vrot.lane.b32.xlu0 %v4119, 20
        %v4136 = vpop.permute.xlu0 %4135
        %4137 = vrot.lane.b32.xlu0 %v4120, 20
        %v4138 = vpop.permute.xlu0 %4137
        %4139 = vrot.lane.b32.xlu0 %v4121, 20
        %v4140 = vpop.permute.xlu0 %4139
        %4141 = vrot.lane.b32.xlu0 %v4122, 20
        %v4142 = vpop.permute.xlu0 %4141
        %4143 = vrot.lane.b32.xlu0 %v4123, 20
        %v4144 = vpop.permute.xlu0 %4143
        %4145 = vrot.lane.b32.xlu0 %v4124, 20
        %v4146 = vpop.permute.xlu0 %4145
        %4147 = vrot.lane.b32.xlu0 %v4125, 20
        %v4148 = vpop.permute.xlu0 %4147
        %4149 = vrot.lane.b32.xlu0 %v4126, 20
        %v4150 = vpop.permute.xlu0 %4149
        %4159 = vst.msk [vmem:[#allocation3] sm:$0xff] %vm1770, %v4136
        %4160 = vst.msk [vmem:[#allocation3 + $0x8] sm:$0xff] %vm1770, %v4138
        %4161 = vst.msk [vmem:[#allocation3 + $0x10] sm:$0xff] %vm1770, %v4140
        %4162 = vst.msk [vmem:[#allocation3 + $0x18] sm:$0xff] %vm1770, %v4142
        %4163 = vst.msk [vmem:[#allocation3 + $0x20] sm:$0xff] %vm1770, %v4144
        %4164 = vst.msk [vmem:[#allocation3 + $0x28] sm:$0xff] %vm1770, %v4146
        %4165 = vst.msk [vmem:[#allocation3 + $0x30] sm:$0xff] %vm1770, %v4148
        %4166 = vst.msk [vmem:[#allocation3 + $0x38] sm:$0xff] %vm1770, %v4150
        %v4167 = vld [vmem:[%s1779] sm:$0xff]
        %v4168 = vld [vmem:[%s1779 + $0x10] sm:$0xff]
        %v4169 = vld [vmem:[%s1779 + $0x20] sm:$0xff]
        %v4170 = vld [vmem:[%s1779 + $0x30] sm:$0xff]
        %v4171 = vld [vmem:[%s1779 + $0x40] sm:$0xff]
        %v4172 = vld [vmem:[%s1779 + $0x50] sm:$0xff]
        %v4173 = vld [vmem:[%s1779 + $0x60] sm:$0xff]
        %v4174 = vld [vmem:[%s1779 + $0x70] sm:$0xff]
        %4183 = vrot.lane.b32.xlu0 %v4167, 24
        %v4184 = vpop.permute.xlu0 %4183
        %4185 = vrot.lane.b32.xlu0 %v4168, 24
        %v4186 = vpop.permute.xlu0 %4185
        %4187 = vrot.lane.b32.xlu0 %v4169, 24
        %v4188 = vpop.permute.xlu0 %4187
        %4189 = vrot.lane.b32.xlu0 %v4170, 24
        %v4190 = vpop.permute.xlu0 %4189
        %4191 = vrot.lane.b32.xlu0 %v4171, 24
        %v4192 = vpop.permute.xlu0 %4191
        %4193 = vrot.lane.b32.xlu0 %v4172, 24
        %v4194 = vpop.permute.xlu0 %4193
        %4195 = vrot.lane.b32.xlu0 %v4173, 24
        %v4196 = vpop.permute.xlu0 %4195
        %4197 = vrot.lane.b32.xlu0 %v4174, 24
        %v4198 = vpop.permute.xlu0 %4197
        %4207 = vst.msk [vmem:[#allocation3] sm:$0xff] %vm1820, %v4184
        %4208 = vst.msk [vmem:[#allocation3 + $0x8] sm:$0xff] %vm1820, %v4186
        %4209 = vst.msk [vmem:[#allocation3 + $0x10] sm:$0xff] %vm1820, %v4188
        %4210 = vst.msk [vmem:[#allocation3 + $0x18] sm:$0xff] %vm1820, %v4190
        %4211 = vst.msk [vmem:[#allocation3 + $0x20] sm:$0xff] %vm1820, %v4192
        %4212 = vst.msk [vmem:[#allocation3 + $0x28] sm:$0xff] %vm1820, %v4194
        %4213 = vst.msk [vmem:[#allocation3 + $0x30] sm:$0xff] %vm1820, %v4196
        %4214 = vst.msk [vmem:[#allocation3 + $0x38] sm:$0xff] %vm1820, %v4198
        %v4215 = vld [vmem:[%s1779 + $0x1] sm:$0xff]
        %v4216 = vld [vmem:[%s1779 + $0x11] sm:$0xff]
        %v4217 = vld [vmem:[%s1779 + $0x21] sm:$0xff]
        %v4218 = vld [vmem:[%s1779 + $0x31] sm:$0xff]
        %v4219 = vld [vmem:[%s1779 + $0x41] sm:$0xff]
        %v4220 = vld [vmem:[%s1779 + $0x51] sm:$0xff]
        %v4221 = vld [vmem:[%s1779 + $0x61] sm:$0xff]
        %v4222 = vld [vmem:[%s1779 + $0x71] sm:$0xff]
        %4231 = vrot.lane.b32.xlu0 %v4215, 28
        %v4232 = vpop.permute.xlu0 %4231
        %4233 = vrot.lane.b32.xlu0 %v4216, 28
        %v4234 = vpop.permute.xlu0 %4233
        %4235 = vrot.lane.b32.xlu0 %v4217, 28
        %v4236 = vpop.permute.xlu0 %4235
        %4237 = vrot.lane.b32.xlu0 %v4218, 28
        %v4238 = vpop.permute.xlu0 %4237
        %4239 = vrot.lane.b32.xlu0 %v4219, 28
        %v4240 = vpop.permute.xlu0 %4239
        %4241 = vrot.lane.b32.xlu0 %v4220, 28
        %v4242 = vpop.permute.xlu0 %4241
        %4243 = vrot.lane.b32.xlu0 %v4221, 28
        %v4244 = vpop.permute.xlu0 %4243
        %4245 = vrot.lane.b32.xlu0 %v4222, 28
        %v4246 = vpop.permute.xlu0 %4245
        %4255 = vst.msk [vmem:[#allocation3] sm:$0xff] %vm1869, %v4232
        %4256 = vst.msk [vmem:[#allocation3 + $0x8] sm:$0xff] %vm1869, %v4234
        %4257 = vst.msk [vmem:[#allocation3 + $0x10] sm:$0xff] %vm1869, %v4236
        %4258 = vst.msk [vmem:[#allocation3 + $0x18] sm:$0xff] %vm1869, %v4238
        %4259 = vst.msk [vmem:[#allocation3 + $0x20] sm:$0xff] %vm1869, %v4240
        %4260 = vst.msk [vmem:[#allocation3 + $0x28] sm:$0xff] %vm1869, %v4242
        %4261 = vst.msk [vmem:[#allocation3 + $0x30] sm:$0xff] %vm1869, %v4244
        %4262 = vst.msk [vmem:[#allocation3 + $0x38] sm:$0xff] %vm1869, %v4246
        %v4263 = vld [vmem:[%s1779 + $0x2] sm:$0xff]
        %v4264 = vld [vmem:[%s1779 + $0x12] sm:$0xff]
        %v4265 = vld [vmem:[%s1779 + $0x22] sm:$0xff]
        %v4266 = vld [vmem:[%s1779 + $0x32] sm:$0xff]
        %v4267 = vld [vmem:[%s1779 + $0x42] sm:$0xff]
        %v4268 = vld [vmem:[%s1779 + $0x52] sm:$0xff]
        %v4269 = vld [vmem:[%s1779 + $0x62] sm:$0xff]
        %v4270 = vld [vmem:[%s1779 + $0x72] sm:$0xff]
        %4279 = vrot.lane.b32.xlu0 %v4263, 32
        %v4280 = vpop.permute.xlu0 %4279
        %4281 = vrot.lane.b32.xlu0 %v4264, 32
        %v4282 = vpop.permute.xlu0 %4281
        %4283 = vrot.lane.b32.xlu0 %v4265, 32
        %v4284 = vpop.permute.xlu0 %4283
        %4285 = vrot.lane.b32.xlu0 %v4266, 32
        %v4286 = vpop.permute.xlu0 %4285
        %4287 = vrot.lane.b32.xlu0 %v4267, 32
        %v4288 = vpop.permute.xlu0 %4287
        %4289 = vrot.lane.b32.xlu0 %v4268, 32
        %v4290 = vpop.permute.xlu0 %4289
        %4291 = vrot.lane.b32.xlu0 %v4269, 32
        %v4292 = vpop.permute.xlu0 %4291
        %4293 = vrot.lane.b32.xlu0 %v4270, 32
        %v4294 = vpop.permute.xlu0 %4293
        %4303 = vst.msk [vmem:[#allocation3] sm:$0xff] %vm1918, %v4280
        %4304 = vst.msk [vmem:[#allocation3 + $0x8] sm:$0xff] %vm1918, %v4282
        %4305 = vst.msk [vmem:[#allocation3 + $0x10] sm:$0xff] %vm1918, %v4284
        %4306 = vst.msk [vmem:[#allocation3 + $0x18] sm:$0xff] %vm1918, %v4286
        %4307 = vst.msk [vmem:[#allocation3 + $0x20] sm:$0xff] %vm1918, %v4288
        %4308 = vst.msk [vmem:[#allocation3 + $0x28] sm:$0xff] %vm1918, %v4290
        %4309 = vst.msk [vmem:[#allocation3 + $0x30] sm:$0xff] %vm1918, %v4292
        %4310 = vst.msk [vmem:[#allocation3 + $0x38] sm:$0xff] %vm1918, %v4294
        %v4311 = vld [vmem:[#allocation3] sm:$0xff]
        %v4312 = vld [vmem:[#allocation3 + $0x8] sm:$0xff]
        %v4313 = vld [vmem:[#allocation3 + $0x10] sm:$0xff]
        %v4314 = vld [vmem:[#allocation3 + $0x18] sm:$0xff]
        %v4315 = vld [vmem:[#allocation3 + $0x20] sm:$0xff]
        %v4316 = vld [vmem:[#allocation3 + $0x28] sm:$0xff]
        %v4317 = vld [vmem:[#allocation3 + $0x30] sm:$0xff]
        %v4318 = vld [vmem:[#allocation3 + $0x38] sm:$0xff]
        %v4319 = vld [vmem:[%s7] sm:$0xff]
        %v4320 = vld [vmem:[%s7 + $0x8] sm:$0xff]
        %v4321 = vld [vmem:[%s7 + $0x10] sm:$0xff]
        %v4322 = vld [vmem:[%s7 + $0x18] sm:$0xff]
        %v4323 = vld [vmem:[%s7 + $0x20] sm:$0xf]
        %v4325 = vsel %vm1940, %v4311, 0
        %v4328 = vsel %vm1940, %v4312, 0
        %v4331 = vsel %vm1940, %v4313, 0
        %v4334 = vsel %vm1940, %v4314, 0
        %v4337 = vsel %vm1940, %v4315, 0
        %v4340 = vsel %vm1940, %v4316, 0
        %v4343 = vsel %vm1940, %v4317, 0
        %v4346 = vsel %vm1940, %v4318, 0
        %v4349 = vsel %vm1965, %v4323, 0
        %4351 = vmatprep.subr.mxu0 0.0
        %4352 = vmatpush1.msra.mxu0 0.0
        %4353 = vmatprep.subr.mxu0 0.0
        %4354 = vmatpush1.msra.mxu0 0.0
        %4355 = vmatprep.subr.mxu0 0.0
        %4356 = vmatpush1.msra.mxu0 0.0
        %4357 = vmatprep.subr.mxu0 0.0
        %4358 = vmatpush1.msra.mxu0 0.0
        %4359 = vmatprep.subr.mxu0 0.0
        %4360 = vmatpush1.msra.mxu0 0.0
        %4361 = vmatprep.subr.mxu0 0.0
        %4362 = vmatpush1.msra.mxu0 0.0
        %4363 = vmatprep.subr.mxu0 0.0
        %4364 = vmatpush1.msra.mxu0 0.0
        %4365 = vmatprep.subr.mxu0 0.0
        %4366 = vmatpush1.msra.mxu0 0.0
        %4367 = vmatprep.subr.mxu0 0.0
        %4368 = vmatpush1.msra.mxu0 0.0
        %4369 = vmatprep.subr.mxu0 0.0
        %4370 = vmatpush1.msra.mxu0 0.0
        %4371 = vmatprep.subr.mxu0 0.0
        %4372 = vmatpush1.msra.mxu0 0.0
        %4373 = vmatprep.subr.mxu0 0.0
        %4374 = vmatpush1.msra.mxu0 %v4349
        %4375 = vmatprep.subr.mxu0 0.0
        %4376 = vmatpush1.msra.mxu0 %v4322
        %4377 = vmatprep.subr.mxu0 0.0
        %4378 = vmatpush1.msra.mxu0 %v4321
        %4379 = vmatprep.subr.mxu0 0.0
        %4380 = vmatpush1.msra.mxu0 %v4320
        %4381 = vmatprep.subr.mxu0 0.0
        %4382 = vmatpush1.msra.mxu0 %v4319
        %4383 = vmatprep.subr.mxu0 0.0
        %4384 = vmatpush2.msra.mxu0 0.0
        %4385 = vmatprep.subr.mxu0 0.0
        %4386 = vmatpush2.msra.mxu0 0.0
        %4387 = vmatprep.subr.mxu0 0.0
        %4388 = vmatpush2.msra.mxu0 0.0
        %4389 = vmatprep.subr.mxu0 0.0
        %4390 = vmatpush2.msra.mxu0 0.0
        %4391 = vmatprep.subr.mxu0 0.0
        %4392 = vmatpush2.msra.mxu0 0.0
        %4393 = vmatprep.subr.mxu0 0.0
        %4394 = vmatpush2.msra.mxu0 0.0
        %4395 = vmatprep.subr.mxu0 0.0
        %4396 = vmatpush2.msra.mxu0 0.0
        %4397 = vmatprep.subr.mxu0 0.0
        %4398 = vmatpush2.msra.mxu0 0.0
        %4399 = vmatprep.subr.mxu0 0.0
        %4400 = vmatpush2.msra.mxu0 0.0
        %4401 = vmatprep.subr.mxu0 0.0
        %4402 = vmatpush2.msra.mxu0 0.0
        %4403 = vmatprep.subr.mxu0 0.0
        %4404 = vmatpush2.msra.mxu0 0.0
        %4405 = vmatprep.subr.mxu0 0.0
        %4406 = vmatpush2.msra.mxu0 0.0
        %4407 = vmatprep.subr.mxu0 0.0
        %4408 = vmatpush2.msra.mxu0 0.0
        %4409 = vmatprep.subr.mxu0 0.0
        %4410 = vmatpush2.msra.mxu0 0.0
        %4411 = vmatprep.subr.mxu0 0.0
        %4412 = vmatpush2.msra.mxu0 0.0
        %4413 = vmatprep.subr.mxu0 0.0
        %4414 = vmatpush2.msra.mxu0 0.0
        %4415 = vmatprep.mubr.f32.mxu0 0.0
        %4416 = vmatmul.mubr.f32.gmra.mxu0 %v4325
        %v4417 = vpop.f32.mrf.mxu0
        %v4418 = vadd.f32 0.0, %v4417
        %v4419 = vpop.f32.mrf.mxu0
        %4420 = vmatprep.mubr.f32.mxu0 0.0
        %4421 = vmatmul.mubr.f32.gmra.mxu0 %v4328
        %v4422 = vpop.f32.mrf.mxu0
        %v4423 = vadd.f32 0.0, %v4422
        %v4424 = vpop.f32.mrf.mxu0
        %4425 = vmatprep.mubr.f32.mxu0 0.0
        %4426 = vmatmul.mubr.f32.gmra.mxu0 %v4331
        %v4427 = vpop.f32.mrf.mxu0
        %v4428 = vadd.f32 0.0, %v4427
        %v4429 = vpop.f32.mrf.mxu0
        %4430 = vmatprep.mubr.f32.mxu0 0.0
        %4431 = vmatmul.mubr.f32.gmra.mxu0 %v4334
        %v4432 = vpop.f32.mrf.mxu0
        %v4433 = vadd.f32 0.0, %v4432
        %v4434 = vpop.f32.mrf.mxu0
        %4435 = vmatprep.mubr.f32.mxu0 0.0
        %4436 = vmatmul.mubr.f32.gmra.mxu0 %v4337
        %v4437 = vpop.f32.mrf.mxu0
        %v4438 = vadd.f32 0.0, %v4437
        %v4439 = vpop.f32.mrf.mxu0
        %4440 = vmatprep.mubr.f32.mxu0 0.0
        %4441 = vmatmul.mubr.f32.gmra.mxu0 %v4340
        %v4442 = vpop.f32.mrf.mxu0
        %v4443 = vadd.f32 0.0, %v4442
        %v4444 = vpop.f32.mrf.mxu0
        %4445 = vmatprep.mubr.f32.mxu0 0.0
        %4446 = vmatmul.mubr.f32.gmra.mxu0 %v4343
        %v4447 = vpop.f32.mrf.mxu0
        %v4448 = vadd.f32 0.0, %v4447
        %v4449 = vpop.f32.mrf.mxu0
        %4450 = vmatprep.mubr.f32.mxu0 0.0
        %4451 = vmatmul.mubr.f32.gmra.mxu0 %v4346
        %v4452 = vpop.f32.mrf.mxu0
        %v4453 = vadd.f32 0.0, %v4452
        %v4454 = vpop.f32.mrf.mxu0
        %4455 = vdwg.mxu0
        %v4456 = vsel %vm439, %v4418, 0.0
        %v4457 = vsel %vm439, %v4423, 0.0
        %v4458 = vadd.f32 %v4456, %v4457
        %v4459 = vsel %vm439, %v4428, 0.0
        %v4460 = vadd.f32 %v4458, %v4459
        %v4461 = vsel %vm439, %v4433, 0.0
        %v4462 = vadd.f32 %v4460, %v4461
        %v4463 = vsel %vm439, %v4438, 0.0
        %v4464 = vadd.f32 %v4462, %v4463
        %v4465 = vsel %vm439, %v4443, 0.0
        %v4466 = vadd.f32 %v4464, %v4465
        %v4467 = vsel %vm439, %v4448, 0.0
        %v4468 = vadd.f32 %v4466, %v4467
        %v4469 = vsel %vm439, %v4453, 0.0
        %v4470 = vadd.f32 %v4468, %v4469
        %4471 = vadd.xlane.f32.xlu0 %v4470
        %v4472 = vpop.xlane.xlu0 %4471
        %v4473 = vrot.slane %v4472, 4
        %v4474 = vadd.f32 %v4472, %v4473
        %v4475 = vrot.slane %v4474, 2
        %v4476 = vadd.f32 %v4474, %v4475
        %v4477 = vrot.slane %v4476, 1
        %v4478 = vadd.f32 %v4476, %v4477
        %s4479 = vtos %v4478
        %v4480 = vrcp.pop 512.0
        %s4481 = vtos %v4480
        %s4482 = smul.f32 %s4479, %s4481
        %v4483 = vstv %s4482
        %v4484 = vsub.f32 %v4418, %v4483
        %v4485 = vsub.f32 %v4423, %v4483
        %v4486 = vsub.f32 %v4428, %v4483
        %v4487 = vsub.f32 %v4433, %v4483
        %v4488 = vsub.f32 %v4438, %v4483
        %v4489 = vsub.f32 %v4443, %v4483
        %v4490 = vsub.f32 %v4448, %v4483
        %v4491 = vsub.f32 %v4453, %v4483
        %v4492 = vmul.f32 %v4484, %v4484
        %v4493 = vmul.f32 %v4485, %v4485
        %v4494 = vmul.f32 %v4486, %v4486
        %v4495 = vmul.f32 %v4487, %v4487
        %v4496 = vmul.f32 %v4488, %v4488
        %v4497 = vmul.f32 %v4489, %v4489
        %v4498 = vmul.f32 %v4490, %v4490
        %v4499 = vmul.f32 %v4491, %v4491
        %v4500 = vsel %vm439, %v4492, 0.0
        %v4501 = vsel %vm439, %v4493, 0.0
        %v4502 = vadd.f32 %v4500, %v4501
        %v4503 = vsel %vm439, %v4494, 0.0
        %v4504 = vadd.f32 %v4502, %v4503
        %v4505 = vsel %vm439, %v4495, 0.0
        %v4506 = vadd.f32 %v4504, %v4505
        %v4507 = vsel %vm439, %v4496, 0.0
        %v4508 = vadd.f32 %v4506, %v4507
        %v4509 = vsel %vm439, %v4497, 0.0
        %v4510 = vadd.f32 %v4508, %v4509
        %v4511 = vsel %vm439, %v4498, 0.0
        %v4512 = vadd.f32 %v4510, %v4511
        %v4513 = vsel %vm439, %v4499, 0.0
        %v4514 = vadd.f32 %v4512, %v4513
        %4515 = vadd.xlane.f32.xlu0 %v4514
        %v4516 = vpop.xlane.xlu0 %4515
        %v4517 = vrot.slane %v4516, 4
        %v4518 = vadd.f32 %v4516, %v4517
        %v4519 = vrot.slane %v4518, 2
        %v4520 = vadd.f32 %v4518, %v4519
        %v4521 = vrot.slane %v4520, 1
        %v4522 = vadd.f32 %v4520, %v4521
        %s4523 = vtos %v4522
        %v4524 = vrcp.pop 512.0
        %s4525 = vtos %v4524
        %s4526 = smul.f32 %s4523, %s4525
        %s4527 = sadd.f32 %s4526, 1e-05
        %v4528 = vstv %s4527
        %v4529 = vrsqrt.pop %v4528
        %s4530 = vtos %v4529
        %v4531 = vstv %s4530
        %v4532 = vmul.f32 %v4484, %v4531
        %v4533 = vmul.f32 %v4485, %v4531
        %v4534 = vmul.f32 %v4486, %v4531
        %v4535 = vmul.f32 %v4487, %v4531
        %v4536 = vmul.f32 %v4488, %v4531
        %v4537 = vmul.f32 %v4489, %v4531
        %v4538 = vmul.f32 %v4490, %v4531
        %v4539 = vmul.f32 %v4491, %v4531
        %v4540 = vld [vmem:[%s8] sm:$0x1]
        %v4542 = vlaneseq
        %v4543 = vshrl.u32 %v4542, 7
        %v4544 = vsub.s32 0, %v4543
        %v4545 = vrot.slane %v4540, %v4544
        %v4547 = vmul.f32 %v4532, %v4545
        %v4548 = vmul.f32 %v4533, %v4545
        %v4549 = vmul.f32 %v4534, %v4545
        %v4550 = vmul.f32 %v4535, %v4545
        %v4551 = vmul.f32 %v4536, %v4545
        %v4552 = vmul.f32 %v4537, %v4545
        %v4553 = vmul.f32 %v4538, %v4545
        %v4554 = vmul.f32 %v4539, %v4545
        %v4555 = vld [vmem:[%s9] sm:$0x1]
        %v4557 = vlaneseq
        %v4558 = vshrl.u32 %v4557, 7
        %v4559 = vsub.s32 0, %v4558
        %v4560 = vrot.slane %v4555, %v4559
        %v4562 = vadd.f32 %v4547, %v4560
        %v4563 = vadd.f32 %v4548, %v4560
        %v4564 = vadd.f32 %v4549, %v4560
        %v4565 = vadd.f32 %v4550, %v4560
        %v4566 = vadd.f32 %v4551, %v4560
        %v4567 = vadd.f32 %v4552, %v4560
        %v4568 = vadd.f32 %v4553, %v4560
        %v4569 = vadd.f32 %v4554, %v4560
        %v4570 = vmul.f32 %v4562, 0.5
        %v4571 = vmul.f32 %v4563, 0.5
        %v4572 = vmul.f32 %v4564, 0.5
        %v4573 = vmul.f32 %v4565, 0.5
        %v4574 = vmul.f32 %v4566, 0.5
        %v4575 = vmul.f32 %v4567, 0.5
        %v4576 = vmul.f32 %v4568, 0.5
        %v4577 = vmul.f32 %v4569, 0.5
        %v4578 = vmul.f32 %v4562, 0.70710677
        %v4579 = vmul.f32 %v4563, 0.70710677
        %v4580 = vmul.f32 %v4564, 0.70710677
        %v4581 = vmul.f32 %v4565, 0.70710677
        %v4582 = vmul.f32 %v4566, 0.70710677
        %v4583 = vmul.f32 %v4567, 0.70710677
        %v4584 = vmul.f32 %v4568, 0.70710677
        %v4585 = vmul.f32 %v4569, 0.70710677
        %v4586 = verf.f32.pop %v4578
        %v4587 = verf.f32.pop %v4579
        %v4588 = verf.f32.pop %v4580
        %v4589 = verf.f32.pop %v4581
        %v4590 = verf.f32.pop %v4582
        %v4591 = verf.f32.pop %v4583
        %v4592 = verf.f32.pop %v4584
        %v4593 = verf.f32.pop %v4585
        %v4594 = vadd.f32 %v4586, 1.0
        %v4595 = vadd.f32 %v4587, 1.0
        %v4596 = vadd.f32 %v4588, 1.0
        %v4597 = vadd.f32 %v4589, 1.0
        %v4598 = vadd.f32 %v4590, 1.0
        %v4599 = vadd.f32 %v4591, 1.0
        %v4600 = vadd.f32 %v4592, 1.0
        %v4601 = vadd.f32 %v4593, 1.0
        %v4602 = vmul.f32 %v4570, %v4594
        %v4603 = vmul.f32 %v4571, %v4595
        %v4604 = vmul.f32 %v4572, %v4596
        %v4605 = vmul.f32 %v4573, %v4597
        %v4606 = vmul.f32 %v4574, %v4598
        %v4607 = vmul.f32 %v4575, %v4599
        %v4608 = vmul.f32 %v4576, %v4600
        %v4609 = vmul.f32 %v4577, %v4601
        %4610 = vst.msk [vmem:[%s1508 + $0x1] sm:$0xff] %vm439, %v4602
        %4611 = vst.msk [vmem:[%s1508 + $0x11] sm:$0xff] %vm439, %v4603
        %4612 = vst.msk [vmem:[%s1508 + $0x21] sm:$0xff] %vm439, %v4604
        %4613 = vst.msk [vmem:[%s1508 + $0x31] sm:$0xff] %vm439, %v4605
        %4614 = vst.msk [vmem:[%s1508 + $0x41] sm:$0xff] %vm439, %v4606
        %4615 = vst.msk [vmem:[%s1508 + $0x51] sm:$0xff] %vm439, %v4607
        %4616 = vst.msk [vmem:[%s1508 + $0x61] sm:$0xff] %vm439, %v4608
        %4617 = vst.msk [vmem:[%s1508 + $0x71] sm:$0xff] %vm439, %v4609
        %v4618 = vld [vmem:[#allocation2] sm:$0xff]
        %v4619 = vld [vmem:[#allocation2 + $0x10] sm:$0xff]
        %v4620 = vld [vmem:[#allocation2 + $0x20] sm:$0xff]
        %v4621 = vld [vmem:[#allocation2 + $0x30] sm:$0xff]
        %v4622 = vld [vmem:[#allocation2 + $0x40] sm:$0xff]
        %v4623 = vld [vmem:[#allocation2 + $0x50] sm:$0xff]
        %v4624 = vld [vmem:[#allocation2 + $0x60] sm:$0xff]
        %v4625 = vld [vmem:[#allocation2 + $0x70] sm:$0xff]
        %4626 = vst.msk [vmem:[#allocation3] sm:$0xff] %vm439, %v4618
        %4627 = vst.msk [vmem:[#allocation3 + $0x8] sm:$0xff] %vm439, %v4619
        %4628 = vst.msk [vmem:[#allocation3 + $0x10] sm:$0xff] %vm439, %v4620
        %4629 = vst.msk [vmem:[#allocation3 + $0x18] sm:$0xff] %vm439, %v4621
        %4630 = vst.msk [vmem:[#allocation3 + $0x20] sm:$0xff] %vm439, %v4622
        %4631 = vst.msk [vmem:[#allocation3 + $0x28] sm:$0xff] %vm439, %v4623
        %4632 = vst.msk [vmem:[#allocation3 + $0x30] sm:$0xff] %vm439, %v4624
        %4633 = vst.msk [vmem:[#allocation3 + $0x38] sm:$0xff] %vm439, %v4625
        %v4634 = vld [vmem:[#allocation2 + $0x1] sm:$0xff]
        %v4635 = vld [vmem:[#allocation2 + $0x11] sm:$0xff]
        %v4636 = vld [vmem:[#allocation2 + $0x21] sm:$0xff]
        %v4637 = vld [vmem:[#allocation2 + $0x31] sm:$0xff]
        %v4638 = vld [vmem:[#allocation2 + $0x41] sm:$0xff]
        %v4639 = vld [vmem:[#allocation2 + $0x51] sm:$0xff]
        %v4640 = vld [vmem:[#allocation2 + $0x61] sm:$0xff]
        %v4641 = vld [vmem:[#allocation2 + $0x71] sm:$0xff]
        %4650 = vrot.lane.b32.xlu0 %v4634, 8
        %v4651 = vpop.permute.xlu0 %4650
        %4652 = vrot.lane.b32.xlu0 %v4635, 8
        %v4653 = vpop.permute.xlu0 %4652
        %4654 = vrot.lane.b32.xlu0 %v4636, 8
        %v4655 = vpop.permute.xlu0 %4654
        %4656 = vrot.lane.b32.xlu0 %v4637, 8
        %v4657 = vpop.permute.xlu0 %4656
        %4658 = vrot.lane.b32.xlu0 %v4638, 8
        %v4659 = vpop.permute.xlu0 %4658
        %4660 = vrot.lane.b32.xlu0 %v4639, 8
        %v4661 = vpop.permute.xlu0 %4660
        %4662 = vrot.lane.b32.xlu0 %v4640, 8
        %v4663 = vpop.permute.xlu0 %4662
        %4664 = vrot.lane.b32.xlu0 %v4641, 8
        %v4665 = vpop.permute.xlu0 %4664
        %vm4674 = vcmask 130112
        %4675 = vst.msk [vmem:[#allocation3] sm:$0xff] %vm4674, %v4651
        %4676 = vst.msk [vmem:[#allocation3 + $0x8] sm:$0xff] %vm4674, %v4653
        %4677 = vst.msk [vmem:[#allocation3 + $0x10] sm:$0xff] %vm4674, %v4655
        %4678 = vst.msk [vmem:[#allocation3 + $0x18] sm:$0xff] %vm4674, %v4657
        %4679 = vst.msk [vmem:[#allocation3 + $0x20] sm:$0xff] %vm4674, %v4659
        %4680 = vst.msk [vmem:[#allocation3 + $0x28] sm:$0xff] %vm4674, %v4661
        %4681 = vst.msk [vmem:[#allocation3 + $0x30] sm:$0xff] %vm4674, %v4663
        %4682 = vst.msk [vmem:[#allocation3 + $0x38] sm:$0xff] %vm4674, %v4665
        %v4683 = vld [vmem:[#allocation2 + $0x2] sm:$0xff]
        %v4684 = vld [vmem:[#allocation2 + $0x12] sm:$0xff]
        %v4685 = vld [vmem:[#allocation2 + $0x22] sm:$0xff]
        %v4686 = vld [vmem:[#allocation2 + $0x32] sm:$0xff]
        %v4687 = vld [vmem:[#allocation2 + $0x42] sm:$0xff]
        %v4688 = vld [vmem:[#allocation2 + $0x52] sm:$0xff]
        %v4689 = vld [vmem:[#allocation2 + $0x62] sm:$0xff]
        %v4690 = vld [vmem:[#allocation2 + $0x72] sm:$0xff]
        %4699 = vrot.lane.b32.xlu0 %v4683, 16
        %v4700 = vpop.permute.xlu0 %4699
        %4701 = vrot.lane.b32.xlu0 %v4684, 16
        %v4702 = vpop.permute.xlu0 %4701
        %4703 = vrot.lane.b32.xlu0 %v4685, 16
        %v4704 = vpop.permute.xlu0 %4703
        %4705 = vrot.lane.b32.xlu0 %v4686, 16
        %v4706 = vpop.permute.xlu0 %4705
        %4707 = vrot.lane.b32.xlu0 %v4687, 16
        %v4708 = vpop.permute.xlu0 %4707
        %4709 = vrot.lane.b32.xlu0 %v4688, 16
        %v4710 = vpop.permute.xlu0 %4709
        %4711 = vrot.lane.b32.xlu0 %v4689, 16
        %v4712 = vpop.permute.xlu0 %4711
        %4713 = vrot.lane.b32.xlu0 %v4690, 16
        %v4714 = vpop.permute.xlu0 %4713
        %vm4723 = vcmask 195712
        %4724 = vst.msk [vmem:[#allocation3] sm:$0xff] %vm4723, %v4700
        %4725 = vst.msk [vmem:[#allocation3 + $0x8] sm:$0xff] %vm4723, %v4702
        %4726 = vst.msk [vmem:[#allocation3 + $0x10] sm:$0xff] %vm4723, %v4704
        %4727 = vst.msk [vmem:[#allocation3 + $0x18] sm:$0xff] %vm4723, %v4706
        %4728 = vst.msk [vmem:[#allocation3 + $0x20] sm:$0xff] %vm4723, %v4708
        %4729 = vst.msk [vmem:[#allocation3 + $0x28] sm:$0xff] %vm4723, %v4710
        %4730 = vst.msk [vmem:[#allocation3 + $0x30] sm:$0xff] %vm4723, %v4712
        %4731 = vst.msk [vmem:[#allocation3 + $0x38] sm:$0xff] %vm4723, %v4714
        %v4732 = vld [vmem:[%s1508] sm:$0xff]
        %v4733 = vld [vmem:[%s1508 + $0x10] sm:$0xff]
        %v4734 = vld [vmem:[%s1508 + $0x20] sm:$0xff]
        %v4735 = vld [vmem:[%s1508 + $0x30] sm:$0xff]
        %v4736 = vld [vmem:[%s1508 + $0x40] sm:$0xff]
        %v4737 = vld [vmem:[%s1508 + $0x50] sm:$0xff]
        %v4738 = vld [vmem:[%s1508 + $0x60] sm:$0xff]
        %v4739 = vld [vmem:[%s1508 + $0x70] sm:$0xff]
        %4748 = vrot.lane.b32.xlu0 %v4732, 24
        %v4749 = vpop.permute.xlu0 %4748
        %4750 = vrot.lane.b32.xlu0 %v4733, 24
        %v4751 = vpop.permute.xlu0 %4750
        %4752 = vrot.lane.b32.xlu0 %v4734, 24
        %v4753 = vpop.permute.xlu0 %4752
        %4754 = vrot.lane.b32.xlu0 %v4735, 24
        %v4755 = vpop.permute.xlu0 %4754
        %4756 = vrot.lane.b32.xlu0 %v4736, 24
        %v4757 = vpop.permute.xlu0 %4756
        %4758 = vrot.lane.b32.xlu0 %v4737, 24
        %v4759 = vpop.permute.xlu0 %4758
        %4760 = vrot.lane.b32.xlu0 %v4738, 24
        %v4761 = vpop.permute.xlu0 %4760
        %4762 = vrot.lane.b32.xlu0 %v4739, 24
        %v4763 = vpop.permute.xlu0 %4762
        %vm4772 = vcmask 261312
        %4773 = vst.msk [vmem:[#allocation3] sm:$0xff] %vm4772, %v4749
        %4774 = vst.msk [vmem:[#allocation3 + $0x8] sm:$0xff] %vm4772, %v4751
        %4775 = vst.msk [vmem:[#allocation3 + $0x10] sm:$0xff] %vm4772, %v4753
        %4776 = vst.msk [vmem:[#allocation3 + $0x18] sm:$0xff] %vm4772, %v4755
        %4777 = vst.msk [vmem:[#allocation3 + $0x20] sm:$0xff] %vm4772, %v4757
        %4778 = vst.msk [vmem:[#allocation3 + $0x28] sm:$0xff] %vm4772, %v4759
        %4779 = vst.msk [vmem:[#allocation3 + $0x30] sm:$0xff] %vm4772, %v4761
        %4780 = vst.msk [vmem:[#allocation3 + $0x38] sm:$0xff] %vm4772, %v4763
        %v4781 = vld [vmem:[%s1508 + $0x1] sm:$0xff]
        %v4782 = vld [vmem:[%s1508 + $0x11] sm:$0xff]
        %v4783 = vld [vmem:[%s1508 + $0x21] sm:$0xff]
        %v4784 = vld [vmem:[%s1508 + $0x31] sm:$0xff]
        %v4785 = vld [vmem:[%s1508 + $0x41] sm:$0xff]
        %v4786 = vld [vmem:[%s1508 + $0x51] sm:$0xff]
        %v4787 = vld [vmem:[%s1508 + $0x61] sm:$0xff]
        %v4788 = vld [vmem:[%s1508 + $0x71] sm:$0xff]
        %4797 = vrot.lane.b32.xlu0 %v4781, 32
        %v4798 = vpop.permute.xlu0 %4797
        %4799 = vrot.lane.b32.xlu0 %v4782, 32
        %v4800 = vpop.permute.xlu0 %4799
        %4801 = vrot.lane.b32.xlu0 %v4783, 32
        %v4802 = vpop.permute.xlu0 %4801
        %4803 = vrot.lane.b32.xlu0 %v4784, 32
        %v4804 = vpop.permute.xlu0 %4803
        %4805 = vrot.lane.b32.xlu0 %v4785, 32
        %v4806 = vpop.permute.xlu0 %4805
        %4807 = vrot.lane.b32.xlu0 %v4786, 32
        %v4808 = vpop.permute.xlu0 %4807
        %4809 = vrot.lane.b32.xlu0 %v4787, 32
        %v4810 = vpop.permute.xlu0 %4809
        %4811 = vrot.lane.b32.xlu0 %v4788, 32
        %v4812 = vpop.permute.xlu0 %4811
        %vm4821 = vcmask 326912
        %4822 = vst.msk [vmem:[#allocation3] sm:$0xff] %vm4821, %v4798
        %4823 = vst.msk [vmem:[#allocation3 + $0x8] sm:$0xff] %vm4821, %v4800
        %4824 = vst.msk [vmem:[#allocation3 + $0x10] sm:$0xff] %vm4821, %v4802
        %4825 = vst.msk [vmem:[#allocation3 + $0x18] sm:$0xff] %vm4821, %v4804
        %4826 = vst.msk [vmem:[#allocation3 + $0x20] sm:$0xff] %vm4821, %v4806
        %4827 = vst.msk [vmem:[#allocation3 + $0x28] sm:$0xff] %vm4821, %v4808
        %4828 = vst.msk [vmem:[#allocation3 + $0x30] sm:$0xff] %vm4821, %v4810
        %4829 = vst.msk [vmem:[#allocation3 + $0x38] sm:$0xff] %vm4821, %v4812
        %v4830 = vld [vmem:[%s1508 + $0x2] sm:$0xff]
        %v4831 = vld [vmem:[%s1508 + $0x12] sm:$0xff]
        %v4832 = vld [vmem:[%s1508 + $0x22] sm:$0xff]
        %v4833 = vld [vmem:[%s1508 + $0x32] sm:$0xff]
        %v4834 = vld [vmem:[%s1508 + $0x42] sm:$0xff]
        %v4835 = vld [vmem:[%s1508 + $0x52] sm:$0xff]
        %v4836 = vld [vmem:[%s1508 + $0x62] sm:$0xff]
        %v4837 = vld [vmem:[%s1508 + $0x72] sm:$0xff]
        %4846 = vrot.lane.b32.xlu0 %v4830, 40
        %v4847 = vpop.permute.xlu0 %4846
        %4848 = vrot.lane.b32.xlu0 %v4831, 40
        %v4849 = vpop.permute.xlu0 %4848
        %4850 = vrot.lane.b32.xlu0 %v4832, 40
        %v4851 = vpop.permute.xlu0 %4850
        %4852 = vrot.lane.b32.xlu0 %v4833, 40
        %v4853 = vpop.permute.xlu0 %4852
        %4854 = vrot.lane.b32.xlu0 %v4834, 40
        %v4855 = vpop.permute.xlu0 %4854
        %4856 = vrot.lane.b32.xlu0 %v4835, 40
        %v4857 = vpop.permute.xlu0 %4856
        %4858 = vrot.lane.b32.xlu0 %v4836, 40
        %v4859 = vpop.permute.xlu0 %4858
        %4860 = vrot.lane.b32.xlu0 %v4837, 40
        %v4861 = vpop.permute.xlu0 %4860
        %vm4870 = vcmask 392512
        %4871 = vst.msk [vmem:[#allocation3] sm:$0xff] %vm4870, %v4847
        %4872 = vst.msk [vmem:[#allocation3 + $0x8] sm:$0xff] %vm4870, %v4849
        %4873 = vst.msk [vmem:[#allocation3 + $0x10] sm:$0xff] %vm4870, %v4851
        %4874 = vst.msk [vmem:[#allocation3 + $0x18] sm:$0xff] %vm4870, %v4853
        %4875 = vst.msk [vmem:[#allocation3 + $0x20] sm:$0xff] %vm4870, %v4855
        %4876 = vst.msk [vmem:[#allocation3 + $0x28] sm:$0xff] %vm4870, %v4857
        %4877 = vst.msk [vmem:[#allocation3 + $0x30] sm:$0xff] %vm4870, %v4859
        %4878 = vst.msk [vmem:[#allocation3 + $0x38] sm:$0xff] %vm4870, %v4861
        %v4879 = vld [vmem:[%s1779] sm:$0xff]
        %v4880 = vld [vmem:[%s1779 + $0x10] sm:$0xff]
        %v4881 = vld [vmem:[%s1779 + $0x20] sm:$0xff]
        %v4882 = vld [vmem:[%s1779 + $0x30] sm:$0xff]
        %v4883 = vld [vmem:[%s1779 + $0x40] sm:$0xff]
        %v4884 = vld [vmem:[%s1779 + $0x50] sm:$0xff]
        %v4885 = vld [vmem:[%s1779 + $0x60] sm:$0xff]
        %v4886 = vld [vmem:[%s1779 + $0x70] sm:$0xff]
        %4895 = vrot.lane.b32.xlu0 %v4879, 48
        %v4896 = vpop.permute.xlu0 %4895
        %4897 = vrot.lane.b32.xlu0 %v4880, 48
        %v4898 = vpop.permute.xlu0 %4897
        %4899 = vrot.lane.b32.xlu0 %v4881, 48
        %v4900 = vpop.permute.xlu0 %4899
        %4901 = vrot.lane.b32.xlu0 %v4882, 48
        %v4902 = vpop.permute.xlu0 %4901
        %4903 = vrot.lane.b32.xlu0 %v4883, 48
        %v4904 = vpop.permute.xlu0 %4903
        %4905 = vrot.lane.b32.xlu0 %v4884, 48
        %v4906 = vpop.permute.xlu0 %4905
        %4907 = vrot.lane.b32.xlu0 %v4885, 48
        %v4908 = vpop.permute.xlu0 %4907
        %4909 = vrot.lane.b32.xlu0 %v4886, 48
        %v4910 = vpop.permute.xlu0 %4909
        %vm4919 = vcmask 458112
        %4920 = vst.msk [vmem:[#allocation3] sm:$0xff] %vm4919, %v4896
        %4921 = vst.msk [vmem:[#allocation3 + $0x8] sm:$0xff] %vm4919, %v4898
        %4922 = vst.msk [vmem:[#allocation3 + $0x10] sm:$0xff] %vm4919, %v4900
        %4923 = vst.msk [vmem:[#allocation3 + $0x18] sm:$0xff] %vm4919, %v4902
        %4924 = vst.msk [vmem:[#allocation3 + $0x20] sm:$0xff] %vm4919, %v4904
        %4925 = vst.msk [vmem:[#allocation3 + $0x28] sm:$0xff] %vm4919, %v4906
        %4926 = vst.msk [vmem:[#allocation3 + $0x30] sm:$0xff] %vm4919, %v4908
        %4927 = vst.msk [vmem:[#allocation3 + $0x38] sm:$0xff] %vm4919, %v4910
        %v4928 = vld [vmem:[%s1779 + $0x1] sm:$0xff]
        %v4929 = vld [vmem:[%s1779 + $0x11] sm:$0xff]
        %v4930 = vld [vmem:[%s1779 + $0x21] sm:$0xff]
        %v4931 = vld [vmem:[%s1779 + $0x31] sm:$0xff]
        %v4932 = vld [vmem:[%s1779 + $0x41] sm:$0xff]
        %v4933 = vld [vmem:[%s1779 + $0x51] sm:$0xff]
        %v4934 = vld [vmem:[%s1779 + $0x61] sm:$0xff]
        %v4935 = vld [vmem:[%s1779 + $0x71] sm:$0xff]
        %4944 = vrot.lane.b32.xlu0 %v4928, 56
        %v4945 = vpop.permute.xlu0 %4944
        %4946 = vrot.lane.b32.xlu0 %v4929, 56
        %v4947 = vpop.permute.xlu0 %4946
        %4948 = vrot.lane.b32.xlu0 %v4930, 56
        %v4949 = vpop.permute.xlu0 %4948
        %4950 = vrot.lane.b32.xlu0 %v4931, 56
        %v4951 = vpop.permute.xlu0 %4950
        %4952 = vrot.lane.b32.xlu0 %v4932, 56
        %v4953 = vpop.permute.xlu0 %4952
        %4954 = vrot.lane.b32.xlu0 %v4933, 56
        %v4955 = vpop.permute.xlu0 %4954
        %4956 = vrot.lane.b32.xlu0 %v4934, 56
        %v4957 = vpop.permute.xlu0 %4956
        %4958 = vrot.lane.b32.xlu0 %v4935, 56
        %v4959 = vpop.permute.xlu0 %4958
        %vm4968 = vcmask 523712
        %4969 = vst.msk [vmem:[#allocation3] sm:$0xff] %vm4968, %v4945
        %4970 = vst.msk [vmem:[#allocation3 + $0x8] sm:$0xff] %vm4968, %v4947
        %4971 = vst.msk [vmem:[#allocation3 + $0x10] sm:$0xff] %vm4968, %v4949
        %4972 = vst.msk [vmem:[#allocation3 + $0x18] sm:$0xff] %vm4968, %v4951
        %4973 = vst.msk [vmem:[#allocation3 + $0x20] sm:$0xff] %vm4968, %v4953
        %4974 = vst.msk [vmem:[#allocation3 + $0x28] sm:$0xff] %vm4968, %v4955
        %4975 = vst.msk [vmem:[#allocation3 + $0x30] sm:$0xff] %vm4968, %v4957
        %4976 = vst.msk [vmem:[#allocation3 + $0x38] sm:$0xff] %vm4968, %v4959
        %v4977 = vld [vmem:[%s1779 + $0x2] sm:$0xff]
        %v4978 = vld [vmem:[%s1779 + $0x12] sm:$0xff]
        %v4979 = vld [vmem:[%s1779 + $0x22] sm:$0xff]
        %v4980 = vld [vmem:[%s1779 + $0x32] sm:$0xff]
        %v4981 = vld [vmem:[%s1779 + $0x42] sm:$0xff]
        %v4982 = vld [vmem:[%s1779 + $0x52] sm:$0xff]
        %v4983 = vld [vmem:[%s1779 + $0x62] sm:$0xff]
        %v4984 = vld [vmem:[%s1779 + $0x72] sm:$0xff]
        %4993 = vrot.lane.b32.xlu0 %v4977, 64
        %v4994 = vpop.permute.xlu0 %4993
        %4995 = vrot.lane.b32.xlu0 %v4978, 64
        %v4996 = vpop.permute.xlu0 %4995
        %4997 = vrot.lane.b32.xlu0 %v4979, 64
        %v4998 = vpop.permute.xlu0 %4997
        %4999 = vrot.lane.b32.xlu0 %v4980, 64
        %v5000 = vpop.permute.xlu0 %4999
        %5001 = vrot.lane.b32.xlu0 %v4981, 64
        %v5002 = vpop.permute.xlu0 %5001
        %5003 = vrot.lane.b32.xlu0 %v4982, 64
        %v5004 = vpop.permute.xlu0 %5003
        %5005 = vrot.lane.b32.xlu0 %v4983, 64
        %v5006 = vpop.permute.xlu0 %5005
        %5007 = vrot.lane.b32.xlu0 %v4984, 64
        %v5008 = vpop.permute.xlu0 %5007
        %vm5017 = vcmask 589312
        %5018 = vst.msk [vmem:[#allocation3] sm:$0xff] %vm5017, %v4994
        %5019 = vst.msk [vmem:[#allocation3 + $0x8] sm:$0xff] %vm5017, %v4996
        %5020 = vst.msk [vmem:[#allocation3 + $0x10] sm:$0xff] %vm5017, %v4998
        %5021 = vst.msk [vmem:[#allocation3 + $0x18] sm:$0xff] %vm5017, %v5000
        %5022 = vst.msk [vmem:[#allocation3 + $0x20] sm:$0xff] %vm5017, %v5002
        %5023 = vst.msk [vmem:[#allocation3 + $0x28] sm:$0xff] %vm5017, %v5004
        %5024 = vst.msk [vmem:[#allocation3 + $0x30] sm:$0xff] %vm5017, %v5006
        %5025 = vst.msk [vmem:[#allocation3 + $0x38] sm:$0xff] %vm5017, %v5008
        %v5026 = vld [vmem:[#allocation3] sm:$0xff]
        %v5027 = vld [vmem:[#allocation3 + $0x8] sm:$0xff]
        %v5028 = vld [vmem:[#allocation3 + $0x10] sm:$0xff]
        %v5029 = vld [vmem:[#allocation3 + $0x18] sm:$0xff]
        %v5030 = vld [vmem:[#allocation3 + $0x20] sm:$0xff]
        %v5031 = vld [vmem:[#allocation3 + $0x28] sm:$0xff]
        %v5032 = vld [vmem:[#allocation3 + $0x30] sm:$0xff]
        %v5033 = vld [vmem:[#allocation3 + $0x38] sm:$0xff]
        %v5034 = vld [vmem:[%s10] sm:$0xff]
        %v5035 = vld [vmem:[%s10 + $0x8] sm:$0xff]
        %v5036 = vld [vmem:[%s10 + $0x10] sm:$0xff]
        %v5037 = vld [vmem:[%s10 + $0x18] sm:$0xff]
        %v5038 = vld [vmem:[%s10 + $0x20] sm:$0xff]
        %v5039 = vld [vmem:[%s10 + $0x28] sm:$0xff]
        %v5040 = vld [vmem:[%s10 + $0x30] sm:$0xff]
        %v5041 = vld [vmem:[%s10 + $0x38] sm:$0xff]
        %v5042 = vld [vmem:[%s10 + $0x40] sm:$0xff]
        %vm5043 = vcmask 588800
        %v5045 = vsel %vm5043, %v5026, 0
        %v5048 = vsel %vm5043, %v5027, 0
        %v5051 = vsel %vm5043, %v5028, 0
        %v5054 = vsel %vm5043, %v5029, 0
        %v5057 = vsel %vm5043, %v5030, 0
        %v5060 = vsel %vm5043, %v5031, 0
        %v5063 = vsel %vm5043, %v5032, 0
        %v5066 = vsel %vm5043, %v5033, 0
        %5068 = vmatprep.subr.mxu0 0.0
        %5069 = vmatpush1.msra.mxu0 0.0
        %5070 = vmatprep.subr.mxu0 0.0
        %5071 = vmatpush1.msra.mxu0 0.0
        %5072 = vmatprep.subr.mxu0 0.0
        %5073 = vmatpush1.msra.mxu0 0.0
        %5074 = vmatprep.subr.mxu0 0.0
        %5075 = vmatpush1.msra.mxu0 0.0
        %5076 = vmatprep.subr.mxu0 0.0
        %5077 = vmatpush1.msra.mxu0 0.0
        %5078 = vmatprep.subr.mxu0 0.0
        %5079 = vmatpush1.msra.mxu0 0.0
        %5080 = vmatprep.subr.mxu0 0.0
        %5081 = vmatpush1.msra.mxu0 0.0
        %5082 = vmatprep.subr.mxu0 0.0
        %5083 = vmatpush1.msra.mxu0 %v5042
        %5084 = vmatprep.subr.mxu0 0.0
        %5085 = vmatpush1.msra.mxu0 %v5041
        %5086 = vmatprep.subr.mxu0 0.0
        %5087 = vmatpush1.msra.mxu0 %v5040
        %5088 = vmatprep.subr.mxu0 0.0
        %5089 = vmatpush1.msra.mxu0 %v5039
        %5090 = vmatprep.subr.mxu0 0.0
        %5091 = vmatpush1.msra.mxu0 %v5038
        %5092 = vmatprep.subr.mxu0 0.0
        %5093 = vmatpush1.msra.mxu0 %v5037
        %5094 = vmatprep.subr.mxu0 0.0
        %5095 = vmatpush1.msra.mxu0 %v5036
        %5096 = vmatprep.subr.mxu0 0.0
        %5097 = vmatpush1.msra.mxu0 %v5035
        %5098 = vmatprep.subr.mxu0 0.0
        %5099 = vmatpush1.msra.mxu0 %v5034
        %5100 = vmatprep.subr.mxu0 0.0
        %5101 = vmatpush2.msra.mxu0 0.0
        %5102 = vmatprep.subr.mxu0 0.0
        %5103 = vmatpush2.msra.mxu0 0.0
        %5104 = vmatprep.subr.mxu0 0.0
        %5105 = vmatpush2.msra.mxu0 0.0
        %5106 = vmatprep.subr.mxu0 0.0
        %5107 = vmatpush2.msra.mxu0 0.0
        %5108 = vmatprep.subr.mxu0 0.0
        %5109 = vmatpush2.msra.mxu0 0.0
        %5110 = vmatprep.subr.mxu0 0.0
        %5111 = vmatpush2.msra.mxu0 0.0
        %5112 = vmatprep.subr.mxu0 0.0
        %5113 = vmatpush2.msra.mxu0 0.0
        %5114 = vmatprep.subr.mxu0 0.0
        %5115 = vmatpush2.msra.mxu0 0.0
        %5116 = vmatprep.subr.mxu0 0.0
        %5117 = vmatpush2.msra.mxu0 0.0
        %5118 = vmatprep.subr.mxu0 0.0
        %5119 = vmatpush2.msra.mxu0 0.0
        %5120 = vmatprep.subr.mxu0 0.0
        %5121 = vmatpush2.msra.mxu0 0.0
        %5122 = vmatprep.subr.mxu0 0.0
        %5123 = vmatpush2.msra.mxu0 0.0
        %5124 = vmatprep.subr.mxu0 0.0
        %5125 = vmatpush2.msra.mxu0 0.0
        %5126 = vmatprep.subr.mxu0 0.0
        %5127 = vmatpush2.msra.mxu0 0.0
        %5128 = vmatprep.subr.mxu0 0.0
        %5129 = vmatpush2.msra.mxu0 0.0
        %5130 = vmatprep.subr.mxu0 0.0
        %5131 = vmatpush2.msra.mxu0 0.0
        %5132 = vmatprep.mubr.f32.mxu0 0.0
        %5133 = vmatmul.mubr.f32.gmra.mxu0 %v5045
        %v5134 = vpop.f32.mrf.mxu0
        %v5135 = vadd.f32 0.0, %v5134
        %v5136 = vpop.f32.mrf.mxu0
        %5137 = vmatprep.mubr.f32.mxu0 0.0
        %5138 = vmatmul.mubr.f32.gmra.mxu0 %v5048
        %v5139 = vpop.f32.mrf.mxu0
        %v5140 = vadd.f32 0.0, %v5139
        %v5141 = vpop.f32.mrf.mxu0
        %5142 = vmatprep.mubr.f32.mxu0 0.0
        %5143 = vmatmul.mubr.f32.gmra.mxu0 %v5051
        %v5144 = vpop.f32.mrf.mxu0
        %v5145 = vadd.f32 0.0, %v5144
        %v5146 = vpop.f32.mrf.mxu0
        %5147 = vmatprep.mubr.f32.mxu0 0.0
        %5148 = vmatmul.mubr.f32.gmra.mxu0 %v5054
        %v5149 = vpop.f32.mrf.mxu0
        %v5150 = vadd.f32 0.0, %v5149
        %v5151 = vpop.f32.mrf.mxu0
        %5152 = vmatprep.mubr.f32.mxu0 0.0
        %5153 = vmatmul.mubr.f32.gmra.mxu0 %v5057
        %v5154 = vpop.f32.mrf.mxu0
        %v5155 = vadd.f32 0.0, %v5154
        %v5156 = vpop.f32.mrf.mxu0
        %5157 = vmatprep.mubr.f32.mxu0 0.0
        %5158 = vmatmul.mubr.f32.gmra.mxu0 %v5060
        %v5159 = vpop.f32.mrf.mxu0
        %v5160 = vadd.f32 0.0, %v5159
        %v5161 = vpop.f32.mrf.mxu0
        %5162 = vmatprep.mubr.f32.mxu0 0.0
        %5163 = vmatmul.mubr.f32.gmra.mxu0 %v5063
        %v5164 = vpop.f32.mrf.mxu0
        %v5165 = vadd.f32 0.0, %v5164
        %v5166 = vpop.f32.mrf.mxu0
        %5167 = vmatprep.mubr.f32.mxu0 0.0
        %5168 = vmatmul.mubr.f32.gmra.mxu0 %v5066
        %v5169 = vpop.f32.mrf.mxu0
        %v5170 = vadd.f32 0.0, %v5169
        %v5171 = vpop.f32.mrf.mxu0
        %5172 = vdwg.mxu0
        %v5173 = vsel %vm439, %v5135, 0.0
        %v5174 = vsel %vm439, %v5140, 0.0
        %v5175 = vadd.f32 %v5173, %v5174
        %v5176 = vsel %vm439, %v5145, 0.0
        %v5177 = vadd.f32 %v5175, %v5176
        %v5178 = vsel %vm439, %v5150, 0.0
        %v5179 = vadd.f32 %v5177, %v5178
        %v5180 = vsel %vm439, %v5155, 0.0
        %v5181 = vadd.f32 %v5179, %v5180
        %v5182 = vsel %vm439, %v5160, 0.0
        %v5183 = vadd.f32 %v5181, %v5182
        %v5184 = vsel %vm439, %v5165, 0.0
        %v5185 = vadd.f32 %v5183, %v5184
        %v5186 = vsel %vm439, %v5170, 0.0
        %v5187 = vadd.f32 %v5185, %v5186
        %5188 = vadd.xlane.f32.xlu0 %v5187
        %v5189 = vpop.xlane.xlu0 %5188
        %v5190 = vrot.slane %v5189, 4
        %v5191 = vadd.f32 %v5189, %v5190
        %v5192 = vrot.slane %v5191, 2
        %v5193 = vadd.f32 %v5191, %v5192
        %v5194 = vrot.slane %v5193, 1
        %v5195 = vadd.f32 %v5193, %v5194
        %s5196 = vtos %v5195
        %v5197 = vrcp.pop 512.0
        %s5198 = vtos %v5197
        %s5199 = smul.f32 %s5196, %s5198
        %v5200 = vstv %s5199
        %v5201 = vsub.f32 %v5135, %v5200
        %v5202 = vsub.f32 %v5140, %v5200
        %v5203 = vsub.f32 %v5145, %v5200
        %v5204 = vsub.f32 %v5150, %v5200
        %v5205 = vsub.f32 %v5155, %v5200
        %v5206 = vsub.f32 %v5160, %v5200
        %v5207 = vsub.f32 %v5165, %v5200
        %v5208 = vsub.f32 %v5170, %v5200
        %v5209 = vmul.f32 %v5201, %v5201
        %v5210 = vmul.f32 %v5202, %v5202
        %v5211 = vmul.f32 %v5203, %v5203
        %v5212 = vmul.f32 %v5204, %v5204
        %v5213 = vmul.f32 %v5205, %v5205
        %v5214 = vmul.f32 %v5206, %v5206
        %v5215 = vmul.f32 %v5207, %v5207
        %v5216 = vmul.f32 %v5208, %v5208
        %v5217 = vsel %vm439, %v5209, 0.0
        %v5218 = vsel %vm439, %v5210, 0.0
        %v5219 = vadd.f32 %v5217, %v5218
        %v5220 = vsel %vm439, %v5211, 0.0
        %v5221 = vadd.f32 %v5219, %v5220
        %v5222 = vsel %vm439, %v5212, 0.0
        %v5223 = vadd.f32 %v5221, %v5222
        %v5224 = vsel %vm439, %v5213, 0.0
        %v5225 = vadd.f32 %v5223, %v5224
        %v5226 = vsel %vm439, %v5214, 0.0
        %v5227 = vadd.f32 %v5225, %v5226
        %v5228 = vsel %vm439, %v5215, 0.0
        %v5229 = vadd.f32 %v5227, %v5228
        %v5230 = vsel %vm439, %v5216, 0.0
        %v5231 = vadd.f32 %v5229, %v5230
        %5232 = vadd.xlane.f32.xlu0 %v5231
        %v5233 = vpop.xlane.xlu0 %5232
        %v5234 = vrot.slane %v5233, 4
        %v5235 = vadd.f32 %v5233, %v5234
        %v5236 = vrot.slane %v5235, 2
        %v5237 = vadd.f32 %v5235, %v5236
        %v5238 = vrot.slane %v5237, 1
        %v5239 = vadd.f32 %v5237, %v5238
        %s5240 = vtos %v5239
        %v5241 = vrcp.pop 512.0
        %s5242 = vtos %v5241
        %s5243 = smul.f32 %s5240, %s5242
        %s5244 = sadd.f32 %s5243, 1e-05
        %v5245 = vstv %s5244
        %v5246 = vrsqrt.pop %v5245
        %s5247 = vtos %v5246
        %v5248 = vstv %s5247
        %v5249 = vmul.f32 %v5201, %v5248
        %v5250 = vmul.f32 %v5202, %v5248
        %v5251 = vmul.f32 %v5203, %v5248
        %v5252 = vmul.f32 %v5204, %v5248
        %v5253 = vmul.f32 %v5205, %v5248
        %v5254 = vmul.f32 %v5206, %v5248
        %v5255 = vmul.f32 %v5207, %v5248
        %v5256 = vmul.f32 %v5208, %v5248
        %v5257 = vld [vmem:[%s11] sm:$0x1]
        %v5259 = vlaneseq
        %v5260 = vshrl.u32 %v5259, 7
        %v5261 = vsub.s32 0, %v5260
        %v5262 = vrot.slane %v5257, %v5261
        %v5264 = vmul.f32 %v5249, %v5262
        %v5265 = vmul.f32 %v5250, %v5262
        %v5266 = vmul.f32 %v5251, %v5262
        %v5267 = vmul.f32 %v5252, %v5262
        %v5268 = vmul.f32 %v5253, %v5262
        %v5269 = vmul.f32 %v5254, %v5262
        %v5270 = vmul.f32 %v5255, %v5262
        %v5271 = vmul.f32 %v5256, %v5262
        %v5272 = vld [vmem:[%s12] sm:$0x1]
        %v5274 = vlaneseq
        %v5275 = vshrl.u32 %v5274, 7
        %v5276 = vsub.s32 0, %v5275
        %v5277 = vrot.slane %v5272, %v5276
        %v5279 = vadd.f32 %v5264, %v5277
        %v5280 = vadd.f32 %v5265, %v5277
        %v5281 = vadd.f32 %v5266, %v5277
        %v5282 = vadd.f32 %v5267, %v5277
        %v5283 = vadd.f32 %v5268, %v5277
        %v5284 = vadd.f32 %v5269, %v5277
        %v5285 = vadd.f32 %v5270, %v5277
        %v5286 = vadd.f32 %v5271, %v5277
        %v5295 = vrot.slane %v5280, 7
        %v5296 = vsel %vm1437, %v5295, %v5279
        %v5297 = vrot.slane %v5281, 6
        %v5298 = vsel %vm1439, %v5297, %v5296
        %v5299 = vrot.slane %v5282, 5
        %v5300 = vsel %vm1441, %v5299, %v5298
        %v5301 = vrot.slane %v5283, 4
        %v5302 = vsel %vm1443, %v5301, %v5300
        %v5303 = vrot.slane %v5284, 3
        %v5304 = vsel %vm1445, %v5303, %v5302
        %v5305 = vrot.slane %v5285, 2
        %v5306 = vsel %vm1447, %v5305, %v5304
        %v5307 = vrot.slane %v5286, 1
        %v5308 = vsel %vm1449, %v5307, %v5306
        %5310 = vst.msk [vmem:[%s433] sm:$0xff] %vm439, %v5308
        %v5311 = vsel %vm1439, %v5295, %v5279
        %v5312 = vsel %vm1441, %v5297, %v5311
        %v5313 = vsel %vm1443, %v5299, %v5312
        %v5314 = vsel %vm1445, %v5301, %v5313
        %v5315 = vsel %vm1447, %v5303, %v5314
        %v5316 = vsel %vm1449, %v5305, %v5315
        %5317 = vrot.lane.b32.xlu0 %v5316, 8
        %v5318 = vpop.permute.xlu0 %5317
        %5319 = vrot.lane.b32.xlu0 %v5307, 8
        %v5320 = vpop.permute.xlu0 %5319
        %vm5323 = vcmask 130113
        %5324 = vst.msk [vmem:[%s433 - $0x1] sm:$0xfe] %vm5323, %v5318
        %vm5325 = vcmask 122944
        %5326 = vst.msk [vmem:[%s433 + $0x7] sm:$0x1] %vm5325, %v5320
        %v5327 = vsel %vm1441, %v5295, %v5279
        %v5328 = vsel %vm1443, %v5297, %v5327
        %v5329 = vsel %vm1445, %v5299, %v5328
        %v5330 = vsel %vm1447, %v5301, %v5329
        %v5331 = vsel %vm1449, %v5303, %v5330
        %v5332 = vsel %vm1437, %v5307, %v5305
        %5333 = vrot.lane.b32.xlu0 %v5331, 16
        %v5334 = vpop.permute.xlu0 %5333
        %5335 = vrot.lane.b32.xlu0 %v5332, 16
        %v5336 = vpop.permute.xlu0 %5335
        %vm5339 = vcmask 195714
        %5340 = vst.msk [vmem:[%s433 - $0x2] sm:$0xfc] %vm5339, %v5334
        %vm5341 = vcmask 189568
        %5342 = vst.msk [vmem:[%s433 + $0x6] sm:$0x3] %vm5341, %v5336
        %v5343 = vsel %vm1443, %v5295, %v5279
        %v5344 = vsel %vm1445, %v5297, %v5343
        %v5345 = vsel %vm1447, %v5299, %v5344
        %v5346 = vsel %vm1449, %v5301, %v5345
        %v5347 = vsel %vm1437, %v5305, %v5303
        %v5348 = vsel %vm1439, %v5307, %v5347
        %5349 = vrot.lane.b32.xlu0 %v5346, 24
        %v5350 = vpop.permute.xlu0 %5349
        %5351 = vrot.lane.b32.xlu0 %v5348, 24
        %v5352 = vpop.permute.xlu0 %5351
        %vm5355 = vcmask 261315
        %5356 = vst.msk [vmem:[%s433 - $0x3] sm:$0xf8] %vm5355, %v5350
        %vm5357 = vcmask 256192
        %5358 = vst.msk [vmem:[%s433 + $0x5] sm:$0x7] %vm5357, %v5352
        %v5359 = vsel %vm1445, %v5295, %v5279
        %v5360 = vsel %vm1447, %v5297, %v5359
        %v5361 = vsel %vm1449, %v5299, %v5360
        %v5362 = vsel %vm1437, %v5303, %v5301
        %v5363 = vsel %vm1439, %v5305, %v5362
        %v5364 = vsel %vm1441, %v5307, %v5363
        %5365 = vrot.lane.b32.xlu0 %v5361, 32
        %v5366 = vpop.permute.xlu0 %5365
        %5367 = vrot.lane.b32.xlu0 %v5364, 32
        %v5368 = vpop.permute.xlu0 %5367
        %vm5371 = vcmask 326916
        %5372 = vst.msk [vmem:[%s433 - $0x4] sm:$0xf0] %vm5371, %v5366
        %vm5373 = vcmask 322816
        %5374 = vst.msk [vmem:[%s433 + $0x4] sm:$0xf] %vm5373, %v5368
        %v5375 = vsel %vm1447, %v5295, %v5279
        %v5376 = vsel %vm1449, %v5297, %v5375
        %v5377 = vsel %vm1437, %v5301, %v5299
        %v5378 = vsel %vm1439, %v5303, %v5377
        %v5379 = vsel %vm1441, %v5305, %v5378
        %v5380 = vsel %vm1443, %v5307, %v5379
        %5381 = vrot.lane.b32.xlu0 %v5376, 40
        %v5382 = vpop.permute.xlu0 %5381
        %5383 = vrot.lane.b32.xlu0 %v5380, 40
        %v5384 = vpop.permute.xlu0 %5383
        %vm5387 = vcmask 392517
        %5388 = vst.msk [vmem:[%s433 - $0x5] sm:$0xe0] %vm5387, %v5382
        %vm5389 = vcmask 389440
        %5390 = vst.msk [vmem:[%s433 + $0x3] sm:$0x1f] %vm5389, %v5384
        %v5391 = vsel %vm1449, %v5295, %v5279
        %v5392 = vsel %vm1437, %v5299, %v5297
        %v5393 = vsel %vm1439, %v5301, %v5392
        %v5394 = vsel %vm1441, %v5303, %v5393
        %v5395 = vsel %vm1443, %v5305, %v5394
        %v5396 = vsel %vm1445, %v5307, %v5395
        %5397 = vrot.lane.b32.xlu0 %v5391, 48
        %v5398 = vpop.permute.xlu0 %5397
        %5399 = vrot.lane.b32.xlu0 %v5396, 48
        %v5400 = vpop.permute.xlu0 %5399
        %vm5403 = vcmask 458118
        %5404 = vst.msk [vmem:[%s433 - $0x6] sm:$0xc0] %vm5403, %v5398
        %vm5405 = vcmask 456064
        %5406 = vst.msk [vmem:[%s433 + $0x2] sm:$0x3f] %vm5405, %v5400
        %v5407 = vsel %vm1437, %v5297, %v5295
        %v5408 = vsel %vm1439, %v5299, %v5407
        %v5409 = vsel %vm1441, %v5301, %v5408
        %v5410 = vsel %vm1443, %v5303, %v5409
        %v5411 = vsel %vm1445, %v5305, %v5410
        %v5412 = vsel %vm1447, %v5307, %v5411
        %5413 = vrot.lane.b32.xlu0 %v5279, 56
        %v5414 = vpop.permute.xlu0 %5413
        %5415 = vrot.lane.b32.xlu0 %v5412, 56
        %v5416 = vpop.permute.xlu0 %5415
        %vm5419 = vcmask 523719
        %5420 = vst.msk [vmem:[%s433 - $0x7] sm:$0x80] %vm5419, %v5414
        %vm5421 = vcmask 522688
        %5422 = vst.msk [vmem:[%s433 + $0x1] sm:$0x7f] %vm5421, %v5416
        %s5423 = sand.u32 %s313, 1
        %s5424 = scalar_lea.sflag [#allocation5], %s5423
        %s5425 = sand.u32 %s313, 1
        %s5426 = smul.addr %s5425, 8
        %s5427 = scalar_lea.vmem [#allocation4], %s5426
        // Predicated region
        $region73: #{tpu_custom_call.1} parent=71 // pred_check
          %p5428 = pneg %p323
        $region74: #{tpu_custom_call.1} parent=71 // pred_check_branch
          %5430 = sbr.rel (%p5428) target = $region76
        $region75: #{tpu_custom_call.1} parent=71 // pred_region
          %s5432 = ssub.s32 128, 128
          %5433 = vsyncadd %s5424, %s5432
          %s5434 = smul.addr %s27, 128
          %s5435 = scalar_lea.hbm %s13, %s5434
          %s5437 = sshll.u32 %s5427, 4
          %s5438 = int_to_ptr.vmem [resolvable:$true] %s5437
          %5440 = dma.vmem_to_hbm [thread:$0]  %s5438, 128, %s5435, %s5424
        $region76: #{tpu_custom_call.1} parent=71 // pred_fallthru
          _
      $region72: #{tpu_custom_call.1} parent=5 // pred_fallthru
        _
      %p5441 = scmp.le.s32.totalorder 2, %s22
      // Predicated region
      $region77: #{tpu_custom_call.1} parent=5 // pred_check
        %p5442 = pneg %p5441
      $region78: #{tpu_custom_call.1} parent=5 // pred_check_branch
        %5444 = sbr.rel (%p5442) target = $region80
      $region79: #{tpu_custom_call.1} parent=5 // pred_region
        %s5445 = ssub.s32 %s22, 2
        // Predicated region
        $region81: #{tpu_custom_call.1} parent=79 // pred_check
          %p5446 = pneg %p329
        $region82: #{tpu_custom_call.1} parent=79 // pred_check_branch
          %5448 = sbr.rel (%p5446) target = $region84
        $region83: #{tpu_custom_call.1} parent=79 // pred_region
          %s5449 = sand.u32 %s314, 1
          %s5450 = scalar_lea.sflag [#allocation5], %s5449
          %s5451 = sand.u32 %s314, 1
          %s5452 = smul.addr %s5451, 8
          %s5453 = scalar_lea.vmem [#allocation4], %s5452
          %5454 = dma.done %s5450, 128
        $region84: #{tpu_custom_call.1} parent=79 // pred_fallthru
          _
      $region80: #{tpu_custom_call.1} parent=5 // pred_fallthru
        _
    $region6: #{tpu_custom_call.1} parent=1 // loop_footer
      %s26 = sadd.s32 1, %s22
    $region7: #{tpu_custom_call.1} parent=1 // loop_footer_branch
      %21 = sbr.rel target = $region3
    $region8: #{tpu_custom_call.1} parent=1 // loop_exit
      _
    %5455 = vsyncpa [#allocation5], 1
    %s5456 = scalar_lea.sflag [#allocation5], 1
    %5457 = vsyncpa %s5456, 1

</llo_original>
